<compile_context>
chip_gen: v7x
topology: tpu7x:2x2x1
jax: 0.10.0
libtpu: 0.0.40
codegen_flags: <defaults>
</compile_context>

<pallas_src>
import jax
import jax.numpy as jnp
from jax.experimental import pallas as pl
from jax.experimental.pallas import tpu as pltpu

# ----------------------------- Model dimensions ------------------------------
K = 8                      # conv kernel size
C1, C2 = 16, 32            # conv channel counts
L_IN = 1024                # per-branch input length
L1 = L_IN - K + 1          # 1017  (conv1 valid length)
L2 = L1 - K + 1            # 1010  (conv2 valid length = FC input features)
L2PAD = 1024               # lane-padded conv2 / FC-input width
Y1W = L2PAD + 128          # 1152: conv1 output width so conv2 slices stay in-bounds
XPAD = Y1W + 128           # 1280: padded input width so conv1 slices stay in-bounds
D_FC = 768                 # encoder FC output
D_H1, D_H2 = 512, 256      # MLP hidden sizes


# ------------------------- Fused encoder (per branch) -------------------------
def _encoder_kernel(x_ref, c1w_ref, c1b_ref, c2w_ref, c2b_ref,
                    fcw_ref, fcb_ref, o_ref):
    # x_ref  : (1, 1, 1, XPAD)   one branch of one batch row, zero-padded
    # c1w_ref: (1, C1, K)        c1b_ref: (1, C1, 1)
    # c2w_ref: (1, C2, K*C1)     c2b_ref: (1, C2, 1)   (k-major / ci-minor packing)
    # fcw_ref: (1, L2PAD, D_FC)  bf16, rows >= L2 are zero
    # fcb_ref: (1, 1, D_FC)
    # o_ref  : (1, 1, 1, D_FC)
    x = x_ref[...].reshape(1, XPAD)                    # (1, XPAD)

    # ---- conv1 + ReLU on the VPU: 8 shifted fused multiply-adds ----
    w1 = c1w_ref[0]                                    # (C1, K)
    acc1 = jnp.zeros((C1, Y1W), jnp.float32)
    for k in range(K):                                 # static unroll
        acc1 = acc1 + w1[:, k:k + 1] * x[:, k:k + Y1W]
    y1 = jnp.maximum(acc1 + c1b_ref[0], 0.0)           # (C1, Y1W); cols >= L1 garbage

    # ---- conv2 + ReLU on the MXU: im2col (K*C1, L2PAD) contraction ----
    cols = jnp.concatenate([y1[:, k:k + L2PAD] for k in range(K)], axis=0)
    y2 = jnp.dot(c2w_ref[0], cols, preferred_element_type=jnp.float32)
    y2 = jnp.maximum(y2 + c2b_ref[0], 0.0)             # (C2, L2PAD); cols >= L2 garbage

    # ---- channel max + FC + ReLU (garbage tail columns hit zero weight rows) ----
    m = jnp.max(y2, axis=0, keepdims=True)             # (1, L2PAD)
    fw = fcw_ref[0].astype(jnp.float32)                # (L2PAD, D_FC)
    h = jnp.dot(m, fw, preferred_element_type=jnp.float32) + fcb_ref[0]
    o_ref[...] = jnp.maximum(h, 0.0).reshape(1, 1, 1, D_FC)


def _encoder_forward(xp, p):
    """xp: (B, 2, 1, XPAD) padded input; p: branch-stacked params -> (B, 2*D_FC)."""
    B = xp.shape[0]
    flops = 2 * 2 * B * (C1 * K * Y1W + C2 * (K * C1) * L2PAD + L2PAD * D_FC)
    bytes_accessed = (4 * xp.size + 4 * p["c1w"].size + 4 * p["c1b"].size
                      + 4 * p["c2w"].size + 4 * p["c2b"].size
                      + 2 * p["fcw"].size + 4 * p["fcb"].size
                      + 4 * B * 2 * D_FC)
    out = pl.pallas_call(
        _encoder_kernel,
        out_shape=jax.ShapeDtypeStruct((B, 2, 1, D_FC), jnp.float32),
        grid=(2, B),
        in_specs=[
            pl.BlockSpec((1, 1, 1, XPAD), lambda br, n: (n, br, 0, 0)),
            pl.BlockSpec((1, C1, K), lambda br, n: (br, 0, 0)),
            pl.BlockSpec((1, C1, 1), lambda br, n: (br, 0, 0)),
            pl.BlockSpec((1, C2, K * C1), lambda br, n: (br, 0, 0)),
            pl.BlockSpec((1, C2, 1), lambda br, n: (br, 0, 0)),
            pl.BlockSpec((1, L2PAD, D_FC), lambda br, n: (br, 0, 0)),
            pl.BlockSpec((1, 1, D_FC), lambda br, n: (br, 0, 0)),
        ],
        out_specs=pl.BlockSpec((1, 1, 1, D_FC), lambda br, n: (n, br, 0, 0)),
        compiler_params=pltpu.CompilerParams(
            dimension_semantics=("parallel", "parallel"),
            vmem_limit_bytes=32 * 1024 * 1024),
        cost_estimate=pl.CostEstimate(flops=flops, transcendentals=0,
                                      bytes_accessed=bytes_accessed),
    )(xp, p["c1w"], p["c1b"], p["c2w"], p["c2b"], p["fcw"], p["fcb"])
    return out.reshape(B, 2 * D_FC)


# ------------------------------- Fused MLP head -------------------------------
def _mlp_kernel(h_ref, w1_ref, b1_ref, w2_ref, b2_ref, w3_ref, b3_ref, o_ref):
    h = h_ref[...]                                               # (B, 2*D_FC)
    w1 = w1_ref[...].astype(jnp.float32)                         # bf16 -> f32
    h = jnp.maximum(jnp.dot(h, w1, preferred_element_type=jnp.float32)
                    + b1_ref[...], 0.0)                          # (B, 512)
    h = jnp.maximum(jnp.dot(h, w2_ref[...], preferred_element_type=jnp.float32)
                    + b2_ref[...], 0.0)                          # (B, 256)
    # Final 256 -> 1 layer as an elementwise-mul + lane reduction (avoids a
    # degenerate N=1 matmul), then sigmoid.
    z = jnp.sum(h * w3_ref[...], axis=1, keepdims=True) + b3_ref[...]
    o_ref[...] = 1.0 / (1.0 + jnp.exp(-z))


def _mlp_forward(h, p):
    B, D = h.shape
    flops = 2 * B * (D * D_H1 + D_H1 * D_H2 + D_H2)
    bytes_accessed = (4 * h.size + 2 * p["w1"].size + 4 * p["w2"].size
                      + 4 * p["w3"].size + 4 * (D_H1 + D_H2 + 1) + 4 * B)
    return pl.pallas_call(
        _mlp_kernel,
        out_shape=jax.ShapeDtypeStruct((B, 1), jnp.float32),
        grid=(1,),
        in_specs=[
            pl.BlockSpec((B, D), lambda i: (0, 0)),
            pl.BlockSpec((D, D_H1), lambda i: (0, 0)),
            pl.BlockSpec((1, D_H1), lambda i: (0, 0)),
            pl.BlockSpec((D_H1, D_H2), lambda i: (0, 0)),
            pl.BlockSpec((1, D_H2), lambda i: (0, 0)),
            pl.BlockSpec((1, D_H2), lambda i: (0, 0)),
            pl.BlockSpec((1, 1), lambda i: (0, 0)),
        ],
        out_specs=pl.BlockSpec((B, 1), lambda i: (0, 0)),
        compiler_params=pltpu.CompilerParams(
            dimension_semantics=("arbitrary",),
            vmem_limit_bytes=32 * 1024 * 1024),
        cost_estimate=pl.CostEstimate(flops=flops, transcendentals=B,
                                      bytes_accessed=bytes_accessed),
    )(h, p["w1"], p["b1"], p["w2"], p["b2"], p["w3"], p["b3"])


# ------------------------------ Parameter init --------------------------------
def _init_conv(key, dim_in, dim_out, kernel_size):
    k_w, k_b = jax.random.split(key)
    fan_in = dim_in * kernel_size
    fan_out = dim_out * kernel_size
    bound_w = (6.0 / (fan_in + fan_out)) ** 0.5            # xavier_uniform_
    weight = jax.random.uniform(k_w, (dim_out, dim_in, kernel_size),
                                minval=-bound_w, maxval=bound_w, dtype=jnp.float32)
    bound_b = 1.0 / (fan_in ** 0.5)                        # torch Conv1d default
    bias = jax.random.uniform(k_b, (dim_out,), minval=-bound_b, maxval=bound_b,
                              dtype=jnp.float32)
    return weight, bias


def _init_linear(key, dim_in, dim_out):
    k_w, k_b = jax.random.split(key)
    std = (2.0 / (dim_in + dim_out)) ** 0.5                # xavier_normal_
    w = std * jax.random.normal(k_w, (dim_in, dim_out), dtype=jnp.float32)
    bound_b = 1.0 / (dim_in ** 0.5)                        # torch Linear default
    b = jax.random.uniform(k_b, (dim_out,), minval=-bound_b, maxval=bound_b,
                           dtype=jnp.float32)
    return w, b


def _bf16_round(w):
    return w.astype(jnp.bfloat16).astype(jnp.float32)


# --------------------------------- Model --------------------------------------
class GNetNNPallas:
    def __init__(self, key):
        k_d, k_p, k3, k4, k5 = jax.random.split(key, 5)

        def init_encoder(k):
            k1, k2, kfc = jax.random.split(k, 3)
            c1w, c1b = _init_conv(k1, 1, C1, K)
            c2w, c2b = _init_conv(k2, C1, C2, K)
            fcw, fcb = _init_linear(kfc, L2, D_FC)
            fcw = _bf16_round(fcw)          # streamed in bf16; ref uses same values
            return dict(c1w=c1w, c1b=c1b, c2w=c2w, c2b=c2b, fcw=fcw, fcb=fcb)

        enc = [init_encoder(k_d), init_encoder(k_p)]   # [drug, prot]
        self.enc_ref = enc                             # f32 params for the reference

        # Branch-stacked, kernel-ready layouts.
        self.enc_pack = dict(
            c1w=jnp.stack([e["c1w"].reshape(C1, K) for e in enc]),
            c1b=jnp.stack([e["c1b"].reshape(C1, 1) for e in enc]),
            # (C2, C1, K) -> (C2, K, C1) -> (C2, K*C1): k-major, matches in-kernel im2col.
            c2w=jnp.stack([e["c2w"].transpose(0, 2, 1).reshape(C2, K * C1) for e in enc]),
            c2b=jnp.stack([e["c2b"].reshape(C2, 1) for e in enc]),
            fcw=jnp.stack([jnp.pad(e["fcw"], ((0, L2PAD - L2), (0, 0))) for e in enc]
                          ).astype(jnp.bfloat16),
            fcb=jnp.stack([e["fcb"].reshape(1, D_FC) for e in enc]),
        )

        w1, b1 = _init_linear(k3, 2 * D_FC, D_H1)
        w1 = _bf16_round(w1)
        w2, b2 = _init_linear(k4, D_H1, D_H2)
        w3, b3 = _init_linear(k5, D_H2, 1)
        self.mlp_ref = [(w1, b1), (w2, b2), (w3, b3)]
        self.mlp_pack = dict(
            w1=w1.astype(jnp.bfloat16), b1=b1.reshape(1, D_H1),
            w2=w2, b2=b2.reshape(1, D_H2),
            w3=w3.reshape(1, D_H2), b3=b3.reshape(1, 1),
        )

    def __call__(self, x):
        B = x.shape[0]
        # Branch 0 = x[:, :1024] (drug), branch 1 = x[:, 1024:] (prot).
        xr = x.reshape(B, 2, 1, L_IN)
        xp = jnp.pad(xr, ((0, 0), (0, 0), (0, 0), (0, XPAD - L_IN)))
        h = _encoder_forward(xp, self.enc_pack)        # (B, 1536), concat order preserved
        return _mlp_forward(h, self.mlp_pack)          # (B, 1)


# ------------------------- Pure-JAX reference (check) --------------------------
def _ref_forward(model, x):
    def conv_relu(x3, w, b):
        y = jax.lax.conv_general_dilated(
            x3, w, window_strides=(1,), padding=[(0, 0)],
            dimension_numbers=("NCH", "OIH", "NCH"))
        return jnp.maximum(y + b[None, :, None], 0.0)

    def encoder(p, x2):
        h = conv_relu(x2[:, None, :], p["c1w"], p["c1b"])
        h = conv_relu(h, p["c2w"], p["c2b"])
        h = jnp.max(h, axis=1)                               # (B, 1010)
        return jnp.maximum(h @ p["fcw"] + p["fcb"], 0.0)

    d = encoder(model.enc_ref[0], x[:, :L_IN])
    p = encoder(model.enc_ref[1], x[:, L_IN:])
    h = jnp.concatenate([d, p], axis=-1)
    (w1, b1), (w2, b2), (w3, b3) = model.mlp_ref
    h = jnp.maximum(h @ w1 + b1, 0.0)
    h = jnp.maximum(h @ w2 + b2, 0.0)
    return jax.nn.sigmoid(h @ w3 + b3)


# ------------------------------------ main -------------------------------------
if __name__ == "__main__":
    key = jax.random.PRNGKey(0)
    k_model, k_x = jax.random.split(key)

    model = GNetNNPallas(k_model)

    # GNetNN splits its input at column 1024 and Linear(1010, 768) fixes both
    # branch lengths to 1024, so the smallest consistent input is (2, 2048).
    B = 2
    x = jax.random.normal(k_x, (B, 2048), dtype=jnp.float32)

    out = jax.block_until_ready(model(x))
    assert out.shape == (B, 1), out.shape

    ref = jax.block_until_ready(_ref_forward(model, x))
    assert jnp.allclose(out, ref, atol=1e-4, rtol=1e-4), \
        float(jnp.max(jnp.abs(out - ref)))

    print("KERNEL_OK")
</pallas_src>

<mosaic_0001>
module attributes {stable_mosaic.version = 11 : i64} {
  func.func @_encoder_kernel(%arg0: i32, %arg1: i32, %arg2: memref<1x1x1x1280xf32, #tpu.memory_space<vmem>>, %arg3: memref<1x16x8xf32, #tpu.memory_space<vmem>>, %arg4: memref<1x16x1xf32, #tpu.memory_space<vmem>>, %arg5: memref<1x32x128xf32, #tpu.memory_space<vmem>>, %arg6: memref<1x32x1xf32, #tpu.memory_space<vmem>>, %arg7: memref<1x1024x768xbf16, #tpu.memory_space<vmem>>, %arg8: memref<1x1x768xf32, #tpu.memory_space<vmem>>, %arg9: memref<1x1x1x768xf32, #tpu.memory_space<vmem>>) attributes {dimension_semantics = [#tpu.dimension_semantics<parallel>, #tpu.dimension_semantics<parallel>], iteration_bounds = array<i64: 2, 2>, scalar_prefetch = 0 : i64, scratch_operands = 0 : i64, tpu.core_type = #tpu.core_type<tc>, window_params = [{transform_indices = @transform_0, window_bounds = array<i64: 1, 1, 1, 1280>}, {transform_indices = @transform_1, window_bounds = array<i64: 1, 16, 8>}, {transform_indices = @transform_2, window_bounds = array<i64: 1, 16, 1>}, {transform_indices = @transform_3, window_bounds = array<i64: 1, 32, 128>}, {transform_indices = @transform_4, window_bounds = array<i64: 1, 32, 1>}, {transform_indices = @transform_5, window_bounds = array<i64: 1, 1024, 768>}, {transform_indices = @transform_6, window_bounds = array<i64: 1, 1, 768>}, {transform_indices = @transform_7, window_bounds = array<i64: 1, 1, 1, 768>}]} {
    %c0 = arith.constant 0 : index
    %c0_0 = arith.constant 0 : index
    %c0_1 = arith.constant 0 : index
    %c0_2 = arith.constant 0 : index
    %0 = vector.load %arg2[%c0, %c0_0, %c0_1, %c0_2] : memref<1x1x1x1280xf32, #tpu.memory_space<vmem>>, vector<1x1x1x1280xf32>
    %1 = vector.shape_cast %0 : vector<1x1x1x1280xf32> to vector<1x1280xf32>
    %c0_3 = arith.constant 0 : index
    %c0_4 = arith.constant 0 : index
    %c0_5 = arith.constant 0 : index
    %2 = vector.load %arg3[%c0_3, %c0_4, %c0_5] : memref<1x16x8xf32, #tpu.memory_space<vmem>>, vector<1x16x8xf32>
    %3 = vector.shape_cast %2 : vector<1x16x8xf32> to vector<16x8xf32>
    %cst = arith.constant 0.000000e+00 : f32
    %4 = vector.broadcast %cst : f32 to vector<16x1152xf32>
    %5 = vector.extract_strided_slice %3 {offsets = [0, 0], sizes = [16, 1], strides = [1, 1]} : vector<16x8xf32> to vector<16x1xf32>
    %6 = vector.extract_strided_slice %1 {offsets = [0, 0], sizes = [1, 1152], strides = [1, 1]} : vector<1x1280xf32> to vector<1x1152xf32>
    %7 = vector.broadcast %5 : vector<16x1xf32> to vector<16x1152xf32>
    %8 = vector.broadcast %6 : vector<1x1152xf32> to vector<16x1152xf32>
    %9 = arith.mulf %7, %8 : vector<16x1152xf32>
    %10 = arith.addf %4, %9 : vector<16x1152xf32>
    %11 = vector.extract_strided_slice %3 {offsets = [0, 1], sizes = [16, 1], strides = [1, 1]} : vector<16x8xf32> to vector<16x1xf32>
    %12 = vector.extract_strided_slice %1 {offsets = [0, 1], sizes = [1, 1152], strides = [1, 1]} : vector<1x1280xf32> to vector<1x1152xf32>
    %13 = vector.broadcast %11 : vector<16x1xf32> to vector<16x1152xf32>
    %14 = vector.broadcast %12 : vector<1x1152xf32> to vector<16x1152xf32>
    %15 = arith.mulf %13, %14 : vector<16x1152xf32>
    %16 = arith.addf %10, %15 : vector<16x1152xf32>
    %17 = vector.extract_strided_slice %3 {offsets = [0, 2], sizes = [16, 1], strides = [1, 1]} : vector<16x8xf32> to vector<16x1xf32>
    %18 = vector.extract_strided_slice %1 {offsets = [0, 2], sizes = [1, 1152], strides = [1, 1]} : vector<1x1280xf32> to vector<1x1152xf32>
    %19 = vector.broadcast %17 : vector<16x1xf32> to vector<16x1152xf32>
    %20 = vector.broadcast %18 : vector<1x1152xf32> to vector<16x1152xf32>
    %21 = arith.mulf %19, %20 : vector<16x1152xf32>
    %22 = arith.addf %16, %21 : vector<16x1152xf32>
    %23 = vector.extract_strided_slice %3 {offsets = [0, 3], sizes = [16, 1], strides = [1, 1]} : vector<16x8xf32> to vector<16x1xf32>
    %24 = vector.extract_strided_slice %1 {offsets = [0, 3], sizes = [1, 1152], strides = [1, 1]} : vector<1x1280xf32> to vector<1x1152xf32>
    %25 = vector.broadcast %23 : vector<16x1xf32> to vector<16x1152xf32>
    %26 = vector.broadcast %24 : vector<1x1152xf32> to vector<16x1152xf32>
    %27 = arith.mulf %25, %26 : vector<16x1152xf32>
    %28 = arith.addf %22, %27 : vector<16x1152xf32>
    %29 = vector.extract_strided_slice %3 {offsets = [0, 4], sizes = [16, 1], strides = [1, 1]} : vector<16x8xf32> to vector<16x1xf32>
    %30 = vector.extract_strided_slice %1 {offsets = [0, 4], sizes = [1, 1152], strides = [1, 1]} : vector<1x1280xf32> to vector<1x1152xf32>
    %31 = vector.broadcast %29 : vector<16x1xf32> to vector<16x1152xf32>
    %32 = vector.broadcast %30 : vector<1x1152xf32> to vector<16x1152xf32>
    %33 = arith.mulf %31, %32 : vector<16x1152xf32>
    %34 = arith.addf %28, %33 : vector<16x1152xf32>
    %35 = vector.extract_strided_slice %3 {offsets = [0, 5], sizes = [16, 1], strides = [1, 1]} : vector<16x8xf32> to vector<16x1xf32>
    %36 = vector.extract_strided_slice %1 {offsets = [0, 5], sizes = [1, 1152], strides = [1, 1]} : vector<1x1280xf32> to vector<1x1152xf32>
    %37 = vector.broadcast %35 : vector<16x1xf32> to vector<16x1152xf32>
    %38 = vector.broadcast %36 : vector<1x1152xf32> to vector<16x1152xf32>
    %39 = arith.mulf %37, %38 : vector<16x1152xf32>
    %40 = arith.addf %34, %39 : vector<16x1152xf32>
    %41 = vector.extract_strided_slice %3 {offsets = [0, 6], sizes = [16, 1], strides = [1, 1]} : vector<16x8xf32> to vector<16x1xf32>
    %42 = vector.extract_strided_slice %1 {offsets = [0, 6], sizes = [1, 1152], strides = [1, 1]} : vector<1x1280xf32> to vector<1x1152xf32>
    %43 = vector.broadcast %41 : vector<16x1xf32> to vector<16x1152xf32>
    %44 = vector.broadcast %42 : vector<1x1152xf32> to vector<16x1152xf32>
    %45 = arith.mulf %43, %44 : vector<16x1152xf32>
    %46 = arith.addf %40, %45 : vector<16x1152xf32>
    %47 = vector.extract_strided_slice %3 {offsets = [0, 7], sizes = [16, 1], strides = [1, 1]} : vector<16x8xf32> to vector<16x1xf32>
    %48 = vector.extract_strided_slice %1 {offsets = [0, 7], sizes = [1, 1152], strides = [1, 1]} : vector<1x1280xf32> to vector<1x1152xf32>
    %49 = vector.broadcast %47 : vector<16x1xf32> to vector<16x1152xf32>
    %50 = vector.broadcast %48 : vector<1x1152xf32> to vector<16x1152xf32>
    %51 = arith.mulf %49, %50 : vector<16x1152xf32>
    %52 = arith.addf %46, %51 : vector<16x1152xf32>
    %c0_6 = arith.constant 0 : index
    %c0_7 = arith.constant 0 : index
    %c0_8 = arith.constant 0 : index
    %53 = vector.load %arg4[%c0_6, %c0_7, %c0_8] : memref<1x16x1xf32, #tpu.memory_space<vmem>>, vector<1x16x1xf32>
    %54 = vector.shape_cast %53 : vector<1x16x1xf32> to vector<16x1xf32>
    %55 = vector.broadcast %54 : vector<16x1xf32> to vector<16x1152xf32>
    %56 = arith.addf %52, %55 : vector<16x1152xf32>
    %cst_9 = arith.constant 0.000000e+00 : f32
    %57 = vector.broadcast %cst_9 : f32 to vector<16x1152xf32>
    %58 = arith.maximumf %56, %57 : vector<16x1152xf32>
    %59 = vector.extract_strided_slice %58 {offsets = [0, 0], sizes = [16, 1024], strides = [1, 1]} : vector<16x1152xf32> to vector<16x1024xf32>
    %60 = vector.extract_strided_slice %58 {offsets = [0, 1], sizes = [16, 1024], strides = [1, 1]} : vector<16x1152xf32> to vector<16x1024xf32>
    %61 = vector.extract_strided_slice %58 {offsets = [0, 2], sizes = [16, 1024], strides = [1, 1]} : vector<16x1152xf32> to vector<16x1024xf32>
    %62 = vector.extract_strided_slice %58 {offsets = [0, 3], sizes = [16, 1024], strides = [1, 1]} : vector<16x1152xf32> to vector<16x1024xf32>
    %63 = vector.extract_strided_slice %58 {offsets = [0, 4], sizes = [16, 1024], strides = [1, 1]} : vector<16x1152xf32> to vector<16x1024xf32>
    %64 = vector.extract_strided_slice %58 {offsets = [0, 5], sizes = [16, 1024], strides = [1, 1]} : vector<16x1152xf32> to vector<16x1024xf32>
    %65 = vector.extract_strided_slice %58 {offsets = [0, 6], sizes = [16, 1024], strides = [1, 1]} : vector<16x1152xf32> to vector<16x1024xf32>
    %66 = vector.extract_strided_slice %58 {offsets = [0, 7], sizes = [16, 1024], strides = [1, 1]} : vector<16x1152xf32> to vector<16x1024xf32>
    %67 = tpu.concatenate %59, %60, %61, %62, %63, %64, %65, %66 in 0 : vector<16x1024xf32>, vector<16x1024xf32>, vector<16x1024xf32>, vector<16x1024xf32>, vector<16x1024xf32>, vector<16x1024xf32>, vector<16x1024xf32>, vector<16x1024xf32> -> vector<128x1024xf32>
    %c0_10 = arith.constant 0 : index
    %c0_11 = arith.constant 0 : index
    %c0_12 = arith.constant 0 : index
    %68 = vector.load %arg5[%c0_10, %c0_11, %c0_12] : memref<1x32x128xf32, #tpu.memory_space<vmem>>, vector<1x32x128xf32>
    %69 = vector.shape_cast %68 : vector<1x32x128xf32> to vector<32x128xf32>
    %cst_13 = arith.constant dense<0.000000e+00> : vector<32x1024xf32>
    %70 = tpu.matmul %69, %67, %cst_13 {dimension_numbers = #tpu.dot_dimension_numbers<[1], [0], [0], [1], [0, 0, 1, 1], [], []>} : vector<32x128xf32>, vector<128x1024xf32>, vector<32x1024xf32> -> vector<32x1024xf32>
    %c0_14 = arith.constant 0 : index
    %c0_15 = arith.constant 0 : index
    %c0_16 = arith.constant 0 : index
    %71 = vector.load %arg6[%c0_14, %c0_15, %c0_16] : memref<1x32x1xf32, #tpu.memory_space<vmem>>, vector<1x32x1xf32>
    %72 = vector.shape_cast %71 : vector<1x32x1xf32> to vector<32x1xf32>
    %73 = vector.broadcast %72 : vector<32x1xf32> to vector<32x1024xf32>
    %74 = arith.addf %70, %73 : vector<32x1024xf32>
    %cst_17 = arith.constant 0.000000e+00 : f32
    %75 = vector.broadcast %cst_17 : f32 to vector<32x1024xf32>
    %76 = arith.maximumf %74, %75 : vector<32x1024xf32>
    %cst_18 = arith.constant dense<0xFF800000> : vector<1024xf32>
    %77 = vector.multi_reduction <maximumf>, %76, %cst_18 [0] : vector<32x1024xf32> to vector<1024xf32>
    %78 = vector.shape_cast %77 : vector<1024xf32> to vector<1x1024xf32>
    %c0_19 = arith.constant 0 : index
    %c0_20 = arith.constant 0 : index
    %c0_21 = arith.constant 0 : index
    %79 = vector.load %arg7[%c0_19, %c0_20, %c0_21] : memref<1x1024x768xbf16, #tpu.memory_space<vmem>>, vector<1x1024x768xbf16>
    %80 = vector.shape_cast %79 : vector<1x1024x768xbf16> to vector<1024x768xbf16>
    %81 = arith.extf %80 : vector<1024x768xbf16> to vector<1024x768xf32>
    %cst_22 = arith.constant dense<0.000000e+00> : vector<1x768xf32>
    %82 = tpu.matmul %78, %81, %cst_22 {dimension_numbers = #tpu.dot_dimension_numbers<[1], [0], [0], [1], [0, 0, 1, 1], [], []>} : vector<1x1024xf32>, vector<1024x768xf32>, vector<1x768xf32> -> vector<1x768xf32>
    %c0_23 = arith.constant 0 : index
    %c0_24 = arith.constant 0 : index
    %c0_25 = arith.constant 0 : index
    %83 = vector.load %arg8[%c0_23, %c0_24, %c0_25] : memref<1x1x768xf32, #tpu.memory_space<vmem>>, vector<1x1x768xf32>
    %84 = vector.shape_cast %83 : vector<1x1x768xf32> to vector<1x768xf32>
    %85 = arith.addf %82, %84 : vector<1x768xf32>
    %cst_26 = arith.constant 0.000000e+00 : f32
    %86 = vector.broadcast %cst_26 : f32 to vector<1x768xf32>
    %87 = arith.maximumf %85, %86 : vector<1x768xf32>
    %88 = vector.shape_cast %87 : vector<1x768xf32> to vector<1x1x1x768xf32>
    %c0_27 = arith.constant 0 : index
    %c0_28 = arith.constant 0 : index
    %c0_29 = arith.constant 0 : index
    %c0_30 = arith.constant 0 : index
    %89 = vector.load %arg9[%c0_27, %c0_28, %c0_29, %c0_30] : memref<1x1x1x768xf32, #tpu.memory_space<vmem>>, vector<1x1x1x768xf32>
    tpu.vector_store %arg9[%c0_27, %c0_28, %c0_29, %c0_30], %88 {strides = array<i32>} : memref<1x1x1x768xf32, #tpu.memory_space<vmem>>, vector<1x1x1x768xf32>,
    return
  }
  func.func @transform_0(%arg0: i32, %arg1: i32) -> (i32, i32, i32, i32) {
    %c0_i32 = arith.constant 0 : i32
    %c0_i32_0 = arith.constant 0 : i32
    %c0_i32_1 = arith.constant 0 : i32
    return %arg1, %arg0, %c0_i32, %c0_i32_0 : i32, i32, i32, i32
  }
  func.func @transform_1(%arg0: i32, %arg1: i32) -> (i32, i32, i32) {
    %c0_i32 = arith.constant 0 : i32
    %c0_i32_0 = arith.constant 0 : i32
    %c0_i32_1 = arith.constant 0 : i32
    return %arg0, %c0_i32, %c0_i32_0 : i32, i32, i32
  }
  func.func @transform_2(%arg0: i32, %arg1: i32) -> (i32, i32, i32) {
    %c0_i32 = arith.constant 0 : i32
    %c0_i32_0 = arith.constant 0 : i32
    %c0_i32_1 = arith.constant 0 : i32
    return %arg0, %c0_i32, %c0_i32_0 : i32, i32, i32
  }
  func.func @transform_3(%arg0: i32, %arg1: i32) -> (i32, i32, i32) {
    %c0_i32 = arith.constant 0 : i32
    %c0_i32_0 = arith.constant 0 : i32
    %c0_i32_1 = arith.constant 0 : i32
    return %arg0, %c0_i32, %c0_i32_0 : i32, i32, i32
  }
  func.func @transform_4(%arg0: i32, %arg1: i32) -> (i32, i32, i32) {
    %c0_i32 = arith.constant 0 : i32
    %c0_i32_0 = arith.constant 0 : i32
    %c0_i32_1 = arith.constant 0 : i32
    return %arg0, %c0_i32, %c0_i32_0 : i32, i32, i32
  }
  func.func @transform_5(%arg0: i32, %arg1: i32) -> (i32, i32, i32) {
    %c0_i32 = arith.constant 0 : i32
    %c0_i32_0 = arith.constant 0 : i32
    %c0_i32_1 = arith.constant 0 : i32
    return %arg0, %c0_i32, %c0_i32_0 : i32, i32, i32
  }
  func.func @transform_6(%arg0: i32, %arg1: i32) -> (i32, i32, i32) {
    %c0_i32 = arith.constant 0 : i32
    %c0_i32_0 = arith.constant 0 : i32
    %c0_i32_1 = arith.constant 0 : i32
    return %arg0, %c0_i32, %c0_i32_0 : i32, i32, i32
  }
  func.func @transform_7(%arg0: i32, %arg1: i32) -> (i32, i32, i32, i32) {
    %c0_i32 = arith.constant 0 : i32
    %c0_i32_0 = arith.constant 0 : i32
    %c0_i32_1 = arith.constant 0 : i32
    return %arg1, %arg0, %c0_i32, %c0_i32_0 : i32, i32, i32, i32
  }
}

</mosaic_0001>

<llo_original>
// kernel: tpu_custom_call.1
$region0: #{tpu_custom_call.1}
  #allocation0 [shape = 'u32[]', space=smem, size = 0x4, offset = 0x4, fixed_abs, tag = 'smem constant byte address 0x4 - core index']
  #allocation1 [shape = 'u32[144,128]{1,0:T(1,128)}', space=vmem, size = 0x12000, scoped, tag = 'internal scratch']
  %s0 = inlined_call_operand.hbm [shape: f32[2,2,1,1280], index: 0, kind: input, shape index: {}]
  %s1 = inlined_call_operand.vmem [shape: f32[2,16,8], index: 1, kind: input, shape index: {}]
  %s2 = inlined_call_operand.vmem [shape: f32[2,16,1], index: 2, kind: input, shape index: {}]
  %s3 = inlined_call_operand.hbm [shape: f32[2,32,128], index: 3, kind: input, shape index: {}]
  %s4 = inlined_call_operand.vmem [shape: f32[2,32,1], index: 4, kind: input, shape index: {}]
  %s5 = inlined_call_operand.hbm [shape: bf16[2,1024,768], index: 5, kind: input, shape index: {}]
  %s6 = inlined_call_operand.hbm [shape: f32[2,1,768], index: 6, kind: input, shape index: {}]
  %s7 = inlined_call_operand.hbm [shape: f32[2,2,1,768], index: 7, kind: output, shape index: {}]
  %s8 = sld [smem:[#allocation0]]
  $region77: #{tpu_custom_call.1} parent=0
    _
  %s10 = ssub.s32 1, %s8
  %s11 = scalar_select 0, %s10, %s8
  $region1: #{tpu_custom_call.1} parent=0
    #allocation2 [shape = 'u8[10240]{0}', space=vmem, size = 0x2800, scoped, tag = 'input window, operand 0']
    #allocation3 [shape = 's32[2]{0}', space=sflag, size = 0x8, scoped, tag = 'scoped memory for tpu_custom_call.1']
    #allocation4 [shape = 's32[2]{0}', space=sflag, size = 0x8, scoped, tag = 'scoped memory for tpu_custom_call.1']
    #allocation5 [shape = 'u8[32768]{0}', space=vmem, size = 0x8000, scoped, tag = 'input window, operand 3']
    #allocation6 [shape = 's32[2]{0}', space=sflag, size = 0x8, scoped, tag = 'scoped memory for tpu_custom_call.1']
    #allocation7 [shape = 'u8[3145728]{0}', space=vmem, size = 0x300000, scoped, tag = 'input window, operand 5']
    #allocation8 [shape = 'u8[6144]{0}', space=vmem, size = 0x1800, scoped, tag = 'input window, operand 6']
    #allocation9 [shape = 's32[2]{0}', space=sflag, size = 0x8, scoped, tag = 'scoped memory for tpu_custom_call.1']
    #allocation10 [shape = 'u8[6144]{0}', space=vmem, size = 0x1800, scoped, tag = 'output window, operand 0']
    %12 = vsyncpa [#allocation3], 0
    %s13 = scalar_lea.sflag [#allocation3], 1
    %14 = vsyncpa %s13, 0
    %15 = vsyncpa [#allocation6], 0
    %s16 = scalar_lea.sflag [#allocation6], 1
    %17 = vsyncpa %s16, 0
    %18 = vsyncpa [#allocation9], 0
    %s19 = scalar_lea.sflag [#allocation9], 1
    %20 = vsyncpa %s19, 0
    %21 = vsyncpa [#allocation4], 0
    %s22 = scalar_lea.sflag [#allocation4], 1
    %23 = vsyncpa %s22, 0
    loop: start=0, step=1, limit=6
    $region2: #{tpu_custom_call.1} parent=1 // loop_pre_header
      _
    $region3: #{tpu_custom_call.1} parent=1 // loop_header
      %s25 = sphi 0, %s29
      %p26 = scmp.ge.s32.totalorder %s25, 6
      %s32 = sphi 0, %s44
      %s33 = sphi 0, %s40
      %s34 = sphi 0, %s32
      %s35 = sphi 0, %s33
      %s36 = sphi 0, %s34
      %s37 = sphi 0, %s35
      %s49 = sphi 0, %s51
      %s52 = sphi 0, %s49
      %s53 = sphi 0, %s52
      %s69 = sphi 0, %s53
      %s75 = sphi 0, %s77
      %s78 = sphi 0, %s75
      %s79 = sphi 0, %s78
      %s95 = sphi 0, %s79
      %s101 = sphi 0, %s103
      %s104 = sphi 0, %s101
      %s105 = sphi 0, %s104
      %s121 = sphi 0, %s105
      %s127 = sphi 0, %s129
      %s130 = sphi 0, %s127
      %s131 = sphi 0, %s130
      %s147 = sphi 0, %s131
      %s153 = sphi 0, %s155
      %s156 = sphi 0, %s153
      %s157 = sphi 0, %s156
      %s173 = sphi 0, %s157
      %s179 = sphi 0, %s181
      %s182 = sphi 0, %s179
      %s183 = sphi 0, %s182
      %s199 = sphi 0, %s183
      %s205 = sphi 0, %s207
      %s208 = sphi 0, %s205
      %s209 = sphi 0, %s208
      %s225 = sphi 0, %s209
      %s233 = sphi 0, %s235
      %s236 = sphi 0, %s233
      %s237 = sphi 0, %s236
      %s253 = sphi 0, %s237
    $region4: #{tpu_custom_call.1} parent=1 // loop_header_branch
      %28 = sbr.rel (%p26) target = $region8
    $region5: #{tpu_custom_call.1} parent=1 // loop_body
      %s30 = ssub.s32 %s25, 1
      %s31 = ssub.s32 %s25, 2
      %s38 = sadd.s32 1, %s33
      %p39 = scmp.ge.s32.totalorder %s38, 2
      %s40 = scalar_select %p39, 0, %s38
      %s41 = sadd.s32 1, %s32
      %s42 = scalar_select %p39, %s41, %s32
      %p43 = scmp.ge.s32.totalorder %s42, 2
      %s44 = scalar_select %p43, 0, %s42
      %s45 = ssub.s32 %s33, %s40
      %s46 = ssub.s32 %s32, %s44
      %s47 = sor.u32 %s45, %s46
      %p48 = scmp.eq.s32.totalorder %s47, 0
      %s50 = sadd.s32 %s49, 1
      %s51 = scalar_select %p48, %s49, %s50
      %p54 = pneg %p48
      %p55 = scmp.eq.s32.totalorder %s25, 3
      %p56 = por %p54, %p55
      %p57 = scmp.ne.s32.totalorder %s49, %s52
      %p58 = scmp.eq.s32.totalorder %s25, 0
      %p59 = por %p57, %p58
      %p60 = scmp.ne.s32.totalorder %s49, %s52
      %p61 = scmp.eq.s32.totalorder %s30, 3
      %p62 = por %p60, %p61
      %p63 = scmp.ne.s32.totalorder %s52, %s53
      %p64 = scmp.eq.s32.totalorder %s30, 0
      %p65 = por %p63, %p64
      %p66 = scmp.ne.s32.totalorder %s52, %s53
      %p67 = scmp.eq.s32.totalorder %s31, 3
      %p68 = por %p66, %p67
      %p70 = scmp.ne.s32.totalorder %s53, %s69
      %p71 = scmp.eq.s32.totalorder %s31, 0
      %p72 = por %p70, %p71
      %s73 = ssub.s32 %s32, %s44
      %p74 = scmp.eq.s32.totalorder %s73, 0
      %s76 = sadd.s32 %s75, 1
      %s77 = scalar_select %p74, %s75, %s76
      %p80 = pneg %p74
      %p81 = scmp.eq.s32.totalorder %s25, 3
      %p82 = por %p80, %p81
      %p83 = scmp.ne.s32.totalorder %s75, %s78
      %p84 = scmp.eq.s32.totalorder %s25, 0
      %p85 = por %p83, %p84
      %p86 = scmp.ne.s32.totalorder %s75, %s78
      %p87 = scmp.eq.s32.totalorder %s30, 3
      %p88 = por %p86, %p87
      %p89 = scmp.ne.s32.totalorder %s78, %s79
      %p90 = scmp.eq.s32.totalorder %s30, 0
      %p91 = por %p89, %p90
      %p92 = scmp.ne.s32.totalorder %s78, %s79
      %p93 = scmp.eq.s32.totalorder %s31, 3
      %p94 = por %p92, %p93
      %p96 = scmp.ne.s32.totalorder %s79, %s95
      %p97 = scmp.eq.s32.totalorder %s31, 0
      %p98 = por %p96, %p97
      %s99 = ssub.s32 %s32, %s44
      %p100 = scmp.eq.s32.totalorder %s99, 0
      %s102 = sadd.s32 %s101, 1
      %s103 = scalar_select %p100, %s101, %s102
      %p106 = pneg %p100
      %p107 = scmp.eq.s32.totalorder %s25, 3
      %p108 = por %p106, %p107
      %p109 = scmp.ne.s32.totalorder %s101, %s104
      %p110 = scmp.eq.s32.totalorder %s25, 0
      %p111 = por %p109, %p110
      %p112 = scmp.ne.s32.totalorder %s101, %s104
      %p113 = scmp.eq.s32.totalorder %s30, 3
      %p114 = por %p112, %p113
      %p115 = scmp.ne.s32.totalorder %s104, %s105
      %p116 = scmp.eq.s32.totalorder %s30, 0
      %p117 = por %p115, %p116
      %p118 = scmp.ne.s32.totalorder %s104, %s105
      %p119 = scmp.eq.s32.totalorder %s31, 3
      %p120 = por %p118, %p119
      %p122 = scmp.ne.s32.totalorder %s105, %s121
      %p123 = scmp.eq.s32.totalorder %s31, 0
      %p124 = por %p122, %p123
      %s125 = ssub.s32 %s32, %s44
      %p126 = scmp.eq.s32.totalorder %s125, 0
      %s128 = sadd.s32 %s127, 1
      %s129 = scalar_select %p126, %s127, %s128
      %p132 = pneg %p126
      %p133 = scmp.eq.s32.totalorder %s25, 3
      %p134 = por %p132, %p133
      %p135 = scmp.ne.s32.totalorder %s127, %s130
      %p136 = scmp.eq.s32.totalorder %s25, 0
      %p137 = por %p135, %p136
      %p138 = scmp.ne.s32.totalorder %s127, %s130
      %p139 = scmp.eq.s32.totalorder %s30, 3
      %p140 = por %p138, %p139
      %p141 = scmp.ne.s32.totalorder %s130, %s131
      %p142 = scmp.eq.s32.totalorder %s30, 0
      %p143 = por %p141, %p142
      %p144 = scmp.ne.s32.totalorder %s130, %s131
      %p145 = scmp.eq.s32.totalorder %s31, 3
      %p146 = por %p144, %p145
      %p148 = scmp.ne.s32.totalorder %s131, %s147
      %p149 = scmp.eq.s32.totalorder %s31, 0
      %p150 = por %p148, %p149
      %s151 = ssub.s32 %s32, %s44
      %p152 = scmp.eq.s32.totalorder %s151, 0
      %s154 = sadd.s32 %s153, 1
      %s155 = scalar_select %p152, %s153, %s154
      %p158 = pneg %p152
      %p159 = scmp.eq.s32.totalorder %s25, 3
      %p160 = por %p158, %p159
      %p161 = scmp.ne.s32.totalorder %s153, %s156
      %p162 = scmp.eq.s32.totalorder %s25, 0
      %p163 = por %p161, %p162
      %p164 = scmp.ne.s32.totalorder %s153, %s156
      %p165 = scmp.eq.s32.totalorder %s30, 3
      %p166 = por %p164, %p165
      %p167 = scmp.ne.s32.totalorder %s156, %s157
      %p168 = scmp.eq.s32.totalorder %s30, 0
      %p169 = por %p167, %p168
      %p170 = scmp.ne.s32.totalorder %s156, %s157
      %p171 = scmp.eq.s32.totalorder %s31, 3
      %p172 = por %p170, %p171
      %p174 = scmp.ne.s32.totalorder %s157, %s173
      %p175 = scmp.eq.s32.totalorder %s31, 0
      %p176 = por %p174, %p175
      %s177 = ssub.s32 %s32, %s44
      %p178 = scmp.eq.s32.totalorder %s177, 0
      %s180 = sadd.s32 %s179, 1
      %s181 = scalar_select %p178, %s179, %s180
      %p184 = pneg %p178
      %p185 = scmp.eq.s32.totalorder %s25, 3
      %p186 = por %p184, %p185
      %p187 = scmp.ne.s32.totalorder %s179, %s182
      %p188 = scmp.eq.s32.totalorder %s25, 0
      %p189 = por %p187, %p188
      %p190 = scmp.ne.s32.totalorder %s179, %s182
      %p191 = scmp.eq.s32.totalorder %s30, 3
      %p192 = por %p190, %p191
      %p193 = scmp.ne.s32.totalorder %s182, %s183
      %p194 = scmp.eq.s32.totalorder %s30, 0
      %p195 = por %p193, %p194
      %p196 = scmp.ne.s32.totalorder %s182, %s183
      %p197 = scmp.eq.s32.totalorder %s31, 3
      %p198 = por %p196, %p197
      %p200 = scmp.ne.s32.totalorder %s183, %s199
      %p201 = scmp.eq.s32.totalorder %s31, 0
      %p202 = por %p200, %p201
      %s203 = ssub.s32 %s32, %s44
      %p204 = scmp.eq.s32.totalorder %s203, 0
      %s206 = sadd.s32 %s205, 1
      %s207 = scalar_select %p204, %s205, %s206
      %p210 = pneg %p204
      %p211 = scmp.eq.s32.totalorder %s25, 3
      %p212 = por %p210, %p211
      %p213 = scmp.ne.s32.totalorder %s205, %s208
      %p214 = scmp.eq.s32.totalorder %s25, 0
      %p215 = por %p213, %p214
      %p216 = scmp.ne.s32.totalorder %s205, %s208
      %p217 = scmp.eq.s32.totalorder %s30, 3
      %p218 = por %p216, %p217
      %p219 = scmp.ne.s32.totalorder %s208, %s209
      %p220 = scmp.eq.s32.totalorder %s30, 0
      %p221 = por %p219, %p220
      %p222 = scmp.ne.s32.totalorder %s208, %s209
      %p223 = scmp.eq.s32.totalorder %s31, 3
      %p224 = por %p222, %p223
      %p226 = scmp.ne.s32.totalorder %s209, %s225
      %p227 = scmp.eq.s32.totalorder %s31, 0
      %p228 = por %p226, %p227
      %s229 = ssub.s32 %s33, %s40
      %s230 = ssub.s32 %s32, %s44
      %s231 = sor.u32 %s229, %s230
      %p232 = scmp.eq.s32.totalorder %s231, 0
      %s234 = sadd.s32 %s233, 1
      %s235 = scalar_select %p232, %s233, %s234
      %p238 = pneg %p232
      %p239 = scmp.eq.s32.totalorder %s25, 3
      %p240 = por %p238, %p239
      %p241 = scmp.ne.s32.totalorder %s233, %s236
      %p242 = scmp.eq.s32.totalorder %s25, 0
      %p243 = por %p241, %p242
      %p244 = scmp.ne.s32.totalorder %s233, %s236
      %p245 = scmp.eq.s32.totalorder %s30, 3
      %p246 = por %p244, %p245
      %p247 = scmp.ne.s32.totalorder %s236, %s237
      %p248 = scmp.eq.s32.totalorder %s30, 0
      %p249 = por %p247, %p248
      %p250 = scmp.ne.s32.totalorder %s236, %s237
      %p251 = scmp.eq.s32.totalorder %s31, 3
      %p252 = por %p250, %p251
      %p254 = scmp.ne.s32.totalorder %s237, %s253
      %p255 = scmp.eq.s32.totalorder %s31, 0
      %p256 = por %p254, %p255
      %p257 = scmp.le.s32.totalorder 1, %s25
      %p258 = scmp.lt.s32.totalorder %s25, 5
      %p259 = pnand %p257, %p258
      %p260 = pneg %p259
      // Predicated region
      $region9: #{tpu_custom_call.1} parent=5 // pred_check
        _
      $region10: #{tpu_custom_call.1} parent=5 // pred_check_branch
        %262 = sbr.rel (%p259) target = $region12
      $region11: #{tpu_custom_call.1} parent=5 // pred_region
        %s263 = ssub.s32 %s25, 1
      $region12: #{tpu_custom_call.1} parent=5 // pred_fallthru
        _
      %p264 = scmp.lt.s32.totalorder %s25, 4
      // Predicated region
      $region13: #{tpu_custom_call.1} parent=5 // pred_check
        %p265 = pneg %p264
      $region14: #{tpu_custom_call.1} parent=5 // pred_check_branch
        %267 = sbr.rel (%p265) target = $region16
      $region15: #{tpu_custom_call.1} parent=5 // pred_region
        // Predicated region
        $region17: #{tpu_custom_call.1} parent=15 // pred_check
          %p268 = pneg %p59
        $region18: #{tpu_custom_call.1} parent=15 // pred_check_branch
          %270 = sbr.rel (%p268) target = $region20
        $region19: #{tpu_custom_call.1} parent=15 // pred_region
          %s271 = sand.u32 %s49, 1
          %s272 = scalar_lea.sflag [#allocation3], %s271
          %s273 = sand.u32 %s49, 1
          %s274 = smul.addr %s273, 10
          %s275 = scalar_lea.vmem [#allocation2], %s274
          %s277 = ssub.s32 160, 160
          %278 = vsyncadd %s272, %s277
          %s279 = smul.addr %s32, 10
          %s280 = smul.addr %s33, 20
          %s281 = sadd.s32 %s279, %s280
          %s282 = smul.addr %s281, 16
          %s283 = scalar_lea.hbm %s0, %s282
          %s285 = sshll.u32 %s275, 4
          %s286 = int_to_ptr.vmem [resolvable:$true] %s285
          %288 = dma.hbm_to_vmem [thread:$0]  %s283, 160, %s286, %s272
        $region20: #{tpu_custom_call.1} parent=15 // pred_fallthru
          _
        // Predicated region
        $region21: #{tpu_custom_call.1} parent=15 // pred_check
          %p289 = pneg %p85
        $region22: #{tpu_custom_call.1} parent=15 // pred_check_branch
          %291 = sbr.rel (%p289) target = $region24
        $region23: #{tpu_custom_call.1} parent=15 // pred_region
          %p292 = scmp.lt.s32.totalorder %s32, 1
          %s293 = scalar_select %p292, %s32, 1
          %s294 = smul.addr %s293, 2
          %s295 = smul.addr %s294, 8
          %s296 = scalar_lea.vmem %s1, %s295
        $region24: #{tpu_custom_call.1} parent=15 // pred_fallthru
          _
        // Predicated region
        $region25: #{tpu_custom_call.1} parent=15 // pred_check
          %p297 = pneg %p111
        $region26: #{tpu_custom_call.1} parent=15 // pred_check_branch
          %299 = sbr.rel (%p297) target = $region28
        $region27: #{tpu_custom_call.1} parent=15 // pred_region
          %p300 = scmp.lt.s32.totalorder %s32, 1
          %s301 = scalar_select %p300, %s32, 1
          %s302 = smul.addr %s301, 2
          %s303 = smul.addr %s302, 8
          %s304 = scalar_lea.vmem %s2, %s303
        $region28: #{tpu_custom_call.1} parent=15 // pred_fallthru
          _
        // Predicated region
        $region29: #{tpu_custom_call.1} parent=15 // pred_check
          %p305 = pneg %p137
        $region30: #{tpu_custom_call.1} parent=15 // pred_check_branch
          %307 = sbr.rel (%p305) target = $region32
        $region31: #{tpu_custom_call.1} parent=15 // pred_region
          %s308 = sand.u32 %s25, 1
          %s309 = scalar_lea.sflag [#allocation6], %s308
          %s310 = sand.u32 %s127, 1
          %s311 = smul.addr %s310, 32
          %s312 = scalar_lea.vmem [#allocation5], %s311
          %s314 = ssub.s32 512, 512
          %315 = vsyncadd %s309, %s314
          %s316 = smul.addr %s32, 4
          %s317 = smul.addr %s316, 128
          %s318 = scalar_lea.hbm %s3, %s317
          %s319 = sshll.u32 %s312, 4
          %s320 = int_to_ptr.vmem [resolvable:$true] %s319
          %325 = dma.hbm_to_vmem [thread:$0]  %s318, 512, %s320, %s309, 128, 128, 8
        $region32: #{tpu_custom_call.1} parent=15 // pred_fallthru
          _
        // Predicated region
        $region33: #{tpu_custom_call.1} parent=15 // pred_check
          %p326 = pneg %p163
        $region34: #{tpu_custom_call.1} parent=15 // pred_check_branch
          %328 = sbr.rel (%p326) target = $region36
        $region35: #{tpu_custom_call.1} parent=15 // pred_region
          %p329 = scmp.lt.s32.totalorder %s32, 1
          %s330 = scalar_select %p329, %s32, 1
          %s331 = smul.addr %s330, 4
          %s332 = smul.addr %s331, 8
          %s333 = scalar_lea.vmem %s4, %s332
        $region36: #{tpu_custom_call.1} parent=15 // pred_fallthru
          _
        // Predicated region
        $region37: #{tpu_custom_call.1} parent=15 // pred_check
          %p334 = pneg %p189
        $region38: #{tpu_custom_call.1} parent=15 // pred_check_branch
          %336 = sbr.rel (%p334) target = $region40
        $region39: #{tpu_custom_call.1} parent=15 // pred_region
          %s337 = sand.u32 %s25, 1
          %s338 = scalar_lea.sflag [#allocation6], %s337
          %s339 = sand.u32 %s179, 1
          %s340 = smul.addr %s339, 3072
          %s341 = scalar_lea.vmem [#allocation7], %s340
          %s343 = ssub.s32 49152, 49152
          %344 = vsyncadd %s338, %s343
          %s345 = smul.addr %s32, 768
          %s346 = smul.addr %s345, 64
          %s347 = scalar_lea.hbm %s5, %s346
          %s348 = sshll.u32 %s341, 4
          %s349 = int_to_ptr.vmem [resolvable:$true] %s348
          %354 = dma.hbm_to_vmem [thread:$0]  %s347, 49152, %s349, %s338, 384, 384, 24
        $region40: #{tpu_custom_call.1} parent=15 // pred_fallthru
          _
        // Predicated region
        $region41: #{tpu_custom_call.1} parent=15 // pred_check
          %p355 = pneg %p215
        $region42: #{tpu_custom_call.1} parent=15 // pred_check_branch
          %357 = sbr.rel (%p355) target = $region44
        $region43: #{tpu_custom_call.1} parent=15 // pred_region
          %s358 = sand.u32 %s205, 1
          %s359 = scalar_lea.sflag [#allocation9], %s358
          %s360 = sand.u32 %s205, 1
          %s361 = smul.addr %s360, 6
          %s362 = scalar_lea.vmem [#allocation8], %s361
          %s364 = ssub.s32 96, 96
          %365 = vsyncadd %s359, %s364
          %s366 = smul.addr %s32, 6
          %s367 = smul.addr %s366, 16
          %s368 = scalar_lea.hbm %s6, %s367
          %s370 = sshll.u32 %s362, 4
          %s371 = int_to_ptr.vmem [resolvable:$true] %s370
          %373 = dma.hbm_to_vmem [thread:$0]  %s368, 96, %s371, %s359
        $region44: #{tpu_custom_call.1} parent=15 // pred_fallthru
          _
      $region16: #{tpu_custom_call.1} parent=5 // pred_fallthru
        _
      %p374 = scmp.le.s32.totalorder 1, %s25
      %p375 = scmp.lt.s32.totalorder %s25, 5
      %p376 = pnand %p374, %p375
      %p377 = pneg %p376
      // Predicated region
      $region45: #{tpu_custom_call.1} parent=5 // pred_check
        _
      $region46: #{tpu_custom_call.1} parent=5 // pred_check_branch
        %379 = sbr.rel (%p376) target = $region48
      $region47: #{tpu_custom_call.1} parent=5 // pred_region
        %s380 = ssub.s32 %s25, 1
        %s381 = sand.u32 %s52, 1
        %s382 = scalar_lea.sflag [#allocation3], %s381
        %s383 = sand.u32 %s52, 1
        %s384 = smul.addr %s383, 10
        %s385 = scalar_lea.vmem [#allocation2], %s384
        // Predicated region
        $region49: #{tpu_custom_call.1} parent=47 // pred_check
          %p386 = pneg %p65
        $region50: #{tpu_custom_call.1} parent=47 // pred_check_branch
          %388 = sbr.rel (%p386) target = $region52
        $region51: #{tpu_custom_call.1} parent=47 // pred_region
          %389 = dma.done %s382, 160
        $region52: #{tpu_custom_call.1} parent=47 // pred_fallthru
          _
        %s390 = sand.u32 %s30, 1
        %s391 = scalar_lea.sflag [#allocation6], %s390
        %s392 = sand.u32 %s130, 1
        %s393 = smul.addr %s392, 32
        %s394 = scalar_lea.vmem [#allocation5], %s393
        // Predicated region
        $region53: #{tpu_custom_call.1} parent=47 // pred_check
          %p395 = pneg %p143
        $region54: #{tpu_custom_call.1} parent=47 // pred_check_branch
          %397 = sbr.rel (%p395) target = $region56
        $region55: #{tpu_custom_call.1} parent=47 // pred_region
          %398 = dma.done %s391, 512
        $region56: #{tpu_custom_call.1} parent=47 // pred_fallthru
          _
        %s399 = sand.u32 %s30, 1
        %s400 = scalar_lea.sflag [#allocation6], %s399
        %s401 = sand.u32 %s182, 1
        %s402 = smul.addr %s401, 3072
        %s403 = scalar_lea.vmem [#allocation7], %s402
        // Predicated region
        $region57: #{tpu_custom_call.1} parent=47 // pred_check
          %p404 = pneg %p195
        $region58: #{tpu_custom_call.1} parent=47 // pred_check_branch
          %406 = sbr.rel (%p404) target = $region60
        $region59: #{tpu_custom_call.1} parent=47 // pred_region
          %407 = dma.done %s400, 49152
        $region60: #{tpu_custom_call.1} parent=47 // pred_fallthru
          _
        %s408 = sand.u32 %s208, 1
        %s409 = scalar_lea.sflag [#allocation9], %s408
        %s410 = sand.u32 %s208, 1
        %s411 = smul.addr %s410, 6
        %s412 = scalar_lea.vmem [#allocation8], %s411
        // Predicated region
        $region61: #{tpu_custom_call.1} parent=47 // pred_check
          %p413 = pneg %p221
        $region62: #{tpu_custom_call.1} parent=47 // pred_check_branch
          %415 = sbr.rel (%p413) target = $region64
        $region63: #{tpu_custom_call.1} parent=47 // pred_region
          %416 = dma.done %s409, 96
        $region64: #{tpu_custom_call.1} parent=47 // pred_fallthru
          _
        %s417 = sand.u32 %s52, 1
        %s418 = scalar_lea.sflag [#allocation3], %s417
        %s419 = sand.u32 %s52, 1
        %s420 = smul.addr %s419, 10
        %s421 = scalar_lea.vmem [#allocation2], %s420
        %p422 = pneg %p65
        %p423 = pneg %p62
        %p424 = scmp.lt.s32.totalorder %s34, 1
        %s425 = scalar_select %p424, %s34, 1
        %s426 = smul.addr %s425, 2
        %s427 = smul.addr %s426, 8
        %s428 = scalar_lea.vmem %s1, %s427
        %p429 = pneg %p91
        %p430 = pneg %p88
        %p431 = scmp.lt.s32.totalorder %s34, 1
        %s432 = scalar_select %p431, %s34, 1
        %s433 = smul.addr %s432, 2
        %s434 = smul.addr %s433, 8
        %s435 = scalar_lea.vmem %s2, %s434
        %p436 = pneg %p117
        %p437 = pneg %p114
        %s438 = sand.u32 %s30, 1
        %s439 = scalar_lea.sflag [#allocation6], %s438
        %s440 = sand.u32 %s130, 1
        %s441 = smul.addr %s440, 32
        %s442 = scalar_lea.vmem [#allocation5], %s441
        %p443 = pneg %p143
        %p444 = pneg %p140
        %p445 = scmp.lt.s32.totalorder %s34, 1
        %s446 = scalar_select %p445, %s34, 1
        %s447 = smul.addr %s446, 4
        %s448 = smul.addr %s447, 8
        %s449 = scalar_lea.vmem %s4, %s448
        %p450 = pneg %p169
        %p451 = pneg %p166
        %s452 = sand.u32 %s30, 1
        %s453 = scalar_lea.sflag [#allocation6], %s452
        %s454 = sand.u32 %s182, 1
        %s455 = smul.addr %s454, 3072
        %s456 = scalar_lea.vmem [#allocation7], %s455
        %p457 = pneg %p195
        %p458 = pneg %p192
        %s459 = sand.u32 %s208, 1
        %s460 = scalar_lea.sflag [#allocation9], %s459
        %s461 = sand.u32 %s208, 1
        %s462 = smul.addr %s461, 6
        %s463 = scalar_lea.vmem [#allocation8], %s462
        %p464 = pneg %p221
        %p465 = pneg %p218
        %p466 = pneg %p249
        %p467 = pneg %p246
        %s468 = sand.u32 %s236, 1
        %s469 = scalar_lea.sflag [#allocation4], %s468
        %s470 = sand.u32 %s236, 1
        %s471 = smul.addr %s470, 6
        %s472 = scalar_lea.vmem [#allocation10], %s471
        %p473 = scmp.lt.s32.totalorder %s34, 1
        %s474 = scalar_select %p473, %s34, 1
        %s475 = smul.addr %s474, 2
        %s476 = smul.addr %s475, 8
        %s477 = scalar_lea.vmem %s1, %s476
        %p478 = scmp.lt.s32.totalorder %s34, 1
        %s479 = scalar_select %p478, %s34, 1
        %s480 = smul.addr %s479, 2
        %s481 = smul.addr %s480, 8
        %s482 = scalar_lea.vmem %s2, %s481
        %p483 = scmp.lt.s32.totalorder %s34, 1
        %s484 = scalar_select %p483, %s34, 1
        %s485 = smul.addr %s484, 4
        %s486 = smul.addr %s485, 8
        %s487 = scalar_lea.vmem %s4, %s486
        %v488 = vld [vmem:[%s385] sm:$0xff]
        %v489 = vld [vmem:[%s385 + $0x8] sm:$0x3]
        %v490 = vld [vmem:[%s477] sm:$0xff]
        %v491 = vld [vmem:[%s477 + $0x8] sm:$0xff]
        %493 = vset.pattern.permute.xlu0 0
        %494 = vperm.xlu0 %493, %v490
        %v495 = vpop.permute.xlu0 %494
        %498 = vset.pattern.permute.xlu0 0
        %499 = vperm.xlu0 %498, %v491
        %v500 = vpop.permute.xlu0 %499
        %v504 = vlaneseq
        %v505 = vshrl.u32 %v504, 7
        %v506 = vsub.s32 0, %v505
        %v507 = vrot.slane %v488, %v506
        %v508 = vlaneseq
        %v509 = vshrl.u32 %v508, 7
        %v510 = vsub.s32 1, %v509
        %v511 = vrot.slane %v488, %v510
        %v512 = vlaneseq
        %v513 = vshrl.u32 %v512, 7
        %v514 = vsub.s32 2, %v513
        %v515 = vrot.slane %v488, %v514
        %v516 = vlaneseq
        %v517 = vshrl.u32 %v516, 7
        %v518 = vsub.s32 3, %v517
        %v519 = vrot.slane %v488, %v518
        %v520 = vlaneseq
        %v521 = vshrl.u32 %v520, 7
        %v522 = vsub.s32 4, %v521
        %v523 = vrot.slane %v488, %v522
        %v524 = vlaneseq
        %v525 = vshrl.u32 %v524, 7
        %v526 = vsub.s32 5, %v525
        %v527 = vrot.slane %v488, %v526
        %v528 = vlaneseq
        %v529 = vshrl.u32 %v528, 7
        %v530 = vsub.s32 6, %v529
        %v531 = vrot.slane %v488, %v530
        %v532 = vlaneseq
        %v533 = vshrl.u32 %v532, 7
        %v534 = vsub.s32 7, %v533
        %v535 = vrot.slane %v488, %v534
        %v536 = vlaneseq
        %v537 = vshrl.u32 %v536, 7
        %v538 = vsub.s32 0, %v537
        %v539 = vrot.slane %v489, %v538
        %v549 = vmul.f32 %v495, %v507
        %v550 = vmul.f32 %v495, %v511
        %v551 = vmul.f32 %v495, %v515
        %v552 = vmul.f32 %v495, %v519
        %v553 = vmul.f32 %v495, %v523
        %v554 = vmul.f32 %v495, %v527
        %v555 = vmul.f32 %v495, %v531
        %v556 = vmul.f32 %v495, %v535
        %v557 = vmul.f32 %v495, %v539
        %v558 = vmul.f32 %v500, %v507
        %v559 = vmul.f32 %v500, %v511
        %v560 = vmul.f32 %v500, %v515
        %v561 = vmul.f32 %v500, %v519
        %v562 = vmul.f32 %v500, %v523
        %v563 = vmul.f32 %v500, %v527
        %v564 = vmul.f32 %v500, %v531
        %v565 = vmul.f32 %v500, %v535
        %v566 = vmul.f32 %v500, %v539
        %v567 = vadd.f32 %v549, 0.0
        %v568 = vadd.f32 %v550, 0.0
        %v569 = vadd.f32 %v551, 0.0
        %v570 = vadd.f32 %v552, 0.0
        %v571 = vadd.f32 %v553, 0.0
        %v572 = vadd.f32 %v554, 0.0
        %v573 = vadd.f32 %v555, 0.0
        %v574 = vadd.f32 %v556, 0.0
        %v575 = vadd.f32 %v557, 0.0
        %v576 = vadd.f32 %v558, 0.0
        %v577 = vadd.f32 %v559, 0.0
        %v578 = vadd.f32 %v560, 0.0
        %v579 = vadd.f32 %v561, 0.0
        %v580 = vadd.f32 %v562, 0.0
        %v581 = vadd.f32 %v563, 0.0
        %v582 = vadd.f32 %v564, 0.0
        %v583 = vadd.f32 %v565, 0.0
        %v584 = vadd.f32 %v566, 0.0
        %585 = vset.pattern.permute.xlu0 1
        %586 = vperm.xlu0 %585, %v490
        %v587 = vpop.permute.xlu0 %586
        %589 = vset.pattern.permute.xlu0 1
        %590 = vperm.xlu0 %589, %v491
        %v591 = vpop.permute.xlu0 %590
        %v593 = vlaneseq
        %v594 = vshrl.u32 %v593, 7
        %v595 = vsub.s32 1, %v594
        %v596 = vrot.slane %v489, %v595
        %v598 = vmul.f32 %v587, %v507
        %v599 = vmul.f32 %v587, %v511
        %v600 = vmul.f32 %v587, %v515
        %v601 = vmul.f32 %v587, %v519
        %v602 = vmul.f32 %v587, %v523
        %v603 = vmul.f32 %v587, %v527
        %v604 = vmul.f32 %v587, %v531
        %v605 = vmul.f32 %v587, %v535
        %v606 = vmul.f32 %v587, %v539
        %v607 = vmul.f32 %v587, %v596
        %v608 = vmul.f32 %v591, %v507
        %v609 = vmul.f32 %v591, %v511
        %v610 = vmul.f32 %v591, %v515
        %v611 = vmul.f32 %v591, %v519
        %v612 = vmul.f32 %v591, %v523
        %v613 = vmul.f32 %v591, %v527
        %v614 = vmul.f32 %v591, %v531
        %v615 = vmul.f32 %v591, %v535
        %v616 = vmul.f32 %v591, %v539
        %v617 = vmul.f32 %v591, %v596
        %638 = vrot.lane.b32.xlu0 %v598, 127
        %v639 = vpop.permute.xlu0 %638
        %640 = vrot.lane.b32.xlu0 %v599, 127
        %v641 = vpop.permute.xlu0 %640
        %642 = vrot.lane.b32.xlu0 %v600, 127
        %v643 = vpop.permute.xlu0 %642
        %644 = vrot.lane.b32.xlu0 %v601, 127
        %v645 = vpop.permute.xlu0 %644
        %646 = vrot.lane.b32.xlu0 %v602, 127
        %v647 = vpop.permute.xlu0 %646
        %648 = vrot.lane.b32.xlu0 %v603, 127
        %v649 = vpop.permute.xlu0 %648
        %650 = vrot.lane.b32.xlu0 %v604, 127
        %v651 = vpop.permute.xlu0 %650
        %652 = vrot.lane.b32.xlu0 %v605, 127
        %v653 = vpop.permute.xlu0 %652
        %654 = vrot.lane.b32.xlu0 %v606, 127
        %v655 = vpop.permute.xlu0 %654
        %656 = vrot.lane.b32.xlu0 %v607, 127
        %v657 = vpop.permute.xlu0 %656
        %658 = vrot.lane.b32.xlu0 %v608, 127
        %v659 = vpop.permute.xlu0 %658
        %660 = vrot.lane.b32.xlu0 %v609, 127
        %v661 = vpop.permute.xlu0 %660
        %662 = vrot.lane.b32.xlu0 %v610, 127
        %v663 = vpop.permute.xlu0 %662
        %664 = vrot.lane.b32.xlu0 %v611, 127
        %v665 = vpop.permute.xlu0 %664
        %666 = vrot.lane.b32.xlu0 %v612, 127
        %v667 = vpop.permute.xlu0 %666
        %668 = vrot.lane.b32.xlu0 %v613, 127
        %v669 = vpop.permute.xlu0 %668
        %670 = vrot.lane.b32.xlu0 %v614, 127
        %v671 = vpop.permute.xlu0 %670
        %672 = vrot.lane.b32.xlu0 %v615, 127
        %v673 = vpop.permute.xlu0 %672
        %674 = vrot.lane.b32.xlu0 %v616, 127
        %v675 = vpop.permute.xlu0 %674
        %676 = vrot.lane.b32.xlu0 %v617, 127
        %v677 = vpop.permute.xlu0 %676
        %vm678 = vcmask 1039360
        %v679 = vsel %vm678, %v639, %v641
        %v680 = vsel %vm678, %v641, %v643
        %v681 = vsel %vm678, %v643, %v645
        %v682 = vsel %vm678, %v645, %v647
        %v683 = vsel %vm678, %v647, %v649
        %v684 = vsel %vm678, %v649, %v651
        %v685 = vsel %vm678, %v651, %v653
        %v686 = vsel %vm678, %v653, %v655
        %v687 = vsel %vm678, %v655, %v657
        %v688 = vsel %vm678, %v659, %v661
        %v689 = vsel %vm678, %v661, %v663
        %v690 = vsel %vm678, %v663, %v665
        %v691 = vsel %vm678, %v665, %v667
        %v692 = vsel %vm678, %v667, %v669
        %v693 = vsel %vm678, %v669, %v671
        %v694 = vsel %vm678, %v671, %v673
        %v695 = vsel %vm678, %v673, %v675
        %v696 = vsel %vm678, %v675, %v677
        %v715 = vadd.f32 %v567, %v679
        %v716 = vadd.f32 %v568, %v680
        %v717 = vadd.f32 %v569, %v681
        %v718 = vadd.f32 %v570, %v682
        %v719 = vadd.f32 %v571, %v683
        %v720 = vadd.f32 %v572, %v684
        %v721 = vadd.f32 %v573, %v685
        %v722 = vadd.f32 %v574, %v686
        %v723 = vadd.f32 %v575, %v687
        %v724 = vadd.f32 %v576, %v688
        %v725 = vadd.f32 %v577, %v689
        %v726 = vadd.f32 %v578, %v690
        %v727 = vadd.f32 %v579, %v691
        %v728 = vadd.f32 %v580, %v692
        %v729 = vadd.f32 %v581, %v693
        %v730 = vadd.f32 %v582, %v694
        %v731 = vadd.f32 %v583, %v695
        %v732 = vadd.f32 %v584, %v696
        %733 = vset.pattern.permute.xlu0 2
        %734 = vperm.xlu0 %733, %v490
        %v735 = vpop.permute.xlu0 %734
        %737 = vset.pattern.permute.xlu0 2
        %738 = vperm.xlu0 %737, %v491
        %v739 = vpop.permute.xlu0 %738
        %v741 = vmul.f32 %v735, %v507
        %v742 = vmul.f32 %v735, %v511
        %v743 = vmul.f32 %v735, %v515
        %v744 = vmul.f32 %v735, %v519
        %v745 = vmul.f32 %v735, %v523
        %v746 = vmul.f32 %v735, %v527
        %v747 = vmul.f32 %v735, %v531
        %v748 = vmul.f32 %v735, %v535
        %v749 = vmul.f32 %v735, %v539
        %v750 = vmul.f32 %v735, %v596
        %v751 = vmul.f32 %v739, %v507
        %v752 = vmul.f32 %v739, %v511
        %v753 = vmul.f32 %v739, %v515
        %v754 = vmul.f32 %v739, %v519
        %v755 = vmul.f32 %v739, %v523
        %v756 = vmul.f32 %v739, %v527
        %v757 = vmul.f32 %v739, %v531
        %v758 = vmul.f32 %v739, %v535
        %v759 = vmul.f32 %v739, %v539
        %v760 = vmul.f32 %v739, %v596
        %781 = vrot.lane.b32.xlu0 %v741, 126
        %v782 = vpop.permute.xlu0 %781
        %783 = vrot.lane.b32.xlu0 %v742, 126
        %v784 = vpop.permute.xlu0 %783
        %785 = vrot.lane.b32.xlu0 %v743, 126
        %v786 = vpop.permute.xlu0 %785
        %787 = vrot.lane.b32.xlu0 %v744, 126
        %v788 = vpop.permute.xlu0 %787
        %789 = vrot.lane.b32.xlu0 %v745, 126
        %v790 = vpop.permute.xlu0 %789
        %791 = vrot.lane.b32.xlu0 %v746, 126
        %v792 = vpop.permute.xlu0 %791
        %793 = vrot.lane.b32.xlu0 %v747, 126
        %v794 = vpop.permute.xlu0 %793
        %795 = vrot.lane.b32.xlu0 %v748, 126
        %v796 = vpop.permute.xlu0 %795
        %797 = vrot.lane.b32.xlu0 %v749, 126
        %v798 = vpop.permute.xlu0 %797
        %799 = vrot.lane.b32.xlu0 %v750, 126
        %v800 = vpop.permute.xlu0 %799
        %801 = vrot.lane.b32.xlu0 %v751, 126
        %v802 = vpop.permute.xlu0 %801
        %803 = vrot.lane.b32.xlu0 %v752, 126
        %v804 = vpop.permute.xlu0 %803
        %805 = vrot.lane.b32.xlu0 %v753, 126
        %v806 = vpop.permute.xlu0 %805
        %807 = vrot.lane.b32.xlu0 %v754, 126
        %v808 = vpop.permute.xlu0 %807
        %809 = vrot.lane.b32.xlu0 %v755, 126
        %v810 = vpop.permute.xlu0 %809
        %811 = vrot.lane.b32.xlu0 %v756, 126
        %v812 = vpop.permute.xlu0 %811
        %813 = vrot.lane.b32.xlu0 %v757, 126
        %v814 = vpop.permute.xlu0 %813
        %815 = vrot.lane.b32.xlu0 %v758, 126
        %v816 = vpop.permute.xlu0 %815
        %817 = vrot.lane.b32.xlu0 %v759, 126
        %v818 = vpop.permute.xlu0 %817
        %819 = vrot.lane.b32.xlu0 %v760, 126
        %v820 = vpop.permute.xlu0 %819
        %vm821 = vcmask 1031168
        %v822 = vsel %vm821, %v782, %v784
        %v823 = vsel %vm821, %v784, %v786
        %v824 = vsel %vm821, %v786, %v788
        %v825 = vsel %vm821, %v788, %v790
        %v826 = vsel %vm821, %v790, %v792
        %v827 = vsel %vm821, %v792, %v794
        %v828 = vsel %vm821, %v794, %v796
        %v829 = vsel %vm821, %v796, %v798
        %v830 = vsel %vm821, %v798, %v800
        %v831 = vsel %vm821, %v802, %v804
        %v832 = vsel %vm821, %v804, %v806
        %v833 = vsel %vm821, %v806, %v808
        %v834 = vsel %vm821, %v808, %v810
        %v835 = vsel %vm821, %v810, %v812
        %v836 = vsel %vm821, %v812, %v814
        %v837 = vsel %vm821, %v814, %v816
        %v838 = vsel %vm821, %v816, %v818
        %v839 = vsel %vm821, %v818, %v820
        %v858 = vadd.f32 %v715, %v822
        %v859 = vadd.f32 %v716, %v823
        %v860 = vadd.f32 %v717, %v824
        %v861 = vadd.f32 %v718, %v825
        %v862 = vadd.f32 %v719, %v826
        %v863 = vadd.f32 %v720, %v827
        %v864 = vadd.f32 %v721, %v828
        %v865 = vadd.f32 %v722, %v829
        %v866 = vadd.f32 %v723, %v830
        %v867 = vadd.f32 %v724, %v831
        %v868 = vadd.f32 %v725, %v832
        %v869 = vadd.f32 %v726, %v833
        %v870 = vadd.f32 %v727, %v834
        %v871 = vadd.f32 %v728, %v835
        %v872 = vadd.f32 %v729, %v836
        %v873 = vadd.f32 %v730, %v837
        %v874 = vadd.f32 %v731, %v838
        %v875 = vadd.f32 %v732, %v839
        %876 = vset.pattern.permute.xlu0 3
        %877 = vperm.xlu0 %876, %v490
        %v878 = vpop.permute.xlu0 %877
        %880 = vset.pattern.permute.xlu0 3
        %881 = vperm.xlu0 %880, %v491
        %v882 = vpop.permute.xlu0 %881
        %v884 = vmul.f32 %v878, %v507
        %v885 = vmul.f32 %v878, %v511
        %v886 = vmul.f32 %v878, %v515
        %v887 = vmul.f32 %v878, %v519
        %v888 = vmul.f32 %v878, %v523
        %v889 = vmul.f32 %v878, %v527
        %v890 = vmul.f32 %v878, %v531
        %v891 = vmul.f32 %v878, %v535
        %v892 = vmul.f32 %v878, %v539
        %v893 = vmul.f32 %v878, %v596
        %v894 = vmul.f32 %v882, %v507
        %v895 = vmul.f32 %v882, %v511
        %v896 = vmul.f32 %v882, %v515
        %v897 = vmul.f32 %v882, %v519
        %v898 = vmul.f32 %v882, %v523
        %v899 = vmul.f32 %v882, %v527
        %v900 = vmul.f32 %v882, %v531
        %v901 = vmul.f32 %v882, %v535
        %v902 = vmul.f32 %v882, %v539
        %v903 = vmul.f32 %v882, %v596
        %924 = vrot.lane.b32.xlu0 %v884, 125
        %v925 = vpop.permute.xlu0 %924
        %926 = vrot.lane.b32.xlu0 %v885, 125
        %v927 = vpop.permute.xlu0 %926
        %928 = vrot.lane.b32.xlu0 %v886, 125
        %v929 = vpop.permute.xlu0 %928
        %930 = vrot.lane.b32.xlu0 %v887, 125
        %v931 = vpop.permute.xlu0 %930
        %932 = vrot.lane.b32.xlu0 %v888, 125
        %v933 = vpop.permute.xlu0 %932
        %934 = vrot.lane.b32.xlu0 %v889, 125
        %v935 = vpop.permute.xlu0 %934
        %936 = vrot.lane.b32.xlu0 %v890, 125
        %v937 = vpop.permute.xlu0 %936
        %938 = vrot.lane.b32.xlu0 %v891, 125
        %v939 = vpop.permute.xlu0 %938
        %940 = vrot.lane.b32.xlu0 %v892, 125
        %v941 = vpop.permute.xlu0 %940
        %942 = vrot.lane.b32.xlu0 %v893, 125
        %v943 = vpop.permute.xlu0 %942
        %944 = vrot.lane.b32.xlu0 %v894, 125
        %v945 = vpop.permute.xlu0 %944
        %946 = vrot.lane.b32.xlu0 %v895, 125
        %v947 = vpop.permute.xlu0 %946
        %948 = vrot.lane.b32.xlu0 %v896, 125
        %v949 = vpop.permute.xlu0 %948
        %950 = vrot.lane.b32.xlu0 %v897, 125
        %v951 = vpop.permute.xlu0 %950
        %952 = vrot.lane.b32.xlu0 %v898, 125
        %v953 = vpop.permute.xlu0 %952
        %954 = vrot.lane.b32.xlu0 %v899, 125
        %v955 = vpop.permute.xlu0 %954
        %956 = vrot.lane.b32.xlu0 %v900, 125
        %v957 = vpop.permute.xlu0 %956
        %958 = vrot.lane.b32.xlu0 %v901, 125
        %v959 = vpop.permute.xlu0 %958
        %960 = vrot.lane.b32.xlu0 %v902, 125
        %v961 = vpop.permute.xlu0 %960
        %962 = vrot.lane.b32.xlu0 %v903, 125
        %v963 = vpop.permute.xlu0 %962
        %vm964 = vcmask 1022976
        %v965 = vsel %vm964, %v925, %v927
        %v966 = vsel %vm964, %v927, %v929
        %v967 = vsel %vm964, %v929, %v931
        %v968 = vsel %vm964, %v931, %v933
        %v969 = vsel %vm964, %v933, %v935
        %v970 = vsel %vm964, %v935, %v937
        %v971 = vsel %vm964, %v937, %v939
        %v972 = vsel %vm964, %v939, %v941
        %v973 = vsel %vm964, %v941, %v943
        %v974 = vsel %vm964, %v945, %v947
        %v975 = vsel %vm964, %v947, %v949
        %v976 = vsel %vm964, %v949, %v951
        %v977 = vsel %vm964, %v951, %v953
        %v978 = vsel %vm964, %v953, %v955
        %v979 = vsel %vm964, %v955, %v957
        %v980 = vsel %vm964, %v957, %v959
        %v981 = vsel %vm964, %v959, %v961
        %v982 = vsel %vm964, %v961, %v963
        %v1001 = vadd.f32 %v858, %v965
        %v1002 = vadd.f32 %v859, %v966
        %v1003 = vadd.f32 %v860, %v967
        %v1004 = vadd.f32 %v861, %v968
        %v1005 = vadd.f32 %v862, %v969
        %v1006 = vadd.f32 %v863, %v970
        %v1007 = vadd.f32 %v864, %v971
        %v1008 = vadd.f32 %v865, %v972
        %v1009 = vadd.f32 %v866, %v973
        %v1010 = vadd.f32 %v867, %v974
        %v1011 = vadd.f32 %v868, %v975
        %v1012 = vadd.f32 %v869, %v976
        %v1013 = vadd.f32 %v870, %v977
        %v1014 = vadd.f32 %v871, %v978
        %v1015 = vadd.f32 %v872, %v979
        %v1016 = vadd.f32 %v873, %v980
        %v1017 = vadd.f32 %v874, %v981
        %v1018 = vadd.f32 %v875, %v982
        %1019 = vset.pattern.permute.xlu0 4
        %1020 = vperm.xlu0 %1019, %v490
        %v1021 = vpop.permute.xlu0 %1020
        %1023 = vset.pattern.permute.xlu0 4
        %1024 = vperm.xlu0 %1023, %v491
        %v1025 = vpop.permute.xlu0 %1024
        %v1027 = vmul.f32 %v1021, %v507
        %v1028 = vmul.f32 %v1021, %v511
        %v1029 = vmul.f32 %v1021, %v515
        %v1030 = vmul.f32 %v1021, %v519
        %v1031 = vmul.f32 %v1021, %v523
        %v1032 = vmul.f32 %v1021, %v527
        %v1033 = vmul.f32 %v1021, %v531
        %v1034 = vmul.f32 %v1021, %v535
        %v1035 = vmul.f32 %v1021, %v539
        %v1036 = vmul.f32 %v1021, %v596
        %v1037 = vmul.f32 %v1025, %v507
        %v1038 = vmul.f32 %v1025, %v511
        %v1039 = vmul.f32 %v1025, %v515
        %v1040 = vmul.f32 %v1025, %v519
        %v1041 = vmul.f32 %v1025, %v523
        %v1042 = vmul.f32 %v1025, %v527
        %v1043 = vmul.f32 %v1025, %v531
        %v1044 = vmul.f32 %v1025, %v535
        %v1045 = vmul.f32 %v1025, %v539
        %v1046 = vmul.f32 %v1025, %v596
        %1067 = vrot.lane.b32.xlu0 %v1027, 124
        %v1068 = vpop.permute.xlu0 %1067
        %1069 = vrot.lane.b32.xlu0 %v1028, 124
        %v1070 = vpop.permute.xlu0 %1069
        %1071 = vrot.lane.b32.xlu0 %v1029, 124
        %v1072 = vpop.permute.xlu0 %1071
        %1073 = vrot.lane.b32.xlu0 %v1030, 124
        %v1074 = vpop.permute.xlu0 %1073
        %1075 = vrot.lane.b32.xlu0 %v1031, 124
        %v1076 = vpop.permute.xlu0 %1075
        %1077 = vrot.lane.b32.xlu0 %v1032, 124
        %v1078 = vpop.permute.xlu0 %1077
        %1079 = vrot.lane.b32.xlu0 %v1033, 124
        %v1080 = vpop.permute.xlu0 %1079
        %1081 = vrot.lane.b32.xlu0 %v1034, 124
        %v1082 = vpop.permute.xlu0 %1081
        %1083 = vrot.lane.b32.xlu0 %v1035, 124
        %v1084 = vpop.permute.xlu0 %1083
        %1085 = vrot.lane.b32.xlu0 %v1036, 124
        %v1086 = vpop.permute.xlu0 %1085
        %1087 = vrot.lane.b32.xlu0 %v1037, 124
        %v1088 = vpop.permute.xlu0 %1087
        %1089 = vrot.lane.b32.xlu0 %v1038, 124
        %v1090 = vpop.permute.xlu0 %1089
        %1091 = vrot.lane.b32.xlu0 %v1039, 124
        %v1092 = vpop.permute.xlu0 %1091
        %1093 = vrot.lane.b32.xlu0 %v1040, 124
        %v1094 = vpop.permute.xlu0 %1093
        %1095 = vrot.lane.b32.xlu0 %v1041, 124
        %v1096 = vpop.permute.xlu0 %1095
        %1097 = vrot.lane.b32.xlu0 %v1042, 124
        %v1098 = vpop.permute.xlu0 %1097
        %1099 = vrot.lane.b32.xlu0 %v1043, 124
        %v1100 = vpop.permute.xlu0 %1099
        %1101 = vrot.lane.b32.xlu0 %v1044, 124
        %v1102 = vpop.permute.xlu0 %1101
        %1103 = vrot.lane.b32.xlu0 %v1045, 124
        %v1104 = vpop.permute.xlu0 %1103
        %1105 = vrot.lane.b32.xlu0 %v1046, 124
        %v1106 = vpop.permute.xlu0 %1105
        %vm1107 = vcmask 1014784
        %v1108 = vsel %vm1107, %v1068, %v1070
        %v1109 = vsel %vm1107, %v1070, %v1072
        %v1110 = vsel %vm1107, %v1072, %v1074
        %v1111 = vsel %vm1107, %v1074, %v1076
        %v1112 = vsel %vm1107, %v1076, %v1078
        %v1113 = vsel %vm1107, %v1078, %v1080
        %v1114 = vsel %vm1107, %v1080, %v1082
        %v1115 = vsel %vm1107, %v1082, %v1084
        %v1116 = vsel %vm1107, %v1084, %v1086
        %v1117 = vsel %vm1107, %v1088, %v1090
        %v1118 = vsel %vm1107, %v1090, %v1092
        %v1119 = vsel %vm1107, %v1092, %v1094
        %v1120 = vsel %vm1107, %v1094, %v1096
        %v1121 = vsel %vm1107, %v1096, %v1098
        %v1122 = vsel %vm1107, %v1098, %v1100
        %v1123 = vsel %vm1107, %v1100, %v1102
        %v1124 = vsel %vm1107, %v1102, %v1104
        %v1125 = vsel %vm1107, %v1104, %v1106
        %v1144 = vadd.f32 %v1001, %v1108
        %v1145 = vadd.f32 %v1002, %v1109
        %v1146 = vadd.f32 %v1003, %v1110
        %v1147 = vadd.f32 %v1004, %v1111
        %v1148 = vadd.f32 %v1005, %v1112
        %v1149 = vadd.f32 %v1006, %v1113
        %v1150 = vadd.f32 %v1007, %v1114
        %v1151 = vadd.f32 %v1008, %v1115
        %v1152 = vadd.f32 %v1009, %v1116
        %v1153 = vadd.f32 %v1010, %v1117
        %v1154 = vadd.f32 %v1011, %v1118
        %v1155 = vadd.f32 %v1012, %v1119
        %v1156 = vadd.f32 %v1013, %v1120
        %v1157 = vadd.f32 %v1014, %v1121
        %v1158 = vadd.f32 %v1015, %v1122
        %v1159 = vadd.f32 %v1016, %v1123
        %v1160 = vadd.f32 %v1017, %v1124
        %v1161 = vadd.f32 %v1018, %v1125
        %1162 = vset.pattern.permute.xlu0 5
        %1163 = vperm.xlu0 %1162, %v490
        %v1164 = vpop.permute.xlu0 %1163
        %1166 = vset.pattern.permute.xlu0 5
        %1167 = vperm.xlu0 %1166, %v491
        %v1168 = vpop.permute.xlu0 %1167
        %v1170 = vmul.f32 %v1164, %v507
        %v1171 = vmul.f32 %v1164, %v511
        %v1172 = vmul.f32 %v1164, %v515
        %v1173 = vmul.f32 %v1164, %v519
        %v1174 = vmul.f32 %v1164, %v523
        %v1175 = vmul.f32 %v1164, %v527
        %v1176 = vmul.f32 %v1164, %v531
        %v1177 = vmul.f32 %v1164, %v535
        %v1178 = vmul.f32 %v1164, %v539
        %v1179 = vmul.f32 %v1164, %v596
        %v1180 = vmul.f32 %v1168, %v507
        %v1181 = vmul.f32 %v1168, %v511
        %v1182 = vmul.f32 %v1168, %v515
        %v1183 = vmul.f32 %v1168, %v519
        %v1184 = vmul.f32 %v1168, %v523
        %v1185 = vmul.f32 %v1168, %v527
        %v1186 = vmul.f32 %v1168, %v531
        %v1187 = vmul.f32 %v1168, %v535
        %v1188 = vmul.f32 %v1168, %v539
        %v1189 = vmul.f32 %v1168, %v596
        %1210 = vrot.lane.b32.xlu0 %v1170, 123
        %v1211 = vpop.permute.xlu0 %1210
        %1212 = vrot.lane.b32.xlu0 %v1171, 123
        %v1213 = vpop.permute.xlu0 %1212
        %1214 = vrot.lane.b32.xlu0 %v1172, 123
        %v1215 = vpop.permute.xlu0 %1214
        %1216 = vrot.lane.b32.xlu0 %v1173, 123
        %v1217 = vpop.permute.xlu0 %1216
        %1218 = vrot.lane.b32.xlu0 %v1174, 123
        %v1219 = vpop.permute.xlu0 %1218
        %1220 = vrot.lane.b32.xlu0 %v1175, 123
        %v1221 = vpop.permute.xlu0 %1220
        %1222 = vrot.lane.b32.xlu0 %v1176, 123
        %v1223 = vpop.permute.xlu0 %1222
        %1224 = vrot.lane.b32.xlu0 %v1177, 123
        %v1225 = vpop.permute.xlu0 %1224
        %1226 = vrot.lane.b32.xlu0 %v1178, 123
        %v1227 = vpop.permute.xlu0 %1226
        %1228 = vrot.lane.b32.xlu0 %v1179, 123
        %v1229 = vpop.permute.xlu0 %1228
        %1230 = vrot.lane.b32.xlu0 %v1180, 123
        %v1231 = vpop.permute.xlu0 %1230
        %1232 = vrot.lane.b32.xlu0 %v1181, 123
        %v1233 = vpop.permute.xlu0 %1232
        %1234 = vrot.lane.b32.xlu0 %v1182, 123
        %v1235 = vpop.permute.xlu0 %1234
        %1236 = vrot.lane.b32.xlu0 %v1183, 123
        %v1237 = vpop.permute.xlu0 %1236
        %1238 = vrot.lane.b32.xlu0 %v1184, 123
        %v1239 = vpop.permute.xlu0 %1238
        %1240 = vrot.lane.b32.xlu0 %v1185, 123
        %v1241 = vpop.permute.xlu0 %1240
        %1242 = vrot.lane.b32.xlu0 %v1186, 123
        %v1243 = vpop.permute.xlu0 %1242
        %1244 = vrot.lane.b32.xlu0 %v1187, 123
        %v1245 = vpop.permute.xlu0 %1244
        %1246 = vrot.lane.b32.xlu0 %v1188, 123
        %v1247 = vpop.permute.xlu0 %1246
        %1248 = vrot.lane.b32.xlu0 %v1189, 123
        %v1249 = vpop.permute.xlu0 %1248
        %vm1250 = vcmask 1006592
        %v1251 = vsel %vm1250, %v1211, %v1213
        %v1252 = vsel %vm1250, %v1213, %v1215
        %v1253 = vsel %vm1250, %v1215, %v1217
        %v1254 = vsel %vm1250, %v1217, %v1219
        %v1255 = vsel %vm1250, %v1219, %v1221
        %v1256 = vsel %vm1250, %v1221, %v1223
        %v1257 = vsel %vm1250, %v1223, %v1225
        %v1258 = vsel %vm1250, %v1225, %v1227
        %v1259 = vsel %vm1250, %v1227, %v1229
        %v1260 = vsel %vm1250, %v1231, %v1233
        %v1261 = vsel %vm1250, %v1233, %v1235
        %v1262 = vsel %vm1250, %v1235, %v1237
        %v1263 = vsel %vm1250, %v1237, %v1239
        %v1264 = vsel %vm1250, %v1239, %v1241
        %v1265 = vsel %vm1250, %v1241, %v1243
        %v1266 = vsel %vm1250, %v1243, %v1245
        %v1267 = vsel %vm1250, %v1245, %v1247
        %v1268 = vsel %vm1250, %v1247, %v1249
        %v1287 = vadd.f32 %v1144, %v1251
        %v1288 = vadd.f32 %v1145, %v1252
        %v1289 = vadd.f32 %v1146, %v1253
        %v1290 = vadd.f32 %v1147, %v1254
        %v1291 = vadd.f32 %v1148, %v1255
        %v1292 = vadd.f32 %v1149, %v1256
        %v1293 = vadd.f32 %v1150, %v1257
        %v1294 = vadd.f32 %v1151, %v1258
        %v1295 = vadd.f32 %v1152, %v1259
        %v1296 = vadd.f32 %v1153, %v1260
        %v1297 = vadd.f32 %v1154, %v1261
        %v1298 = vadd.f32 %v1155, %v1262
        %v1299 = vadd.f32 %v1156, %v1263
        %v1300 = vadd.f32 %v1157, %v1264
        %v1301 = vadd.f32 %v1158, %v1265
        %v1302 = vadd.f32 %v1159, %v1266
        %v1303 = vadd.f32 %v1160, %v1267
        %v1304 = vadd.f32 %v1161, %v1268
        %1305 = vset.pattern.permute.xlu0 6
        %1306 = vperm.xlu0 %1305, %v490
        %v1307 = vpop.permute.xlu0 %1306
        %1309 = vset.pattern.permute.xlu0 6
        %1310 = vperm.xlu0 %1309, %v491
        %v1311 = vpop.permute.xlu0 %1310
        %v1313 = vmul.f32 %v1307, %v507
        %v1314 = vmul.f32 %v1307, %v511
        %v1315 = vmul.f32 %v1307, %v515
        %v1316 = vmul.f32 %v1307, %v519
        %v1317 = vmul.f32 %v1307, %v523
        %v1318 = vmul.f32 %v1307, %v527
        %v1319 = vmul.f32 %v1307, %v531
        %v1320 = vmul.f32 %v1307, %v535
        %v1321 = vmul.f32 %v1307, %v539
        %v1322 = vmul.f32 %v1307, %v596
        %v1323 = vmul.f32 %v1311, %v507
        %v1324 = vmul.f32 %v1311, %v511
        %v1325 = vmul.f32 %v1311, %v515
        %v1326 = vmul.f32 %v1311, %v519
        %v1327 = vmul.f32 %v1311, %v523
        %v1328 = vmul.f32 %v1311, %v527
        %v1329 = vmul.f32 %v1311, %v531
        %v1330 = vmul.f32 %v1311, %v535
        %v1331 = vmul.f32 %v1311, %v539
        %v1332 = vmul.f32 %v1311, %v596
        %1353 = vrot.lane.b32.xlu0 %v1313, 122
        %v1354 = vpop.permute.xlu0 %1353
        %1355 = vrot.lane.b32.xlu0 %v1314, 122
        %v1356 = vpop.permute.xlu0 %1355
        %1357 = vrot.lane.b32.xlu0 %v1315, 122
        %v1358 = vpop.permute.xlu0 %1357
        %1359 = vrot.lane.b32.xlu0 %v1316, 122
        %v1360 = vpop.permute.xlu0 %1359
        %1361 = vrot.lane.b32.xlu0 %v1317, 122
        %v1362 = vpop.permute.xlu0 %1361
        %1363 = vrot.lane.b32.xlu0 %v1318, 122
        %v1364 = vpop.permute.xlu0 %1363
        %1365 = vrot.lane.b32.xlu0 %v1319, 122
        %v1366 = vpop.permute.xlu0 %1365
        %1367 = vrot.lane.b32.xlu0 %v1320, 122
        %v1368 = vpop.permute.xlu0 %1367
        %1369 = vrot.lane.b32.xlu0 %v1321, 122
        %v1370 = vpop.permute.xlu0 %1369
        %1371 = vrot.lane.b32.xlu0 %v1322, 122
        %v1372 = vpop.permute.xlu0 %1371
        %1373 = vrot.lane.b32.xlu0 %v1323, 122
        %v1374 = vpop.permute.xlu0 %1373
        %1375 = vrot.lane.b32.xlu0 %v1324, 122
        %v1376 = vpop.permute.xlu0 %1375
        %1377 = vrot.lane.b32.xlu0 %v1325, 122
        %v1378 = vpop.permute.xlu0 %1377
        %1379 = vrot.lane.b32.xlu0 %v1326, 122
        %v1380 = vpop.permute.xlu0 %1379
        %1381 = vrot.lane.b32.xlu0 %v1327, 122
        %v1382 = vpop.permute.xlu0 %1381
        %1383 = vrot.lane.b32.xlu0 %v1328, 122
        %v1384 = vpop.permute.xlu0 %1383
        %1385 = vrot.lane.b32.xlu0 %v1329, 122
        %v1386 = vpop.permute.xlu0 %1385
        %1387 = vrot.lane.b32.xlu0 %v1330, 122
        %v1388 = vpop.permute.xlu0 %1387
        %1389 = vrot.lane.b32.xlu0 %v1331, 122
        %v1390 = vpop.permute.xlu0 %1389
        %1391 = vrot.lane.b32.xlu0 %v1332, 122
        %v1392 = vpop.permute.xlu0 %1391
        %vm1393 = vcmask 998400
        %v1394 = vsel %vm1393, %v1354, %v1356
        %v1395 = vsel %vm1393, %v1356, %v1358
        %v1396 = vsel %vm1393, %v1358, %v1360
        %v1397 = vsel %vm1393, %v1360, %v1362
        %v1398 = vsel %vm1393, %v1362, %v1364
        %v1399 = vsel %vm1393, %v1364, %v1366
        %v1400 = vsel %vm1393, %v1366, %v1368
        %v1401 = vsel %vm1393, %v1368, %v1370
        %v1402 = vsel %vm1393, %v1370, %v1372
        %v1403 = vsel %vm1393, %v1374, %v1376
        %v1404 = vsel %vm1393, %v1376, %v1378
        %v1405 = vsel %vm1393, %v1378, %v1380
        %v1406 = vsel %vm1393, %v1380, %v1382
        %v1407 = vsel %vm1393, %v1382, %v1384
        %v1408 = vsel %vm1393, %v1384, %v1386
        %v1409 = vsel %vm1393, %v1386, %v1388
        %v1410 = vsel %vm1393, %v1388, %v1390
        %v1411 = vsel %vm1393, %v1390, %v1392
        %v1430 = vadd.f32 %v1287, %v1394
        %v1431 = vadd.f32 %v1288, %v1395
        %v1432 = vadd.f32 %v1289, %v1396
        %v1433 = vadd.f32 %v1290, %v1397
        %v1434 = vadd.f32 %v1291, %v1398
        %v1435 = vadd.f32 %v1292, %v1399
        %v1436 = vadd.f32 %v1293, %v1400
        %v1437 = vadd.f32 %v1294, %v1401
        %v1438 = vadd.f32 %v1295, %v1402
        %v1439 = vadd.f32 %v1296, %v1403
        %v1440 = vadd.f32 %v1297, %v1404
        %v1441 = vadd.f32 %v1298, %v1405
        %v1442 = vadd.f32 %v1299, %v1406
        %v1443 = vadd.f32 %v1300, %v1407
        %v1444 = vadd.f32 %v1301, %v1408
        %v1445 = vadd.f32 %v1302, %v1409
        %v1446 = vadd.f32 %v1303, %v1410
        %v1447 = vadd.f32 %v1304, %v1411
        %1448 = vset.pattern.permute.xlu0 7
        %1449 = vperm.xlu0 %1448, %v490
        %v1450 = vpop.permute.xlu0 %1449
        %1452 = vset.pattern.permute.xlu0 7
        %1453 = vperm.xlu0 %1452, %v491
        %v1454 = vpop.permute.xlu0 %1453
        %v1456 = vmul.f32 %v1450, %v507
        %v1457 = vmul.f32 %v1450, %v511
        %v1458 = vmul.f32 %v1450, %v515
        %v1459 = vmul.f32 %v1450, %v519
        %v1460 = vmul.f32 %v1450, %v523
        %v1461 = vmul.f32 %v1450, %v527
        %v1462 = vmul.f32 %v1450, %v531
        %v1463 = vmul.f32 %v1450, %v535
        %v1464 = vmul.f32 %v1450, %v539
        %v1465 = vmul.f32 %v1450, %v596
        %v1466 = vmul.f32 %v1454, %v507
        %v1467 = vmul.f32 %v1454, %v511
        %v1468 = vmul.f32 %v1454, %v515
        %v1469 = vmul.f32 %v1454, %v519
        %v1470 = vmul.f32 %v1454, %v523
        %v1471 = vmul.f32 %v1454, %v527
        %v1472 = vmul.f32 %v1454, %v531
        %v1473 = vmul.f32 %v1454, %v535
        %v1474 = vmul.f32 %v1454, %v539
        %v1475 = vmul.f32 %v1454, %v596
        %1496 = vrot.lane.b32.xlu0 %v1456, 121
        %v1497 = vpop.permute.xlu0 %1496
        %1498 = vrot.lane.b32.xlu0 %v1457, 121
        %v1499 = vpop.permute.xlu0 %1498
        %1500 = vrot.lane.b32.xlu0 %v1458, 121
        %v1501 = vpop.permute.xlu0 %1500
        %1502 = vrot.lane.b32.xlu0 %v1459, 121
        %v1503 = vpop.permute.xlu0 %1502
        %1504 = vrot.lane.b32.xlu0 %v1460, 121
        %v1505 = vpop.permute.xlu0 %1504
        %1506 = vrot.lane.b32.xlu0 %v1461, 121
        %v1507 = vpop.permute.xlu0 %1506
        %1508 = vrot.lane.b32.xlu0 %v1462, 121
        %v1509 = vpop.permute.xlu0 %1508
        %1510 = vrot.lane.b32.xlu0 %v1463, 121
        %v1511 = vpop.permute.xlu0 %1510
        %1512 = vrot.lane.b32.xlu0 %v1464, 121
        %v1513 = vpop.permute.xlu0 %1512
        %1514 = vrot.lane.b32.xlu0 %v1465, 121
        %v1515 = vpop.permute.xlu0 %1514
        %1516 = vrot.lane.b32.xlu0 %v1466, 121
        %v1517 = vpop.permute.xlu0 %1516
        %1518 = vrot.lane.b32.xlu0 %v1467, 121
        %v1519 = vpop.permute.xlu0 %1518
        %1520 = vrot.lane.b32.xlu0 %v1468, 121
        %v1521 = vpop.permute.xlu0 %1520
        %1522 = vrot.lane.b32.xlu0 %v1469, 121
        %v1523 = vpop.permute.xlu0 %1522
        %1524 = vrot.lane.b32.xlu0 %v1470, 121
        %v1525 = vpop.permute.xlu0 %1524
        %1526 = vrot.lane.b32.xlu0 %v1471, 121
        %v1527 = vpop.permute.xlu0 %1526
        %1528 = vrot.lane.b32.xlu0 %v1472, 121
        %v1529 = vpop.permute.xlu0 %1528
        %1530 = vrot.lane.b32.xlu0 %v1473, 121
        %v1531 = vpop.permute.xlu0 %1530
        %1532 = vrot.lane.b32.xlu0 %v1474, 121
        %v1533 = vpop.permute.xlu0 %1532
        %1534 = vrot.lane.b32.xlu0 %v1475, 121
        %v1535 = vpop.permute.xlu0 %1534
        %vm1536 = vcmask 990208
        %v1537 = vsel %vm1536, %v1497, %v1499
        %v1538 = vsel %vm1536, %v1499, %v1501
        %v1539 = vsel %vm1536, %v1501, %v1503
        %v1540 = vsel %vm1536, %v1503, %v1505
        %v1541 = vsel %vm1536, %v1505, %v1507
        %v1542 = vsel %vm1536, %v1507, %v1509
        %v1543 = vsel %vm1536, %v1509, %v1511
        %v1544 = vsel %vm1536, %v1511, %v1513
        %v1545 = vsel %vm1536, %v1513, %v1515
        %v1546 = vsel %vm1536, %v1517, %v1519
        %v1547 = vsel %vm1536, %v1519, %v1521
        %v1548 = vsel %vm1536, %v1521, %v1523
        %v1549 = vsel %vm1536, %v1523, %v1525
        %v1550 = vsel %vm1536, %v1525, %v1527
        %v1551 = vsel %vm1536, %v1527, %v1529
        %v1552 = vsel %vm1536, %v1529, %v1531
        %v1553 = vsel %vm1536, %v1531, %v1533
        %v1554 = vsel %vm1536, %v1533, %v1535
        %v1573 = vadd.f32 %v1430, %v1537
        %v1574 = vadd.f32 %v1431, %v1538
        %v1575 = vadd.f32 %v1432, %v1539
        %v1576 = vadd.f32 %v1433, %v1540
        %v1577 = vadd.f32 %v1434, %v1541
        %v1578 = vadd.f32 %v1435, %v1542
        %v1579 = vadd.f32 %v1436, %v1543
        %v1580 = vadd.f32 %v1437, %v1544
        %v1581 = vadd.f32 %v1438, %v1545
        %v1582 = vadd.f32 %v1439, %v1546
        %v1583 = vadd.f32 %v1440, %v1547
        %v1584 = vadd.f32 %v1441, %v1548
        %v1585 = vadd.f32 %v1442, %v1549
        %v1586 = vadd.f32 %v1443, %v1550
        %v1587 = vadd.f32 %v1444, %v1551
        %v1588 = vadd.f32 %v1445, %v1552
        %v1589 = vadd.f32 %v1446, %v1553
        %v1590 = vadd.f32 %v1447, %v1554
        %v1591 = vld [vmem:[%s482] sm:$0xff]
        %v1592 = vld [vmem:[%s482 + $0x8] sm:$0xff]
        %1594 = vset.pattern.permute.xlu0 0
        %1595 = vperm.xlu0 %1594, %v1591
        %v1596 = vpop.permute.xlu0 %1595
        %1599 = vset.pattern.permute.xlu0 0
        %1600 = vperm.xlu0 %1599, %v1592
        %v1601 = vpop.permute.xlu0 %1600
        %v1603 = vadd.f32 %v1573, %v1596
        %v1604 = vadd.f32 %v1574, %v1596
        %v1605 = vadd.f32 %v1575, %v1596
        %v1606 = vadd.f32 %v1576, %v1596
        %v1607 = vadd.f32 %v1577, %v1596
        %v1608 = vadd.f32 %v1578, %v1596
        %v1609 = vadd.f32 %v1579, %v1596
        %v1610 = vadd.f32 %v1580, %v1596
        %v1611 = vadd.f32 %v1581, %v1596
        %v1612 = vadd.f32 %v1582, %v1601
        %v1613 = vadd.f32 %v1583, %v1601
        %v1614 = vadd.f32 %v1584, %v1601
        %v1615 = vadd.f32 %v1585, %v1601
        %v1616 = vadd.f32 %v1586, %v1601
        %v1617 = vadd.f32 %v1587, %v1601
        %v1618 = vadd.f32 %v1588, %v1601
        %v1619 = vadd.f32 %v1589, %v1601
        %v1620 = vadd.f32 %v1590, %v1601
        %v1621 = vmax.f32 %v1603, 0.0
        %v1622 = vmax.f32 %v1604, 0.0
        %v1623 = vmax.f32 %v1605, 0.0
        %v1624 = vmax.f32 %v1606, 0.0
        %v1625 = vmax.f32 %v1607, 0.0
        %v1626 = vmax.f32 %v1608, 0.0
        %v1627 = vmax.f32 %v1609, 0.0
        %v1628 = vmax.f32 %v1610, 0.0
        %v1629 = vmax.f32 %v1611, 0.0
        %v1630 = vmax.f32 %v1612, 0.0
        %v1631 = vmax.f32 %v1613, 0.0
        %v1632 = vmax.f32 %v1614, 0.0
        %v1633 = vmax.f32 %v1615, 0.0
        %v1634 = vmax.f32 %v1616, 0.0
        %v1635 = vmax.f32 %v1617, 0.0
        %v1636 = vmax.f32 %v1618, 0.0
        %v1637 = vmax.f32 %v1619, 0.0
        %v1638 = vmax.f32 %v1620, 0.0
        %1657 = vrot.lane.b32.xlu0 %v1621, 127
        %v1658 = vpop.permute.xlu0 %1657
        %1659 = vrot.lane.b32.xlu0 %v1622, 127
        %v1660 = vpop.permute.xlu0 %1659
        %1661 = vrot.lane.b32.xlu0 %v1623, 127
        %v1662 = vpop.permute.xlu0 %1661
        %1663 = vrot.lane.b32.xlu0 %v1624, 127
        %v1664 = vpop.permute.xlu0 %1663
        %1665 = vrot.lane.b32.xlu0 %v1625, 127
        %v1666 = vpop.permute.xlu0 %1665
        %1667 = vrot.lane.b32.xlu0 %v1626, 127
        %v1668 = vpop.permute.xlu0 %1667
        %1669 = vrot.lane.b32.xlu0 %v1627, 127
        %v1670 = vpop.permute.xlu0 %1669
        %1671 = vrot.lane.b32.xlu0 %v1628, 127
        %v1672 = vpop.permute.xlu0 %1671
        %1673 = vrot.lane.b32.xlu0 %v1629, 127
        %v1674 = vpop.permute.xlu0 %1673
        %1675 = vrot.lane.b32.xlu0 %v1630, 127
        %v1676 = vpop.permute.xlu0 %1675
        %1677 = vrot.lane.b32.xlu0 %v1631, 127
        %v1678 = vpop.permute.xlu0 %1677
        %1679 = vrot.lane.b32.xlu0 %v1632, 127
        %v1680 = vpop.permute.xlu0 %1679
        %1681 = vrot.lane.b32.xlu0 %v1633, 127
        %v1682 = vpop.permute.xlu0 %1681
        %1683 = vrot.lane.b32.xlu0 %v1634, 127
        %v1684 = vpop.permute.xlu0 %1683
        %1685 = vrot.lane.b32.xlu0 %v1635, 127
        %v1686 = vpop.permute.xlu0 %1685
        %1687 = vrot.lane.b32.xlu0 %v1636, 127
        %v1688 = vpop.permute.xlu0 %1687
        %1689 = vrot.lane.b32.xlu0 %v1637, 127
        %v1690 = vpop.permute.xlu0 %1689
        %1691 = vrot.lane.b32.xlu0 %v1638, 127
        %v1692 = vpop.permute.xlu0 %1691
        %v1693 = vsel %vm678, %v1658, %v1660
        %v1694 = vsel %vm678, %v1660, %v1662
        %v1695 = vsel %vm678, %v1662, %v1664
        %v1696 = vsel %vm678, %v1664, %v1666
        %v1697 = vsel %vm678, %v1666, %v1668
        %v1698 = vsel %vm678, %v1668, %v1670
        %v1699 = vsel %vm678, %v1670, %v1672
        %v1700 = vsel %vm678, %v1672, %v1674
        %v1701 = vsel %vm678, %v1676, %v1678
        %v1702 = vsel %vm678, %v1678, %v1680
        %v1703 = vsel %vm678, %v1680, %v1682
        %v1704 = vsel %vm678, %v1682, %v1684
        %v1705 = vsel %vm678, %v1684, %v1686
        %v1706 = vsel %vm678, %v1686, %v1688
        %v1707 = vsel %vm678, %v1688, %v1690
        %v1708 = vsel %vm678, %v1690, %v1692
        %1725 = vrot.lane.b32.xlu0 %v1621, 126
        %v1726 = vpop.permute.xlu0 %1725
        %1727 = vrot.lane.b32.xlu0 %v1622, 126
        %v1728 = vpop.permute.xlu0 %1727
        %1729 = vrot.lane.b32.xlu0 %v1623, 126
        %v1730 = vpop.permute.xlu0 %1729
        %1731 = vrot.lane.b32.xlu0 %v1624, 126
        %v1732 = vpop.permute.xlu0 %1731
        %1733 = vrot.lane.b32.xlu0 %v1625, 126
        %v1734 = vpop.permute.xlu0 %1733
        %1735 = vrot.lane.b32.xlu0 %v1626, 126
        %v1736 = vpop.permute.xlu0 %1735
        %1737 = vrot.lane.b32.xlu0 %v1627, 126
        %v1738 = vpop.permute.xlu0 %1737
        %1739 = vrot.lane.b32.xlu0 %v1628, 126
        %v1740 = vpop.permute.xlu0 %1739
        %1741 = vrot.lane.b32.xlu0 %v1629, 126
        %v1742 = vpop.permute.xlu0 %1741
        %1743 = vrot.lane.b32.xlu0 %v1630, 126
        %v1744 = vpop.permute.xlu0 %1743
        %1745 = vrot.lane.b32.xlu0 %v1631, 126
        %v1746 = vpop.permute.xlu0 %1745
        %1747 = vrot.lane.b32.xlu0 %v1632, 126
        %v1748 = vpop.permute.xlu0 %1747
        %1749 = vrot.lane.b32.xlu0 %v1633, 126
        %v1750 = vpop.permute.xlu0 %1749
        %1751 = vrot.lane.b32.xlu0 %v1634, 126
        %v1752 = vpop.permute.xlu0 %1751
        %1753 = vrot.lane.b32.xlu0 %v1635, 126
        %v1754 = vpop.permute.xlu0 %1753
        %1755 = vrot.lane.b32.xlu0 %v1636, 126
        %v1756 = vpop.permute.xlu0 %1755
        %1757 = vrot.lane.b32.xlu0 %v1637, 126
        %v1758 = vpop.permute.xlu0 %1757
        %1759 = vrot.lane.b32.xlu0 %v1638, 126
        %v1760 = vpop.permute.xlu0 %1759
        %v1761 = vsel %vm821, %v1726, %v1728
        %v1762 = vsel %vm821, %v1728, %v1730
        %v1763 = vsel %vm821, %v1730, %v1732
        %v1764 = vsel %vm821, %v1732, %v1734
        %v1765 = vsel %vm821, %v1734, %v1736
        %v1766 = vsel %vm821, %v1736, %v1738
        %v1767 = vsel %vm821, %v1738, %v1740
        %v1768 = vsel %vm821, %v1740, %v1742
        %v1769 = vsel %vm821, %v1744, %v1746
        %v1770 = vsel %vm821, %v1746, %v1748
        %v1771 = vsel %vm821, %v1748, %v1750
        %v1772 = vsel %vm821, %v1750, %v1752
        %v1773 = vsel %vm821, %v1752, %v1754
        %v1774 = vsel %vm821, %v1754, %v1756
        %v1775 = vsel %vm821, %v1756, %v1758
        %v1776 = vsel %vm821, %v1758, %v1760
        %1793 = vrot.lane.b32.xlu0 %v1621, 125
        %v1794 = vpop.permute.xlu0 %1793
        %1795 = vrot.lane.b32.xlu0 %v1622, 125
        %v1796 = vpop.permute.xlu0 %1795
        %1797 = vrot.lane.b32.xlu0 %v1623, 125
        %v1798 = vpop.permute.xlu0 %1797
        %1799 = vrot.lane.b32.xlu0 %v1624, 125
        %v1800 = vpop.permute.xlu0 %1799
        %1801 = vrot.lane.b32.xlu0 %v1625, 125
        %v1802 = vpop.permute.xlu0 %1801
        %1803 = vrot.lane.b32.xlu0 %v1626, 125
        %v1804 = vpop.permute.xlu0 %1803
        %1805 = vrot.lane.b32.xlu0 %v1627, 125
        %v1806 = vpop.permute.xlu0 %1805
        %1807 = vrot.lane.b32.xlu0 %v1628, 125
        %v1808 = vpop.permute.xlu0 %1807
        %1809 = vrot.lane.b32.xlu0 %v1629, 125
        %v1810 = vpop.permute.xlu0 %1809
        %1811 = vrot.lane.b32.xlu0 %v1630, 125
        %v1812 = vpop.permute.xlu0 %1811
        %1813 = vrot.lane.b32.xlu0 %v1631, 125
        %v1814 = vpop.permute.xlu0 %1813
        %1815 = vrot.lane.b32.xlu0 %v1632, 125
        %v1816 = vpop.permute.xlu0 %1815
        %1817 = vrot.lane.b32.xlu0 %v1633, 125
        %v1818 = vpop.permute.xlu0 %1817
        %1819 = vrot.lane.b32.xlu0 %v1634, 125
        %v1820 = vpop.permute.xlu0 %1819
        %1821 = vrot.lane.b32.xlu0 %v1635, 125
        %v1822 = vpop.permute.xlu0 %1821
        %1823 = vrot.lane.b32.xlu0 %v1636, 125
        %v1824 = vpop.permute.xlu0 %1823
        %1825 = vrot.lane.b32.xlu0 %v1637, 125
        %v1826 = vpop.permute.xlu0 %1825
        %1827 = vrot.lane.b32.xlu0 %v1638, 125
        %v1828 = vpop.permute.xlu0 %1827
        %v1829 = vsel %vm964, %v1794, %v1796
        %v1830 = vsel %vm964, %v1796, %v1798
        %v1831 = vsel %vm964, %v1798, %v1800
        %v1832 = vsel %vm964, %v1800, %v1802
        %v1833 = vsel %vm964, %v1802, %v1804
        %v1834 = vsel %vm964, %v1804, %v1806
        %v1835 = vsel %vm964, %v1806, %v1808
        %v1836 = vsel %vm964, %v1808, %v1810
        %v1837 = vsel %vm964, %v1812, %v1814
        %v1838 = vsel %vm964, %v1814, %v1816
        %v1839 = vsel %vm964, %v1816, %v1818
        %v1840 = vsel %vm964, %v1818, %v1820
        %v1841 = vsel %vm964, %v1820, %v1822
        %v1842 = vsel %vm964, %v1822, %v1824
        %v1843 = vsel %vm964, %v1824, %v1826
        %v1844 = vsel %vm964, %v1826, %v1828
        %1861 = vrot.lane.b32.xlu0 %v1621, 124
        %v1862 = vpop.permute.xlu0 %1861
        %1863 = vrot.lane.b32.xlu0 %v1622, 124
        %v1864 = vpop.permute.xlu0 %1863
        %1865 = vrot.lane.b32.xlu0 %v1623, 124
        %v1866 = vpop.permute.xlu0 %1865
        %1867 = vrot.lane.b32.xlu0 %v1624, 124
        %v1868 = vpop.permute.xlu0 %1867
        %1869 = vrot.lane.b32.xlu0 %v1625, 124
        %v1870 = vpop.permute.xlu0 %1869
        %1871 = vrot.lane.b32.xlu0 %v1626, 124
        %v1872 = vpop.permute.xlu0 %1871
        %1873 = vrot.lane.b32.xlu0 %v1627, 124
        %v1874 = vpop.permute.xlu0 %1873
        %1875 = vrot.lane.b32.xlu0 %v1628, 124
        %v1876 = vpop.permute.xlu0 %1875
        %1877 = vrot.lane.b32.xlu0 %v1629, 124
        %v1878 = vpop.permute.xlu0 %1877
        %1879 = vrot.lane.b32.xlu0 %v1630, 124
        %v1880 = vpop.permute.xlu0 %1879
        %1881 = vrot.lane.b32.xlu0 %v1631, 124
        %v1882 = vpop.permute.xlu0 %1881
        %1883 = vrot.lane.b32.xlu0 %v1632, 124
        %v1884 = vpop.permute.xlu0 %1883
        %1885 = vrot.lane.b32.xlu0 %v1633, 124
        %v1886 = vpop.permute.xlu0 %1885
        %1887 = vrot.lane.b32.xlu0 %v1634, 124
        %v1888 = vpop.permute.xlu0 %1887
        %1889 = vrot.lane.b32.xlu0 %v1635, 124
        %v1890 = vpop.permute.xlu0 %1889
        %1891 = vrot.lane.b32.xlu0 %v1636, 124
        %v1892 = vpop.permute.xlu0 %1891
        %1893 = vrot.lane.b32.xlu0 %v1637, 124
        %v1894 = vpop.permute.xlu0 %1893
        %1895 = vrot.lane.b32.xlu0 %v1638, 124
        %v1896 = vpop.permute.xlu0 %1895
        %v1897 = vsel %vm1107, %v1862, %v1864
        %v1898 = vsel %vm1107, %v1864, %v1866
        %v1899 = vsel %vm1107, %v1866, %v1868
        %v1900 = vsel %vm1107, %v1868, %v1870
        %v1901 = vsel %vm1107, %v1870, %v1872
        %v1902 = vsel %vm1107, %v1872, %v1874
        %v1903 = vsel %vm1107, %v1874, %v1876
        %v1904 = vsel %vm1107, %v1876, %v1878
        %v1905 = vsel %vm1107, %v1880, %v1882
        %v1906 = vsel %vm1107, %v1882, %v1884
        %v1907 = vsel %vm1107, %v1884, %v1886
        %v1908 = vsel %vm1107, %v1886, %v1888
        %v1909 = vsel %vm1107, %v1888, %v1890
        %v1910 = vsel %vm1107, %v1890, %v1892
        %v1911 = vsel %vm1107, %v1892, %v1894
        %v1912 = vsel %vm1107, %v1894, %v1896
        %1929 = vrot.lane.b32.xlu0 %v1621, 123
        %v1930 = vpop.permute.xlu0 %1929
        %1931 = vrot.lane.b32.xlu0 %v1622, 123
        %v1932 = vpop.permute.xlu0 %1931
        %1933 = vrot.lane.b32.xlu0 %v1623, 123
        %v1934 = vpop.permute.xlu0 %1933
        %1935 = vrot.lane.b32.xlu0 %v1624, 123
        %v1936 = vpop.permute.xlu0 %1935
        %1937 = vrot.lane.b32.xlu0 %v1625, 123
        %v1938 = vpop.permute.xlu0 %1937
        %1939 = vrot.lane.b32.xlu0 %v1626, 123
        %v1940 = vpop.permute.xlu0 %1939
        %1941 = vrot.lane.b32.xlu0 %v1627, 123
        %v1942 = vpop.permute.xlu0 %1941
        %1943 = vrot.lane.b32.xlu0 %v1628, 123
        %v1944 = vpop.permute.xlu0 %1943
        %1945 = vrot.lane.b32.xlu0 %v1629, 123
        %v1946 = vpop.permute.xlu0 %1945
        %1947 = vrot.lane.b32.xlu0 %v1630, 123
        %v1948 = vpop.permute.xlu0 %1947
        %1949 = vrot.lane.b32.xlu0 %v1631, 123
        %v1950 = vpop.permute.xlu0 %1949
        %1951 = vrot.lane.b32.xlu0 %v1632, 123
        %v1952 = vpop.permute.xlu0 %1951
        %1953 = vrot.lane.b32.xlu0 %v1633, 123
        %v1954 = vpop.permute.xlu0 %1953
        %1955 = vrot.lane.b32.xlu0 %v1634, 123
        %v1956 = vpop.permute.xlu0 %1955
        %1957 = vrot.lane.b32.xlu0 %v1635, 123
        %v1958 = vpop.permute.xlu0 %1957
        %1959 = vrot.lane.b32.xlu0 %v1636, 123
        %v1960 = vpop.permute.xlu0 %1959
        %1961 = vrot.lane.b32.xlu0 %v1637, 123
        %v1962 = vpop.permute.xlu0 %1961
        %1963 = vrot.lane.b32.xlu0 %v1638, 123
        %v1964 = vpop.permute.xlu0 %1963
        %v1965 = vsel %vm1250, %v1930, %v1932
        %v1966 = vsel %vm1250, %v1932, %v1934
        %v1967 = vsel %vm1250, %v1934, %v1936
        %v1968 = vsel %vm1250, %v1936, %v1938
        %v1969 = vsel %vm1250, %v1938, %v1940
        %v1970 = vsel %vm1250, %v1940, %v1942
        %v1971 = vsel %vm1250, %v1942, %v1944
        %v1972 = vsel %vm1250, %v1944, %v1946
        %v1973 = vsel %vm1250, %v1948, %v1950
        %v1974 = vsel %vm1250, %v1950, %v1952
        %v1975 = vsel %vm1250, %v1952, %v1954
        %v1976 = vsel %vm1250, %v1954, %v1956
        %v1977 = vsel %vm1250, %v1956, %v1958
        %v1978 = vsel %vm1250, %v1958, %v1960
        %v1979 = vsel %vm1250, %v1960, %v1962
        %v1980 = vsel %vm1250, %v1962, %v1964
        %1997 = vrot.lane.b32.xlu0 %v1621, 122
        %v1998 = vpop.permute.xlu0 %1997
        %1999 = vrot.lane.b32.xlu0 %v1622, 122
        %v2000 = vpop.permute.xlu0 %1999
        %2001 = vrot.lane.b32.xlu0 %v1623, 122
        %v2002 = vpop.permute.xlu0 %2001
        %2003 = vrot.lane.b32.xlu0 %v1624, 122
        %v2004 = vpop.permute.xlu0 %2003
        %2005 = vrot.lane.b32.xlu0 %v1625, 122
        %v2006 = vpop.permute.xlu0 %2005
        %2007 = vrot.lane.b32.xlu0 %v1626, 122
        %v2008 = vpop.permute.xlu0 %2007
        %2009 = vrot.lane.b32.xlu0 %v1627, 122
        %v2010 = vpop.permute.xlu0 %2009
        %2011 = vrot.lane.b32.xlu0 %v1628, 122
        %v2012 = vpop.permute.xlu0 %2011
        %2013 = vrot.lane.b32.xlu0 %v1629, 122
        %v2014 = vpop.permute.xlu0 %2013
        %2015 = vrot.lane.b32.xlu0 %v1630, 122
        %v2016 = vpop.permute.xlu0 %2015
        %2017 = vrot.lane.b32.xlu0 %v1631, 122
        %v2018 = vpop.permute.xlu0 %2017
        %2019 = vrot.lane.b32.xlu0 %v1632, 122
        %v2020 = vpop.permute.xlu0 %2019
        %2021 = vrot.lane.b32.xlu0 %v1633, 122
        %v2022 = vpop.permute.xlu0 %2021
        %2023 = vrot.lane.b32.xlu0 %v1634, 122
        %v2024 = vpop.permute.xlu0 %2023
        %2025 = vrot.lane.b32.xlu0 %v1635, 122
        %v2026 = vpop.permute.xlu0 %2025
        %2027 = vrot.lane.b32.xlu0 %v1636, 122
        %v2028 = vpop.permute.xlu0 %2027
        %2029 = vrot.lane.b32.xlu0 %v1637, 122
        %v2030 = vpop.permute.xlu0 %2029
        %2031 = vrot.lane.b32.xlu0 %v1638, 122
        %v2032 = vpop.permute.xlu0 %2031
        %v2033 = vsel %vm1393, %v1998, %v2000
        %v2034 = vsel %vm1393, %v2000, %v2002
        %v2035 = vsel %vm1393, %v2002, %v2004
        %v2036 = vsel %vm1393, %v2004, %v2006
        %v2037 = vsel %vm1393, %v2006, %v2008
        %v2038 = vsel %vm1393, %v2008, %v2010
        %v2039 = vsel %vm1393, %v2010, %v2012
        %v2040 = vsel %vm1393, %v2012, %v2014
        %v2041 = vsel %vm1393, %v2016, %v2018
        %v2042 = vsel %vm1393, %v2018, %v2020
        %v2043 = vsel %vm1393, %v2020, %v2022
        %v2044 = vsel %vm1393, %v2022, %v2024
        %v2045 = vsel %vm1393, %v2024, %v2026
        %v2046 = vsel %vm1393, %v2026, %v2028
        %v2047 = vsel %vm1393, %v2028, %v2030
        %v2048 = vsel %vm1393, %v2030, %v2032
        %2065 = vrot.lane.b32.xlu0 %v1621, 121
        %v2066 = vpop.permute.xlu0 %2065
        %2067 = vrot.lane.b32.xlu0 %v1622, 121
        %v2068 = vpop.permute.xlu0 %2067
        %2069 = vrot.lane.b32.xlu0 %v1623, 121
        %v2070 = vpop.permute.xlu0 %2069
        %2071 = vrot.lane.b32.xlu0 %v1624, 121
        %v2072 = vpop.permute.xlu0 %2071
        %2073 = vrot.lane.b32.xlu0 %v1625, 121
        %v2074 = vpop.permute.xlu0 %2073
        %2075 = vrot.lane.b32.xlu0 %v1626, 121
        %v2076 = vpop.permute.xlu0 %2075
        %2077 = vrot.lane.b32.xlu0 %v1627, 121
        %v2078 = vpop.permute.xlu0 %2077
        %2079 = vrot.lane.b32.xlu0 %v1628, 121
        %v2080 = vpop.permute.xlu0 %2079
        %2081 = vrot.lane.b32.xlu0 %v1629, 121
        %v2082 = vpop.permute.xlu0 %2081
        %2083 = vrot.lane.b32.xlu0 %v1630, 121
        %v2084 = vpop.permute.xlu0 %2083
        %2085 = vrot.lane.b32.xlu0 %v1631, 121
        %v2086 = vpop.permute.xlu0 %2085
        %2087 = vrot.lane.b32.xlu0 %v1632, 121
        %v2088 = vpop.permute.xlu0 %2087
        %2089 = vrot.lane.b32.xlu0 %v1633, 121
        %v2090 = vpop.permute.xlu0 %2089
        %2091 = vrot.lane.b32.xlu0 %v1634, 121
        %v2092 = vpop.permute.xlu0 %2091
        %2093 = vrot.lane.b32.xlu0 %v1635, 121
        %v2094 = vpop.permute.xlu0 %2093
        %2095 = vrot.lane.b32.xlu0 %v1636, 121
        %v2096 = vpop.permute.xlu0 %2095
        %2097 = vrot.lane.b32.xlu0 %v1637, 121
        %v2098 = vpop.permute.xlu0 %2097
        %2099 = vrot.lane.b32.xlu0 %v1638, 121
        %v2100 = vpop.permute.xlu0 %2099
        %v2101 = vsel %vm1536, %v2066, %v2068
        %v2102 = vsel %vm1536, %v2068, %v2070
        %v2103 = vsel %vm1536, %v2070, %v2072
        %v2104 = vsel %vm1536, %v2072, %v2074
        %v2105 = vsel %vm1536, %v2074, %v2076
        %v2106 = vsel %vm1536, %v2076, %v2078
        %v2107 = vsel %vm1536, %v2078, %v2080
        %v2108 = vsel %vm1536, %v2080, %v2082
        %v2109 = vsel %vm1536, %v2084, %v2086
        %v2110 = vsel %vm1536, %v2086, %v2088
        %v2111 = vsel %vm1536, %v2088, %v2090
        %v2112 = vsel %vm1536, %v2090, %v2092
        %v2113 = vsel %vm1536, %v2092, %v2094
        %v2114 = vsel %vm1536, %v2094, %v2096
        %v2115 = vsel %vm1536, %v2096, %v2098
        %v2116 = vsel %vm1536, %v2098, %v2100
        %v2133 = vld [vmem:[%s394] sm:$0xff]
        %v2134 = vld [vmem:[%s394 + $0x8] sm:$0xff]
        %v2135 = vld [vmem:[%s394 + $0x10] sm:$0xff]
        %v2136 = vld [vmem:[%s394 + $0x18] sm:$0xff]
        %v2137 = vld [vmem:[%s487] sm:$0xff]
        %v2138 = vld [vmem:[%s487 + $0x8] sm:$0xff]
        %v2139 = vld [vmem:[%s487 + $0x10] sm:$0xff]
        %v2140 = vld [vmem:[%s487 + $0x18] sm:$0xff]
        %2142 = vset.pattern.permute.xlu0 0
        %2143 = vperm.xlu0 %2142, %v2137
        %v2144 = vpop.permute.xlu0 %2143
        %2147 = vset.pattern.permute.xlu0 0
        %2148 = vperm.xlu0 %2147, %v2138
        %v2149 = vpop.permute.xlu0 %2148
        %2152 = vset.pattern.permute.xlu0 0
        %2153 = vperm.xlu0 %2152, %v2139
        %v2154 = vpop.permute.xlu0 %2153
        %2157 = vset.pattern.permute.xlu0 0
        %2158 = vperm.xlu0 %2157, %v2140
        %v2159 = vpop.permute.xlu0 %2158
        %2161 = vmatprep.subr.mxu0 %v1622
        %2162 = vmatpush1.msra.mxu0 %v1621
        %2163 = vmatprep.subr.mxu0 %v1631
        %2164 = vmatpush1.msra.mxu0 %v1630
        %2165 = vmatprep.subr.mxu0 %v1694
        %2166 = vmatpush1.msra.mxu0 %v1693
        %2167 = vmatprep.subr.mxu0 %v1702
        %2168 = vmatpush1.msra.mxu0 %v1701
        %2169 = vmatprep.subr.mxu0 %v1762
        %2170 = vmatpush1.msra.mxu0 %v1761
        %2171 = vmatprep.subr.mxu0 %v1770
        %2172 = vmatpush1.msra.mxu0 %v1769
        %2173 = vmatprep.subr.mxu0 %v1830
        %2174 = vmatpush1.msra.mxu0 %v1829
        %2175 = vmatprep.subr.mxu0 %v1838
        %2176 = vmatpush1.msra.mxu0 %v1837
        %2177 = vmatprep.subr.mxu0 %v1898
        %2178 = vmatpush1.msra.mxu0 %v1897
        %2179 = vmatprep.subr.mxu0 %v1906
        %2180 = vmatpush1.msra.mxu0 %v1905
        %2181 = vmatprep.subr.mxu0 %v1966
        %2182 = vmatpush1.msra.mxu0 %v1965
        %2183 = vmatprep.subr.mxu0 %v1974
        %2184 = vmatpush1.msra.mxu0 %v1973
        %2185 = vmatprep.subr.mxu0 %v2034
        %2186 = vmatpush1.msra.mxu0 %v2033
        %2187 = vmatprep.subr.mxu0 %v2042
        %2188 = vmatpush1.msra.mxu0 %v2041
        %2189 = vmatprep.subr.mxu0 %v2102
        %2190 = vmatpush1.msra.mxu0 %v2101
        %2191 = vmatprep.subr.mxu0 %v2110
        %2192 = vmatpush1.msra.mxu0 %v2109
        %2193 = vmatprep.subr.mxu0 0.0
        %2194 = vmatpush1.msra.mxu0 0.0
        %2195 = vmatprep.subr.mxu0 0.0
        %2196 = vmatpush1.msra.mxu0 0.0
        %2197 = vmatprep.subr.mxu0 0.0
        %2198 = vmatpush1.msra.mxu0 0.0
        %2199 = vmatprep.subr.mxu0 0.0
        %2200 = vmatpush1.msra.mxu0 0.0
        %2201 = vmatprep.subr.mxu0 0.0
        %2202 = vmatpush1.msra.mxu0 0.0
        %2203 = vmatprep.subr.mxu0 0.0
        %2204 = vmatpush1.msra.mxu0 0.0
        %2205 = vmatprep.subr.mxu0 0.0
        %2206 = vmatpush1.msra.mxu0 0.0
        %2207 = vmatprep.subr.mxu0 0.0
        %2208 = vmatpush1.msra.mxu0 0.0
        %2209 = vmatprep.subr.mxu0 0.0
        %2210 = vmatpush1.msra.mxu0 0.0
        %2211 = vmatprep.subr.mxu0 0.0
        %2212 = vmatpush1.msra.mxu0 0.0
        %2213 = vmatprep.subr.mxu0 0.0
        %2214 = vmatpush1.msra.mxu0 0.0
        %2215 = vmatprep.subr.mxu0 0.0
        %2216 = vmatpush1.msra.mxu0 0.0
        %2217 = vmatprep.subr.mxu0 0.0
        %2218 = vmatpush1.msra.mxu0 0.0
        %2219 = vmatprep.subr.mxu0 0.0
        %2220 = vmatpush1.msra.mxu0 0.0
        %2221 = vmatprep.subr.mxu0 0.0
        %2222 = vmatpush1.msra.mxu0 0.0
        %2223 = vmatprep.subr.mxu0 0.0
        %2224 = vmatpush1.msra.mxu0 0.0
        %2225 = vmatprep.mubr.f32.mxu0 0.0
        %2226 = vmatmul.mubr.f32.gmra.mrb[0].mxu0 %v2133
        %v2227 = vpop.f32.mrb[0].mxu0
        %v2228 = vadd.f32 %v2144, %v2227
        %v2229 = vpop.f32.mrb[0].mxu0
        %v2230 = vadd.f32 %v2144, %v2229
        %2231 = vmatprep.mubr.f32.mxu0 0.0
        %2232 = vmatmul.mubr.f32.gmra.mrb[0].mxu0 %v2134
        %v2233 = vpop.f32.mrb[0].mxu0
        %v2234 = vadd.f32 %v2149, %v2233
        %v2235 = vpop.f32.mrb[0].mxu0
        %v2236 = vadd.f32 %v2149, %v2235
        %2237 = vmatprep.mubr.f32.mxu0 0.0
        %2238 = vmatmul.mubr.f32.gmra.mrb[0].mxu0 %v2135
        %v2239 = vpop.f32.mrb[0].mxu0
        %v2240 = vadd.f32 %v2154, %v2239
        %v2241 = vpop.f32.mrb[0].mxu0
        %v2242 = vadd.f32 %v2154, %v2241
        %2243 = vmatprep.mubr.f32.mxu0 0.0
        %2244 = vmatmul.mubr.f32.gmra.mrb[0].mxu0 %v2136
        %v2245 = vpop.f32.mrb[0].mxu0
        %v2246 = vadd.f32 %v2159, %v2245
        %v2247 = vpop.f32.mrb[0].mxu0
        %v2248 = vadd.f32 %v2159, %v2247
        %2249 = vdwg.mxu0
        %2250 = vmatprep.subr.mxu0 %v1624
        %2251 = vmatpush1.msra.mxu0 %v1623
        %2252 = vmatprep.subr.mxu0 %v1633
        %2253 = vmatpush1.msra.mxu0 %v1632
        %2254 = vmatprep.subr.mxu0 %v1696
        %2255 = vmatpush1.msra.mxu0 %v1695
        %2256 = vmatprep.subr.mxu0 %v1704
        %2257 = vmatpush1.msra.mxu0 %v1703
        %2258 = vmatprep.subr.mxu0 %v1764
        %2259 = vmatpush1.msra.mxu0 %v1763
        %2260 = vmatprep.subr.mxu0 %v1772
        %2261 = vmatpush1.msra.mxu0 %v1771
        %2262 = vmatprep.subr.mxu0 %v1832
        %2263 = vmatpush1.msra.mxu0 %v1831
        %2264 = vmatprep.subr.mxu0 %v1840
        %2265 = vmatpush1.msra.mxu0 %v1839
        %2266 = vmatprep.subr.mxu0 %v1900
        %2267 = vmatpush1.msra.mxu0 %v1899
        %2268 = vmatprep.subr.mxu0 %v1908
        %2269 = vmatpush1.msra.mxu0 %v1907
        %2270 = vmatprep.subr.mxu0 %v1968
        %2271 = vmatpush1.msra.mxu0 %v1967
        %2272 = vmatprep.subr.mxu0 %v1976
        %2273 = vmatpush1.msra.mxu0 %v1975
        %2274 = vmatprep.subr.mxu0 %v2036
        %2275 = vmatpush1.msra.mxu0 %v2035
        %2276 = vmatprep.subr.mxu0 %v2044
        %2277 = vmatpush1.msra.mxu0 %v2043
        %2278 = vmatprep.subr.mxu0 %v2104
        %2279 = vmatpush1.msra.mxu0 %v2103
        %2280 = vmatprep.subr.mxu0 %v2112
        %2281 = vmatpush1.msra.mxu0 %v2111
        %2282 = vmatprep.subr.mxu0 0.0
        %2283 = vmatpush1.msra.mxu0 0.0
        %2284 = vmatprep.subr.mxu0 0.0
        %2285 = vmatpush1.msra.mxu0 0.0
        %2286 = vmatprep.subr.mxu0 0.0
        %2287 = vmatpush1.msra.mxu0 0.0
        %2288 = vmatprep.subr.mxu0 0.0
        %2289 = vmatpush1.msra.mxu0 0.0
        %2290 = vmatprep.subr.mxu0 0.0
        %2291 = vmatpush1.msra.mxu0 0.0
        %2292 = vmatprep.subr.mxu0 0.0
        %2293 = vmatpush1.msra.mxu0 0.0
        %2294 = vmatprep.subr.mxu0 0.0
        %2295 = vmatpush1.msra.mxu0 0.0
        %2296 = vmatprep.subr.mxu0 0.0
        %2297 = vmatpush1.msra.mxu0 0.0
        %2298 = vmatprep.subr.mxu0 0.0
        %2299 = vmatpush1.msra.mxu0 0.0
        %2300 = vmatprep.subr.mxu0 0.0
        %2301 = vmatpush1.msra.mxu0 0.0
        %2302 = vmatprep.subr.mxu0 0.0
        %2303 = vmatpush1.msra.mxu0 0.0
        %2304 = vmatprep.subr.mxu0 0.0
        %2305 = vmatpush1.msra.mxu0 0.0
        %2306 = vmatprep.subr.mxu0 0.0
        %2307 = vmatpush1.msra.mxu0 0.0
        %2308 = vmatprep.subr.mxu0 0.0
        %2309 = vmatpush1.msra.mxu0 0.0
        %2310 = vmatprep.subr.mxu0 0.0
        %2311 = vmatpush1.msra.mxu0 0.0
        %2312 = vmatprep.subr.mxu0 0.0
        %2313 = vmatpush1.msra.mxu0 0.0
        %2314 = vmatprep.mubr.f32.mxu0 0.0
        %2315 = vmatmul.mubr.f32.gmra.mrb[0].mxu0 %v2133
        %v2316 = vpop.f32.mrb[0].mxu0
        %v2317 = vadd.f32 %v2144, %v2316
        %v2318 = vpop.f32.mrb[0].mxu0
        %v2319 = vadd.f32 %v2144, %v2318
        %2320 = vmatprep.mubr.f32.mxu0 0.0
        %2321 = vmatmul.mubr.f32.gmra.mrb[0].mxu0 %v2134
        %v2322 = vpop.f32.mrb[0].mxu0
        %v2323 = vadd.f32 %v2149, %v2322
        %v2324 = vpop.f32.mrb[0].mxu0
        %v2325 = vadd.f32 %v2149, %v2324
        %2326 = vmatprep.mubr.f32.mxu0 0.0
        %2327 = vmatmul.mubr.f32.gmra.mrb[0].mxu0 %v2135
        %v2328 = vpop.f32.mrb[0].mxu0
        %v2329 = vadd.f32 %v2154, %v2328
        %v2330 = vpop.f32.mrb[0].mxu0
        %v2331 = vadd.f32 %v2154, %v2330
        %2332 = vmatprep.mubr.f32.mxu0 0.0
        %2333 = vmatmul.mubr.f32.gmra.mrb[0].mxu0 %v2136
        %v2334 = vpop.f32.mrb[0].mxu0
        %v2335 = vadd.f32 %v2159, %v2334
        %v2336 = vpop.f32.mrb[0].mxu0
        %v2337 = vadd.f32 %v2159, %v2336
        %2338 = vdwg.mxu0
        %2339 = vmatprep.subr.mxu0 %v1626
        %2340 = vmatpush1.msra.mxu0 %v1625
        %2341 = vmatprep.subr.mxu0 %v1635
        %2342 = vmatpush1.msra.mxu0 %v1634
        %2343 = vmatprep.subr.mxu0 %v1698
        %2344 = vmatpush1.msra.mxu0 %v1697
        %2345 = vmatprep.subr.mxu0 %v1706
        %2346 = vmatpush1.msra.mxu0 %v1705
        %2347 = vmatprep.subr.mxu0 %v1766
        %2348 = vmatpush1.msra.mxu0 %v1765
        %2349 = vmatprep.subr.mxu0 %v1774
        %2350 = vmatpush1.msra.mxu0 %v1773
        %2351 = vmatprep.subr.mxu0 %v1834
        %2352 = vmatpush1.msra.mxu0 %v1833
        %2353 = vmatprep.subr.mxu0 %v1842
        %2354 = vmatpush1.msra.mxu0 %v1841
        %2355 = vmatprep.subr.mxu0 %v1902
        %2356 = vmatpush1.msra.mxu0 %v1901
        %2357 = vmatprep.subr.mxu0 %v1910
        %2358 = vmatpush1.msra.mxu0 %v1909
        %2359 = vmatprep.subr.mxu0 %v1970
        %2360 = vmatpush1.msra.mxu0 %v1969
        %2361 = vmatprep.subr.mxu0 %v1978
        %2362 = vmatpush1.msra.mxu0 %v1977
        %2363 = vmatprep.subr.mxu0 %v2038
        %2364 = vmatpush1.msra.mxu0 %v2037
        %2365 = vmatprep.subr.mxu0 %v2046
        %2366 = vmatpush1.msra.mxu0 %v2045
        %2367 = vmatprep.subr.mxu0 %v2106
        %2368 = vmatpush1.msra.mxu0 %v2105
        %2369 = vmatprep.subr.mxu0 %v2114
        %2370 = vmatpush1.msra.mxu0 %v2113
        %2371 = vmatprep.subr.mxu0 0.0
        %2372 = vmatpush1.msra.mxu0 0.0
        %2373 = vmatprep.subr.mxu0 0.0
        %2374 = vmatpush1.msra.mxu0 0.0
        %2375 = vmatprep.subr.mxu0 0.0
        %2376 = vmatpush1.msra.mxu0 0.0
        %2377 = vmatprep.subr.mxu0 0.0
        %2378 = vmatpush1.msra.mxu0 0.0
        %2379 = vmatprep.subr.mxu0 0.0
        %2380 = vmatpush1.msra.mxu0 0.0
        %2381 = vmatprep.subr.mxu0 0.0
        %2382 = vmatpush1.msra.mxu0 0.0
        %2383 = vmatprep.subr.mxu0 0.0
        %2384 = vmatpush1.msra.mxu0 0.0
        %2385 = vmatprep.subr.mxu0 0.0
        %2386 = vmatpush1.msra.mxu0 0.0
        %2387 = vmatprep.subr.mxu0 0.0
        %2388 = vmatpush1.msra.mxu0 0.0
        %2389 = vmatprep.subr.mxu0 0.0
        %2390 = vmatpush1.msra.mxu0 0.0
        %2391 = vmatprep.subr.mxu0 0.0
        %2392 = vmatpush1.msra.mxu0 0.0
        %2393 = vmatprep.subr.mxu0 0.0
        %2394 = vmatpush1.msra.mxu0 0.0
        %2395 = vmatprep.subr.mxu0 0.0
        %2396 = vmatpush1.msra.mxu0 0.0
        %2397 = vmatprep.subr.mxu0 0.0
        %2398 = vmatpush1.msra.mxu0 0.0
        %2399 = vmatprep.subr.mxu0 0.0
        %2400 = vmatpush1.msra.mxu0 0.0
        %2401 = vmatprep.subr.mxu0 0.0
        %2402 = vmatpush1.msra.mxu0 0.0
        %2403 = vmatprep.mubr.f32.mxu0 0.0
        %2404 = vmatmul.mubr.f32.gmra.mrb[0].mxu0 %v2133
        %v2405 = vpop.f32.mrb[0].mxu0
        %v2406 = vadd.f32 %v2144, %v2405
        %v2407 = vpop.f32.mrb[0].mxu0
        %v2408 = vadd.f32 %v2144, %v2407
        %2409 = vmatprep.mubr.f32.mxu0 0.0
        %2410 = vmatmul.mubr.f32.gmra.mrb[0].mxu0 %v2134
        %v2411 = vpop.f32.mrb[0].mxu0
        %v2412 = vadd.f32 %v2149, %v2411
        %v2413 = vpop.f32.mrb[0].mxu0
        %v2414 = vadd.f32 %v2149, %v2413
        %2415 = vmatprep.mubr.f32.mxu0 0.0
        %2416 = vmatmul.mubr.f32.gmra.mrb[0].mxu0 %v2135
        %v2417 = vpop.f32.mrb[0].mxu0
        %v2418 = vadd.f32 %v2154, %v2417
        %v2419 = vpop.f32.mrb[0].mxu0
        %v2420 = vadd.f32 %v2154, %v2419
        %2421 = vmatprep.mubr.f32.mxu0 0.0
        %2422 = vmatmul.mubr.f32.gmra.mrb[0].mxu0 %v2136
        %v2423 = vpop.f32.mrb[0].mxu0
        %v2424 = vadd.f32 %v2159, %v2423
        %v2425 = vpop.f32.mrb[0].mxu0
        %v2426 = vadd.f32 %v2159, %v2425
        %2427 = vdwg.mxu0
        %2428 = vmatprep.subr.mxu0 %v1628
        %2429 = vmatpush1.msra.mxu0 %v1627
        %2430 = vmatprep.subr.mxu0 %v1637
        %2431 = vmatpush1.msra.mxu0 %v1636
        %2432 = vmatprep.subr.mxu0 %v1700
        %2433 = vmatpush1.msra.mxu0 %v1699
        %2434 = vmatprep.subr.mxu0 %v1708
        %2435 = vmatpush1.msra.mxu0 %v1707
        %2436 = vmatprep.subr.mxu0 %v1768
        %2437 = vmatpush1.msra.mxu0 %v1767
        %2438 = vmatprep.subr.mxu0 %v1776
        %2439 = vmatpush1.msra.mxu0 %v1775
        %2440 = vmatprep.subr.mxu0 %v1836
        %2441 = vmatpush1.msra.mxu0 %v1835
        %2442 = vmatprep.subr.mxu0 %v1844
        %2443 = vmatpush1.msra.mxu0 %v1843
        %2444 = vmatprep.subr.mxu0 %v1904
        %2445 = vmatpush1.msra.mxu0 %v1903
        %2446 = vmatprep.subr.mxu0 %v1912
        %2447 = vmatpush1.msra.mxu0 %v1911
        %2448 = vmatprep.subr.mxu0 %v1972
        %2449 = vmatpush1.msra.mxu0 %v1971
        %2450 = vmatprep.subr.mxu0 %v1980
        %2451 = vmatpush1.msra.mxu0 %v1979
        %2452 = vmatprep.subr.mxu0 %v2040
        %2453 = vmatpush1.msra.mxu0 %v2039
        %2454 = vmatprep.subr.mxu0 %v2048
        %2455 = vmatpush1.msra.mxu0 %v2047
        %2456 = vmatprep.subr.mxu0 %v2108
        %2457 = vmatpush1.msra.mxu0 %v2107
        %2458 = vmatprep.subr.mxu0 %v2116
        %2459 = vmatpush1.msra.mxu0 %v2115
        %2460 = vmatprep.subr.mxu0 0.0
        %2461 = vmatpush1.msra.mxu0 0.0
        %2462 = vmatprep.subr.mxu0 0.0
        %2463 = vmatpush1.msra.mxu0 0.0
        %2464 = vmatprep.subr.mxu0 0.0
        %2465 = vmatpush1.msra.mxu0 0.0
        %2466 = vmatprep.subr.mxu0 0.0
        %2467 = vmatpush1.msra.mxu0 0.0
        %2468 = vmatprep.subr.mxu0 0.0
        %2469 = vmatpush1.msra.mxu0 0.0
        %2470 = vmatprep.subr.mxu0 0.0
        %2471 = vmatpush1.msra.mxu0 0.0
        %2472 = vmatprep.subr.mxu0 0.0
        %2473 = vmatpush1.msra.mxu0 0.0
        %2474 = vmatprep.subr.mxu0 0.0
        %2475 = vmatpush1.msra.mxu0 0.0
        %2476 = vmatprep.subr.mxu0 0.0
        %2477 = vmatpush1.msra.mxu0 0.0
        %2478 = vmatprep.subr.mxu0 0.0
        %2479 = vmatpush1.msra.mxu0 0.0
        %2480 = vmatprep.subr.mxu0 0.0
        %2481 = vmatpush1.msra.mxu0 0.0
        %2482 = vmatprep.subr.mxu0 0.0
        %2483 = vmatpush1.msra.mxu0 0.0
        %2484 = vmatprep.subr.mxu0 0.0
        %2485 = vmatpush1.msra.mxu0 0.0
        %2486 = vmatprep.subr.mxu0 0.0
        %2487 = vmatpush1.msra.mxu0 0.0
        %2488 = vmatprep.subr.mxu0 0.0
        %2489 = vmatpush1.msra.mxu0 0.0
        %2490 = vmatprep.subr.mxu0 0.0
        %2491 = vmatpush1.msra.mxu0 0.0
        %2492 = vmatprep.mubr.f32.mxu0 0.0
        %2493 = vmatmul.mubr.f32.gmra.mrb[0].mxu0 %v2133
        %v2494 = vpop.f32.mrb[0].mxu0
        %v2495 = vadd.f32 %v2144, %v2494
        %v2496 = vpop.f32.mrb[0].mxu0
        %v2497 = vadd.f32 %v2144, %v2496
        %2498 = vmatprep.mubr.f32.mxu0 0.0
        %2499 = vmatmul.mubr.f32.gmra.mrb[0].mxu0 %v2134
        %v2500 = vpop.f32.mrb[0].mxu0
        %v2501 = vadd.f32 %v2149, %v2500
        %v2502 = vpop.f32.mrb[0].mxu0
        %v2503 = vadd.f32 %v2149, %v2502
        %2504 = vmatprep.mubr.f32.mxu0 0.0
        %2505 = vmatmul.mubr.f32.gmra.mrb[0].mxu0 %v2135
        %v2506 = vpop.f32.mrb[0].mxu0
        %v2507 = vadd.f32 %v2154, %v2506
        %v2508 = vpop.f32.mrb[0].mxu0
        %v2509 = vadd.f32 %v2154, %v2508
        %2510 = vmatprep.mubr.f32.mxu0 0.0
        %2511 = vmatmul.mubr.f32.gmra.mrb[0].mxu0 %v2136
        %v2512 = vpop.f32.mrb[0].mxu0
        %v2513 = vadd.f32 %v2159, %v2512
        %v2514 = vpop.f32.mrb[0].mxu0
        %v2515 = vadd.f32 %v2159, %v2514
        %2516 = vdwg.mxu0
        %v2517 = vmax.f32 %v2228, 0.0
        %v2518 = vmax.f32 %v2230, 0.0
        %v2519 = vmax.f32 %v2317, 0.0
        %v2520 = vmax.f32 %v2319, 0.0
        %v2521 = vmax.f32 %v2406, 0.0
        %v2522 = vmax.f32 %v2408, 0.0
        %v2523 = vmax.f32 %v2495, 0.0
        %v2524 = vmax.f32 %v2497, 0.0
        %v2525 = vmax.f32 %v2234, 0.0
        %v2526 = vmax.f32 %v2236, 0.0
        %v2527 = vmax.f32 %v2323, 0.0
        %v2528 = vmax.f32 %v2325, 0.0
        %v2529 = vmax.f32 %v2412, 0.0
        %v2530 = vmax.f32 %v2414, 0.0
        %v2531 = vmax.f32 %v2501, 0.0
        %v2532 = vmax.f32 %v2503, 0.0
        %v2533 = vmax.f32 %v2240, 0.0
        %v2534 = vmax.f32 %v2242, 0.0
        %v2535 = vmax.f32 %v2329, 0.0
        %v2536 = vmax.f32 %v2331, 0.0
        %v2537 = vmax.f32 %v2418, 0.0
        %v2538 = vmax.f32 %v2420, 0.0
        %v2539 = vmax.f32 %v2507, 0.0
        %v2540 = vmax.f32 %v2509, 0.0
        %v2541 = vmax.f32 %v2246, 0.0
        %v2542 = vmax.f32 %v2248, 0.0
        %v2543 = vmax.f32 %v2335, 0.0
        %v2544 = vmax.f32 %v2337, 0.0
        %v2545 = vmax.f32 %v2424, 0.0
        %v2546 = vmax.f32 %v2426, 0.0
        %v2547 = vmax.f32 %v2513, 0.0
        %v2548 = vmax.f32 %v2515, 0.0
        %v2549 = vmax.f32 %v2517, %v2525
        %v2550 = vmax.f32 %v2549, %v2533
        %v2551 = vmax.f32 %v2550, %v2541
        %v2552 = vrot.slane %v2551, 4
        %v2553 = vmax.f32 %v2551, %v2552
        %v2554 = vrot.slane %v2553, 2
        %v2555 = vmax.f32 %v2553, %v2554
        %v2556 = vrot.slane %v2555, 1
        %v2557 = vmax.f32 %v2555, %v2556
        %v2558 = vmax.f32 %v2518, %v2526
        %v2559 = vmax.f32 %v2558, %v2534
        %v2560 = vmax.f32 %v2559, %v2542
        %v2561 = vrot.slane %v2560, 4
        %v2562 = vmax.f32 %v2560, %v2561
        %v2563 = vrot.slane %v2562, 2
        %v2564 = vmax.f32 %v2562, %v2563
        %v2565 = vrot.slane %v2564, 1
        %v2566 = vmax.f32 %v2564, %v2565
        %v2567 = vmax.f32 %v2519, %v2527
        %v2568 = vmax.f32 %v2567, %v2535
        %v2569 = vmax.f32 %v2568, %v2543
        %v2570 = vrot.slane %v2569, 4
        %v2571 = vmax.f32 %v2569, %v2570
        %v2572 = vrot.slane %v2571, 2
        %v2573 = vmax.f32 %v2571, %v2572
        %v2574 = vrot.slane %v2573, 1
        %v2575 = vmax.f32 %v2573, %v2574
        %v2576 = vmax.f32 %v2520, %v2528
        %v2577 = vmax.f32 %v2576, %v2536
        %v2578 = vmax.f32 %v2577, %v2544
        %v2579 = vrot.slane %v2578, 4
        %v2580 = vmax.f32 %v2578, %v2579
        %v2581 = vrot.slane %v2580, 2
        %v2582 = vmax.f32 %v2580, %v2581
        %v2583 = vrot.slane %v2582, 1
        %v2584 = vmax.f32 %v2582, %v2583
        %v2585 = vmax.f32 %v2521, %v2529
        %v2586 = vmax.f32 %v2585, %v2537
        %v2587 = vmax.f32 %v2586, %v2545
        %v2588 = vrot.slane %v2587, 4
        %v2589 = vmax.f32 %v2587, %v2588
        %v2590 = vrot.slane %v2589, 2
        %v2591 = vmax.f32 %v2589, %v2590
        %v2592 = vrot.slane %v2591, 1
        %v2593 = vmax.f32 %v2591, %v2592
        %v2594 = vmax.f32 %v2522, %v2530
        %v2595 = vmax.f32 %v2594, %v2538
        %v2596 = vmax.f32 %v2595, %v2546
        %v2597 = vrot.slane %v2596, 4
        %v2598 = vmax.f32 %v2596, %v2597
        %v2599 = vrot.slane %v2598, 2
        %v2600 = vmax.f32 %v2598, %v2599
        %v2601 = vrot.slane %v2600, 1
        %v2602 = vmax.f32 %v2600, %v2601
        %v2603 = vmax.f32 %v2523, %v2531
        %v2604 = vmax.f32 %v2603, %v2539
        %v2605 = vmax.f32 %v2604, %v2547
        %v2606 = vrot.slane %v2605, 4
        %v2607 = vmax.f32 %v2605, %v2606
        %v2608 = vrot.slane %v2607, 2
        %v2609 = vmax.f32 %v2607, %v2608
        %v2610 = vrot.slane %v2609, 1
        %v2611 = vmax.f32 %v2609, %v2610
        %v2612 = vmax.f32 %v2524, %v2532
        %v2613 = vmax.f32 %v2612, %v2540
        %v2614 = vmax.f32 %v2613, %v2548
        %v2615 = vrot.slane %v2614, 4
        %v2616 = vmax.f32 %v2614, %v2615
        %v2617 = vrot.slane %v2616, 2
        %v2618 = vmax.f32 %v2616, %v2617
        %v2619 = vrot.slane %v2618, 1
        %v2620 = vmax.f32 %v2618, %v2619
        %v2621 = vld [vmem:[%s403] sm:$0xff]
        %v2622 = vld [vmem:[%s403 + $0x8] sm:$0xff]
        %v2623 = vld [vmem:[%s403 + $0x10] sm:$0xff]
        %v2624 = vld [vmem:[%s403 + $0x18] sm:$0xff]
        %v2625 = vld [vmem:[%s403 + $0x20] sm:$0xff]
        %v2626 = vld [vmem:[%s403 + $0x28] sm:$0xff]
        %v2627 = vld [vmem:[%s403 + $0x30] sm:$0xff]
        %v2628 = vld [vmem:[%s403 + $0x38] sm:$0xff]
        %v2629 = vld [vmem:[%s403 + $0x40] sm:$0xff]
        %v2630 = vld [vmem:[%s403 + $0x48] sm:$0xff]
        %v2631 = vld [vmem:[%s403 + $0x50] sm:$0xff]
        %v2632 = vld [vmem:[%s403 + $0x58] sm:$0xff]
        %v2633 = vld [vmem:[%s403 + $0x60] sm:$0xff]
        %v2634 = vld [vmem:[%s403 + $0x68] sm:$0xff]
        %v2635 = vld [vmem:[%s403 + $0x70] sm:$0xff]
        %v2636 = vld [vmem:[%s403 + $0x78] sm:$0xff]
        %v2637 = vld [vmem:[%s403 + $0x80] sm:$0xff]
        %v2638 = vld [vmem:[%s403 + $0x88] sm:$0xff]
        %v2639 = vld [vmem:[%s403 + $0x90] sm:$0xff]
        %v2640 = vld [vmem:[%s403 + $0x98] sm:$0xff]
        %v2641 = vld [vmem:[%s403 + $0xa0] sm:$0xff]
        %v2642 = vld [vmem:[%s403 + $0xa8] sm:$0xff]
        %v2643 = vld [vmem:[%s403 + $0xb0] sm:$0xff]
        %v2644 = vld [vmem:[%s403 + $0xb8] sm:$0xff]
        %v2645 = vld [vmem:[%s403 + $0xc0] sm:$0xff]
        %v2646 = vld [vmem:[%s403 + $0xc8] sm:$0xff]
        %v2647 = vld [vmem:[%s403 + $0xd0] sm:$0xff]
        %v2648 = vld [vmem:[%s403 + $0xd8] sm:$0xff]
        %v2649 = vld [vmem:[%s403 + $0xe0] sm:$0xff]
        %v2650 = vld [vmem:[%s403 + $0xe8] sm:$0xff]
        %v2651 = vld [vmem:[%s403 + $0xf0] sm:$0xff]
        %v2652 = vld [vmem:[%s403 + $0xf8] sm:$0xff]
        %v2653 = vld [vmem:[%s403 + $0x100] sm:$0xff]
        %v2654 = vld [vmem:[%s403 + $0x108] sm:$0xff]
        %v2655 = vld [vmem:[%s403 + $0x110] sm:$0xff]
        %v2656 = vld [vmem:[%s403 + $0x118] sm:$0xff]
        %v2657 = vld [vmem:[%s403 + $0x120] sm:$0xff]
        %v2658 = vld [vmem:[%s403 + $0x128] sm:$0xff]
        %v2659 = vld [vmem:[%s403 + $0x130] sm:$0xff]
        %v2660 = vld [vmem:[%s403 + $0x138] sm:$0xff]
        %v2661 = vld [vmem:[%s403 + $0x140] sm:$0xff]
        %v2662 = vld [vmem:[%s403 + $0x148] sm:$0xff]
        %v2663 = vld [vmem:[%s403 + $0x150] sm:$0xff]
        %v2664 = vld [vmem:[%s403 + $0x158] sm:$0xff]
        %v2665 = vld [vmem:[%s403 + $0x160] sm:$0xff]
        %v2666 = vld [vmem:[%s403 + $0x168] sm:$0xff]
        %v2667 = vld [vmem:[%s403 + $0x170] sm:$0xff]
        %v2668 = vld [vmem:[%s403 + $0x178] sm:$0xff]
        %v2669 = vld [vmem:[%s403 + $0x180] sm:$0xff]
        %v2670 = vld [vmem:[%s403 + $0x188] sm:$0xff]
        %v2671 = vld [vmem:[%s403 + $0x190] sm:$0xff]
        %v2672 = vld [vmem:[%s403 + $0x198] sm:$0xff]
        %v2673 = vld [vmem:[%s403 + $0x1a0] sm:$0xff]
        %v2674 = vld [vmem:[%s403 + $0x1a8] sm:$0xff]
        %v2675 = vld [vmem:[%s403 + $0x1b0] sm:$0xff]
        %v2676 = vld [vmem:[%s403 + $0x1b8] sm:$0xff]
        %v2677 = vld [vmem:[%s403 + $0x1c0] sm:$0xff]
        %v2678 = vld [vmem:[%s403 + $0x1c8] sm:$0xff]
        %v2679 = vld [vmem:[%s403 + $0x1d0] sm:$0xff]
        %v2680 = vld [vmem:[%s403 + $0x1d8] sm:$0xff]
        %v2681 = vld [vmem:[%s403 + $0x1e0] sm:$0xff]
        %v2682 = vld [vmem:[%s403 + $0x1e8] sm:$0xff]
        %v2683 = vld [vmem:[%s403 + $0x1f0] sm:$0xff]
        %v2684 = vld [vmem:[%s403 + $0x1f8] sm:$0xff]
        %v2685 = vld [vmem:[%s403 + $0x200] sm:$0xff]
        %v2686 = vld [vmem:[%s403 + $0x208] sm:$0xff]
        %v2687 = vld [vmem:[%s403 + $0x210] sm:$0xff]
        %v2688 = vld [vmem:[%s403 + $0x218] sm:$0xff]
        %v2689 = vld [vmem:[%s403 + $0x220] sm:$0xff]
        %v2690 = vld [vmem:[%s403 + $0x228] sm:$0xff]
        %v2691 = vld [vmem:[%s403 + $0x230] sm:$0xff]
        %v2692 = vld [vmem:[%s403 + $0x238] sm:$0xff]
        %v2693 = vld [vmem:[%s403 + $0x240] sm:$0xff]
        %v2694 = vld [vmem:[%s403 + $0x248] sm:$0xff]
        %v2695 = vld [vmem:[%s403 + $0x250] sm:$0xff]
        %v2696 = vld [vmem:[%s403 + $0x258] sm:$0xff]
        %v2697 = vld [vmem:[%s403 + $0x260] sm:$0xff]
        %v2698 = vld [vmem:[%s403 + $0x268] sm:$0xff]
        %v2699 = vld [vmem:[%s403 + $0x270] sm:$0xff]
        %v2700 = vld [vmem:[%s403 + $0x278] sm:$0xff]
        %v2701 = vld [vmem:[%s403 + $0x280] sm:$0xff]
        %v2702 = vld [vmem:[%s403 + $0x288] sm:$0xff]
        %v2703 = vld [vmem:[%s403 + $0x290] sm:$0xff]
        %v2704 = vld [vmem:[%s403 + $0x298] sm:$0xff]
        %v2705 = vld [vmem:[%s403 + $0x2a0] sm:$0xff]
        %v2706 = vld [vmem:[%s403 + $0x2a8] sm:$0xff]
        %v2707 = vld [vmem:[%s403 + $0x2b0] sm:$0xff]
        %v2708 = vld [vmem:[%s403 + $0x2b8] sm:$0xff]
        %v2709 = vld [vmem:[%s403 + $0x2c0] sm:$0xff]
        %v2710 = vld [vmem:[%s403 + $0x2c8] sm:$0xff]
        %v2711 = vld [vmem:[%s403 + $0x2d0] sm:$0xff]
        %v2712 = vld [vmem:[%s403 + $0x2d8] sm:$0xff]
        %v2713 = vld [vmem:[%s403 + $0x2e0] sm:$0xff]
        %v2714 = vld [vmem:[%s403 + $0x2e8] sm:$0xff]
        %v2715 = vld [vmem:[%s403 + $0x2f0] sm:$0xff]
        %v2716 = vld [vmem:[%s403 + $0x2f8] sm:$0xff]
        %v2717 = vld [vmem:[%s403 + $0x300] sm:$0xff]
        %v2718 = vld [vmem:[%s403 + $0x308] sm:$0xff]
        %v2719 = vld [vmem:[%s403 + $0x310] sm:$0xff]
        %v2720 = vld [vmem:[%s403 + $0x318] sm:$0xff]
        %v2721 = vld [vmem:[%s403 + $0x320] sm:$0xff]
        %v2722 = vld [vmem:[%s403 + $0x328] sm:$0xff]
        %v2723 = vld [vmem:[%s403 + $0x330] sm:$0xff]
        %v2724 = vld [vmem:[%s403 + $0x338] sm:$0xff]
        %v2725 = vld [vmem:[%s403 + $0x340] sm:$0xff]
        %v2726 = vld [vmem:[%s403 + $0x348] sm:$0xff]
        %v2727 = vld [vmem:[%s403 + $0x350] sm:$0xff]
        %v2728 = vld [vmem:[%s403 + $0x358] sm:$0xff]
        %v2729 = vld [vmem:[%s403 + $0x360] sm:$0xff]
        %v2730 = vld [vmem:[%s403 + $0x368] sm:$0xff]
        %v2731 = vld [vmem:[%s403 + $0x370] sm:$0xff]
        %v2732 = vld [vmem:[%s403 + $0x378] sm:$0xff]
        %v2733 = vld [vmem:[%s403 + $0x380] sm:$0xff]
        %v2734 = vld [vmem:[%s403 + $0x388] sm:$0xff]
        %v2735 = vld [vmem:[%s403 + $0x390] sm:$0xff]
        %v2736 = vld [vmem:[%s403 + $0x398] sm:$0xff]
        %v2737 = vld [vmem:[%s403 + $0x3a0] sm:$0xff]
        %v2738 = vld [vmem:[%s403 + $0x3a8] sm:$0xff]
        %v2739 = vld [vmem:[%s403 + $0x3b0] sm:$0xff]
        %v2740 = vld [vmem:[%s403 + $0x3b8] sm:$0xff]
        %v2741 = vld [vmem:[%s403 + $0x3c0] sm:$0xff]
        %v2742 = vld [vmem:[%s403 + $0x3c8] sm:$0xff]
        %v2743 = vld [vmem:[%s403 + $0x3d0] sm:$0xff]
        %v2744 = vld [vmem:[%s403 + $0x3d8] sm:$0xff]
        %v2745 = vld [vmem:[%s403 + $0x3e0] sm:$0xff]
        %v2746 = vld [vmem:[%s403 + $0x3e8] sm:$0xff]
        %v2747 = vld [vmem:[%s403 + $0x3f0] sm:$0xff]
        %v2748 = vld [vmem:[%s403 + $0x3f8] sm:$0xff]
        %v2749 = vld [vmem:[%s403 + $0x400] sm:$0xff]
        %v2750 = vld [vmem:[%s403 + $0x408] sm:$0xff]
        %v2751 = vld [vmem:[%s403 + $0x410] sm:$0xff]
        %v2752 = vld [vmem:[%s403 + $0x418] sm:$0xff]
        %v2753 = vld [vmem:[%s403 + $0x420] sm:$0xff]
        %v2754 = vld [vmem:[%s403 + $0x428] sm:$0xff]
        %v2755 = vld [vmem:[%s403 + $0x430] sm:$0xff]
        %v2756 = vld [vmem:[%s403 + $0x438] sm:$0xff]
        %v2757 = vld [vmem:[%s403 + $0x440] sm:$0xff]
        %v2758 = vld [vmem:[%s403 + $0x448] sm:$0xff]
        %v2759 = vld [vmem:[%s403 + $0x450] sm:$0xff]
        %v2760 = vld [vmem:[%s403 + $0x458] sm:$0xff]
        %v2761 = vld [vmem:[%s403 + $0x460] sm:$0xff]
        %v2762 = vld [vmem:[%s403 + $0x468] sm:$0xff]
        %v2763 = vld [vmem:[%s403 + $0x470] sm:$0xff]
        %v2764 = vld [vmem:[%s403 + $0x478] sm:$0xff]
        %v2765 = vld [vmem:[%s403 + $0x480] sm:$0xff]
        %v2766 = vld [vmem:[%s403 + $0x488] sm:$0xff]
        %v2767 = vld [vmem:[%s403 + $0x490] sm:$0xff]
        %v2768 = vld [vmem:[%s403 + $0x498] sm:$0xff]
        %v2769 = vld [vmem:[%s403 + $0x4a0] sm:$0xff]
        %v2770 = vld [vmem:[%s403 + $0x4a8] sm:$0xff]
        %v2771 = vld [vmem:[%s403 + $0x4b0] sm:$0xff]
        %v2772 = vld [vmem:[%s403 + $0x4b8] sm:$0xff]
        %v2773 = vld [vmem:[%s403 + $0x4c0] sm:$0xff]
        %v2774 = vld [vmem:[%s403 + $0x4c8] sm:$0xff]
        %v2775 = vld [vmem:[%s403 + $0x4d0] sm:$0xff]
        %v2776 = vld [vmem:[%s403 + $0x4d8] sm:$0xff]
        %v2777 = vld [vmem:[%s403 + $0x4e0] sm:$0xff]
        %v2778 = vld [vmem:[%s403 + $0x4e8] sm:$0xff]
        %v2779 = vld [vmem:[%s403 + $0x4f0] sm:$0xff]
        %v2780 = vld [vmem:[%s403 + $0x4f8] sm:$0xff]
        %v2781 = vld [vmem:[%s403 + $0x500] sm:$0xff]
        %v2782 = vld [vmem:[%s403 + $0x508] sm:$0xff]
        %v2783 = vld [vmem:[%s403 + $0x510] sm:$0xff]
        %v2784 = vld [vmem:[%s403 + $0x518] sm:$0xff]
        %v2785 = vld [vmem:[%s403 + $0x520] sm:$0xff]
        %v2786 = vld [vmem:[%s403 + $0x528] sm:$0xff]
        %v2787 = vld [vmem:[%s403 + $0x530] sm:$0xff]
        %v2788 = vld [vmem:[%s403 + $0x538] sm:$0xff]
        %v2789 = vld [vmem:[%s403 + $0x540] sm:$0xff]
        %v2790 = vld [vmem:[%s403 + $0x548] sm:$0xff]
        %v2791 = vld [vmem:[%s403 + $0x550] sm:$0xff]
        %v2792 = vld [vmem:[%s403 + $0x558] sm:$0xff]
        %v2793 = vld [vmem:[%s403 + $0x560] sm:$0xff]
        %v2794 = vld [vmem:[%s403 + $0x568] sm:$0xff]
        %v2795 = vld [vmem:[%s403 + $0x570] sm:$0xff]
        %v2796 = vld [vmem:[%s403 + $0x578] sm:$0xff]
        %v2797 = vld [vmem:[%s403 + $0x580] sm:$0xff]
        %v2798 = vld [vmem:[%s403 + $0x588] sm:$0xff]
        %v2799 = vld [vmem:[%s403 + $0x590] sm:$0xff]
        %v2800 = vld [vmem:[%s403 + $0x598] sm:$0xff]
        %v2801 = vld [vmem:[%s403 + $0x5a0] sm:$0xff]
        %v2802 = vld [vmem:[%s403 + $0x5a8] sm:$0xff]
        %v2803 = vld [vmem:[%s403 + $0x5b0] sm:$0xff]
        %v2804 = vld [vmem:[%s403 + $0x5b8] sm:$0xff]
        %v2805 = vld [vmem:[%s403 + $0x5c0] sm:$0xff]
        %v2806 = vld [vmem:[%s403 + $0x5c8] sm:$0xff]
        %v2807 = vld [vmem:[%s403 + $0x5d0] sm:$0xff]
        %v2808 = vld [vmem:[%s403 + $0x5d8] sm:$0xff]
        %v2809 = vld [vmem:[%s403 + $0x5e0] sm:$0xff]
        %v2810 = vld [vmem:[%s403 + $0x5e8] sm:$0xff]
        %v2811 = vld [vmem:[%s403 + $0x5f0] sm:$0xff]
        %v2812 = vld [vmem:[%s403 + $0x5f8] sm:$0xff]
        %v2813 = vld [vmem:[%s403 + $0x600] sm:$0xff]
        %v2814 = vld [vmem:[%s403 + $0x608] sm:$0xff]
        %v2815 = vld [vmem:[%s403 + $0x610] sm:$0xff]
        %v2816 = vld [vmem:[%s403 + $0x618] sm:$0xff]
        %v2817 = vld [vmem:[%s403 + $0x620] sm:$0xff]
        %v2818 = vld [vmem:[%s403 + $0x628] sm:$0xff]
        %v2819 = vld [vmem:[%s403 + $0x630] sm:$0xff]
        %v2820 = vld [vmem:[%s403 + $0x638] sm:$0xff]
        %v2821 = vld [vmem:[%s403 + $0x640] sm:$0xff]
        %v2822 = vld [vmem:[%s403 + $0x648] sm:$0xff]
        %v2823 = vld [vmem:[%s403 + $0x650] sm:$0xff]
        %v2824 = vld [vmem:[%s403 + $0x658] sm:$0xff]
        %v2825 = vld [vmem:[%s403 + $0x660] sm:$0xff]
        %v2826 = vld [vmem:[%s403 + $0x668] sm:$0xff]
        %v2827 = vld [vmem:[%s403 + $0x670] sm:$0xff]
        %v2828 = vld [vmem:[%s403 + $0x678] sm:$0xff]
        %v2829 = vld [vmem:[%s403 + $0x680] sm:$0xff]
        %v2830 = vld [vmem:[%s403 + $0x688] sm:$0xff]
        %v2831 = vld [vmem:[%s403 + $0x690] sm:$0xff]
        %v2832 = vld [vmem:[%s403 + $0x698] sm:$0xff]
        %v2833 = vld [vmem:[%s403 + $0x6a0] sm:$0xff]
        %v2834 = vld [vmem:[%s403 + $0x6a8] sm:$0xff]
        %v2835 = vld [vmem:[%s403 + $0x6b0] sm:$0xff]
        %v2836 = vld [vmem:[%s403 + $0x6b8] sm:$0xff]
        %v2837 = vld [vmem:[%s403 + $0x6c0] sm:$0xff]
        %v2838 = vld [vmem:[%s403 + $0x6c8] sm:$0xff]
        %v2839 = vld [vmem:[%s403 + $0x6d0] sm:$0xff]
        %v2840 = vld [vmem:[%s403 + $0x6d8] sm:$0xff]
        %v2841 = vld [vmem:[%s403 + $0x6e0] sm:$0xff]
        %v2842 = vld [vmem:[%s403 + $0x6e8] sm:$0xff]
        %v2843 = vld [vmem:[%s403 + $0x6f0] sm:$0xff]
        %v2844 = vld [vmem:[%s403 + $0x6f8] sm:$0xff]
        %v2845 = vld [vmem:[%s403 + $0x700] sm:$0xff]
        %v2846 = vld [vmem:[%s403 + $0x708] sm:$0xff]
        %v2847 = vld [vmem:[%s403 + $0x710] sm:$0xff]
        %v2848 = vld [vmem:[%s403 + $0x718] sm:$0xff]
        %v2849 = vld [vmem:[%s403 + $0x720] sm:$0xff]
        %v2850 = vld [vmem:[%s403 + $0x728] sm:$0xff]
        %v2851 = vld [vmem:[%s403 + $0x730] sm:$0xff]
        %v2852 = vld [vmem:[%s403 + $0x738] sm:$0xff]
        %v2853 = vld [vmem:[%s403 + $0x740] sm:$0xff]
        %v2854 = vld [vmem:[%s403 + $0x748] sm:$0xff]
        %v2855 = vld [vmem:[%s403 + $0x750] sm:$0xff]
        %v2856 = vld [vmem:[%s403 + $0x758] sm:$0xff]
        %v2857 = vld [vmem:[%s403 + $0x760] sm:$0xff]
        %v2858 = vld [vmem:[%s403 + $0x768] sm:$0xff]
        %v2859 = vld [vmem:[%s403 + $0x770] sm:$0xff]
        %v2860 = vld [vmem:[%s403 + $0x778] sm:$0xff]
        %v2861 = vld [vmem:[%s403 + $0x780] sm:$0xff]
        %v2862 = vld [vmem:[%s403 + $0x788] sm:$0xff]
        %v2863 = vld [vmem:[%s403 + $0x790] sm:$0xff]
        %v2864 = vld [vmem:[%s403 + $0x798] sm:$0xff]
        %v2865 = vld [vmem:[%s403 + $0x7a0] sm:$0xff]
        %v2866 = vld [vmem:[%s403 + $0x7a8] sm:$0xff]
        %v2867 = vld [vmem:[%s403 + $0x7b0] sm:$0xff]
        %v2868 = vld [vmem:[%s403 + $0x7b8] sm:$0xff]
        %v2869 = vld [vmem:[%s403 + $0x7c0] sm:$0xff]
        %v2870 = vld [vmem:[%s403 + $0x7c8] sm:$0xff]
        %v2871 = vld [vmem:[%s403 + $0x7d0] sm:$0xff]
        %v2872 = vld [vmem:[%s403 + $0x7d8] sm:$0xff]
        %v2873 = vld [vmem:[%s403 + $0x7e0] sm:$0xff]
        %v2874 = vld [vmem:[%s403 + $0x7e8] sm:$0xff]
        %v2875 = vld [vmem:[%s403 + $0x7f0] sm:$0xff]
        %v2876 = vld [vmem:[%s403 + $0x7f8] sm:$0xff]
        %v2877 = vld [vmem:[%s403 + $0x800] sm:$0xff]
        %v2878 = vld [vmem:[%s403 + $0x808] sm:$0xff]
        %v2879 = vld [vmem:[%s403 + $0x810] sm:$0xff]
        %v2880 = vld [vmem:[%s403 + $0x818] sm:$0xff]
        %v2881 = vld [vmem:[%s403 + $0x820] sm:$0xff]
        %v2882 = vld [vmem:[%s403 + $0x828] sm:$0xff]
        %v2883 = vld [vmem:[%s403 + $0x830] sm:$0xff]
        %v2884 = vld [vmem:[%s403 + $0x838] sm:$0xff]
        %v2885 = vld [vmem:[%s403 + $0x840] sm:$0xff]
        %v2886 = vld [vmem:[%s403 + $0x848] sm:$0xff]
        %v2887 = vld [vmem:[%s403 + $0x850] sm:$0xff]
        %v2888 = vld [vmem:[%s403 + $0x858] sm:$0xff]
        %v2889 = vld [vmem:[%s403 + $0x860] sm:$0xff]
        %v2890 = vld [vmem:[%s403 + $0x868] sm:$0xff]
        %v2891 = vld [vmem:[%s403 + $0x870] sm:$0xff]
        %v2892 = vld [vmem:[%s403 + $0x878] sm:$0xff]
        %v2893 = vld [vmem:[%s403 + $0x880] sm:$0xff]
        %v2894 = vld [vmem:[%s403 + $0x888] sm:$0xff]
        %v2895 = vld [vmem:[%s403 + $0x890] sm:$0xff]
        %v2896 = vld [vmem:[%s403 + $0x898] sm:$0xff]
        %v2897 = vld [vmem:[%s403 + $0x8a0] sm:$0xff]
        %v2898 = vld [vmem:[%s403 + $0x8a8] sm:$0xff]
        %v2899 = vld [vmem:[%s403 + $0x8b0] sm:$0xff]
        %v2900 = vld [vmem:[%s403 + $0x8b8] sm:$0xff]
        %v2901 = vld [vmem:[%s403 + $0x8c0] sm:$0xff]
        %v2902 = vld [vmem:[%s403 + $0x8c8] sm:$0xff]
        %v2903 = vld [vmem:[%s403 + $0x8d0] sm:$0xff]
        %v2904 = vld [vmem:[%s403 + $0x8d8] sm:$0xff]
        %v2905 = vld [vmem:[%s403 + $0x8e0] sm:$0xff]
        %v2906 = vld [vmem:[%s403 + $0x8e8] sm:$0xff]
        %v2907 = vld [vmem:[%s403 + $0x8f0] sm:$0xff]
        %v2908 = vld [vmem:[%s403 + $0x8f8] sm:$0xff]
        %v2909 = vld [vmem:[%s403 + $0x900] sm:$0xff]
        %v2910 = vld [vmem:[%s403 + $0x908] sm:$0xff]
        %v2911 = vld [vmem:[%s403 + $0x910] sm:$0xff]
        %v2912 = vld [vmem:[%s403 + $0x918] sm:$0xff]
        %v2913 = vld [vmem:[%s403 + $0x920] sm:$0xff]
        %v2914 = vld [vmem:[%s403 + $0x928] sm:$0xff]
        %v2915 = vld [vmem:[%s403 + $0x930] sm:$0xff]
        %v2916 = vld [vmem:[%s403 + $0x938] sm:$0xff]
        %v2917 = vld [vmem:[%s403 + $0x940] sm:$0xff]
        %v2918 = vld [vmem:[%s403 + $0x948] sm:$0xff]
        %v2919 = vld [vmem:[%s403 + $0x950] sm:$0xff]
        %v2920 = vld [vmem:[%s403 + $0x958] sm:$0xff]
        %v2921 = vld [vmem:[%s403 + $0x960] sm:$0xff]
        %v2922 = vld [vmem:[%s403 + $0x968] sm:$0xff]
        %v2923 = vld [vmem:[%s403 + $0x970] sm:$0xff]
        %v2924 = vld [vmem:[%s403 + $0x978] sm:$0xff]
        %v2925 = vld [vmem:[%s403 + $0x980] sm:$0xff]
        %v2926 = vld [vmem:[%s403 + $0x988] sm:$0xff]
        %v2927 = vld [vmem:[%s403 + $0x990] sm:$0xff]
        %v2928 = vld [vmem:[%s403 + $0x998] sm:$0xff]
        %v2929 = vld [vmem:[%s403 + $0x9a0] sm:$0xff]
        %v2930 = vld [vmem:[%s403 + $0x9a8] sm:$0xff]
        %v2931 = vld [vmem:[%s403 + $0x9b0] sm:$0xff]
        %v2932 = vld [vmem:[%s403 + $0x9b8] sm:$0xff]
        %v2933 = vld [vmem:[%s403 + $0x9c0] sm:$0xff]
        %v2934 = vld [vmem:[%s403 + $0x9c8] sm:$0xff]
        %v2935 = vld [vmem:[%s403 + $0x9d0] sm:$0xff]
        %v2936 = vld [vmem:[%s403 + $0x9d8] sm:$0xff]
        %v2937 = vld [vmem:[%s403 + $0x9e0] sm:$0xff]
        %v2938 = vld [vmem:[%s403 + $0x9e8] sm:$0xff]
        %v2939 = vld [vmem:[%s403 + $0x9f0] sm:$0xff]
        %v2940 = vld [vmem:[%s403 + $0x9f8] sm:$0xff]
        %v2941 = vld [vmem:[%s403 + $0xa00] sm:$0xff]
        %v2942 = vld [vmem:[%s403 + $0xa08] sm:$0xff]
        %v2943 = vld [vmem:[%s403 + $0xa10] sm:$0xff]
        %v2944 = vld [vmem:[%s403 + $0xa18] sm:$0xff]
        %v2945 = vld [vmem:[%s403 + $0xa20] sm:$0xff]
        %v2946 = vld [vmem:[%s403 + $0xa28] sm:$0xff]
        %v2947 = vld [vmem:[%s403 + $0xa30] sm:$0xff]
        %v2948 = vld [vmem:[%s403 + $0xa38] sm:$0xff]
        %v2949 = vld [vmem:[%s403 + $0xa40] sm:$0xff]
        %v2950 = vld [vmem:[%s403 + $0xa48] sm:$0xff]
        %v2951 = vld [vmem:[%s403 + $0xa50] sm:$0xff]
        %v2952 = vld [vmem:[%s403 + $0xa58] sm:$0xff]
        %v2953 = vld [vmem:[%s403 + $0xa60] sm:$0xff]
        %v2954 = vld [vmem:[%s403 + $0xa68] sm:$0xff]
        %v2955 = vld [vmem:[%s403 + $0xa70] sm:$0xff]
        %v2956 = vld [vmem:[%s403 + $0xa78] sm:$0xff]
        %v2957 = vld [vmem:[%s403 + $0xa80] sm:$0xff]
        %v2958 = vld [vmem:[%s403 + $0xa88] sm:$0xff]
        %v2959 = vld [vmem:[%s403 + $0xa90] sm:$0xff]
        %v2960 = vld [vmem:[%s403 + $0xa98] sm:$0xff]
        %v2961 = vld [vmem:[%s403 + $0xaa0] sm:$0xff]
        %v2962 = vld [vmem:[%s403 + $0xaa8] sm:$0xff]
        %v2963 = vld [vmem:[%s403 + $0xab0] sm:$0xff]
        %v2964 = vld [vmem:[%s403 + $0xab8] sm:$0xff]
        %v2965 = vld [vmem:[%s403 + $0xac0] sm:$0xff]
        %v2966 = vld [vmem:[%s403 + $0xac8] sm:$0xff]
        %v2967 = vld [vmem:[%s403 + $0xad0] sm:$0xff]
        %v2968 = vld [vmem:[%s403 + $0xad8] sm:$0xff]
        %v2969 = vld [vmem:[%s403 + $0xae0] sm:$0xff]
        %v2970 = vld [vmem:[%s403 + $0xae8] sm:$0xff]
        %v2971 = vld [vmem:[%s403 + $0xaf0] sm:$0xff]
        %v2972 = vld [vmem:[%s403 + $0xaf8] sm:$0xff]
        %v2973 = vld [vmem:[%s403 + $0xb00] sm:$0xff]
        %v2974 = vld [vmem:[%s403 + $0xb08] sm:$0xff]
        %v2975 = vld [vmem:[%s403 + $0xb10] sm:$0xff]
        %v2976 = vld [vmem:[%s403 + $0xb18] sm:$0xff]
        %v2977 = vld [vmem:[%s403 + $0xb20] sm:$0xff]
        %v2978 = vld [vmem:[%s403 + $0xb28] sm:$0xff]
        %v2979 = vld [vmem:[%s403 + $0xb30] sm:$0xff]
        %v2980 = vld [vmem:[%s403 + $0xb38] sm:$0xff]
        %v2981 = vld [vmem:[%s403 + $0xb40] sm:$0xff]
        %v2982 = vld [vmem:[%s403 + $0xb48] sm:$0xff]
        %v2983 = vld [vmem:[%s403 + $0xb50] sm:$0xff]
        %v2984 = vld [vmem:[%s403 + $0xb58] sm:$0xff]
        %v2985 = vld [vmem:[%s403 + $0xb60] sm:$0xff]
        %v2986 = vld [vmem:[%s403 + $0xb68] sm:$0xff]
        %v2987 = vld [vmem:[%s403 + $0xb70] sm:$0xff]
        %v2988 = vld [vmem:[%s403 + $0xb78] sm:$0xff]
        %v2989 = vld [vmem:[%s403 + $0xb80] sm:$0xff]
        %v2990 = vld [vmem:[%s403 + $0xb88] sm:$0xff]
        %v2991 = vld [vmem:[%s403 + $0xb90] sm:$0xff]
        %v2992 = vld [vmem:[%s403 + $0xb98] sm:$0xff]
        %v2993 = vld [vmem:[%s403 + $0xba0] sm:$0xff]
        %v2994 = vld [vmem:[%s403 + $0xba8] sm:$0xff]
        %v2995 = vld [vmem:[%s403 + $0xbb0] sm:$0xff]
        %v2996 = vld [vmem:[%s403 + $0xbb8] sm:$0xff]
        %v2997 = vld [vmem:[%s403 + $0xbc0] sm:$0xff]
        %v2998 = vld [vmem:[%s403 + $0xbc8] sm:$0xff]
        %v2999 = vld [vmem:[%s403 + $0xbd0] sm:$0xff]
        %v3000 = vld [vmem:[%s403 + $0xbd8] sm:$0xff]
        %v3001 = vld [vmem:[%s403 + $0xbe0] sm:$0xff]
        %v3002 = vld [vmem:[%s403 + $0xbe8] sm:$0xff]
        %v3003 = vld [vmem:[%s403 + $0xbf0] sm:$0xff]
        %v3004 = vld [vmem:[%s403 + $0xbf8] sm:$0xff]
        %v3005 = vunpack.c.l.bf16 %v2621
        %v3006 = vunpack.c.h.bf16 %v2621
        %v3007 = vunpack.c.l.bf16 %v2622
        %v3008 = vunpack.c.h.bf16 %v2622
        %v3009 = vunpack.c.l.bf16 %v2623
        %v3010 = vunpack.c.h.bf16 %v2623
        %v3011 = vunpack.c.l.bf16 %v2624
        %v3012 = vunpack.c.h.bf16 %v2624
        %v3013 = vunpack.c.l.bf16 %v2625
        %v3014 = vunpack.c.h.bf16 %v2625
        %v3015 = vunpack.c.l.bf16 %v2626
        %v3016 = vunpack.c.h.bf16 %v2626
        %v3017 = vunpack.c.l.bf16 %v2627
        %v3018 = vunpack.c.h.bf16 %v2627
        %v3019 = vunpack.c.l.bf16 %v2628
        %v3020 = vunpack.c.h.bf16 %v2628
        %v3021 = vunpack.c.l.bf16 %v2629
        %v3022 = vunpack.c.h.bf16 %v2629
        %v3023 = vunpack.c.l.bf16 %v2630
        %v3024 = vunpack.c.h.bf16 %v2630
        %v3025 = vunpack.c.l.bf16 %v2631
        %v3026 = vunpack.c.h.bf16 %v2631
        %v3027 = vunpack.c.l.bf16 %v2632
        %v3028 = vunpack.c.h.bf16 %v2632
        %v3029 = vunpack.c.l.bf16 %v2633
        %v3030 = vunpack.c.h.bf16 %v2633
        %v3031 = vunpack.c.l.bf16 %v2634
        %v3032 = vunpack.c.h.bf16 %v2634
        %v3033 = vunpack.c.l.bf16 %v2635
        %v3034 = vunpack.c.h.bf16 %v2635
        %v3035 = vunpack.c.l.bf16 %v2636
        %v3036 = vunpack.c.h.bf16 %v2636
        %v3037 = vunpack.c.l.bf16 %v2637
        %v3038 = vunpack.c.h.bf16 %v2637
        %v3039 = vunpack.c.l.bf16 %v2638
        %v3040 = vunpack.c.h.bf16 %v2638
        %v3041 = vunpack.c.l.bf16 %v2639
        %v3042 = vunpack.c.h.bf16 %v2639
        %v3043 = vunpack.c.l.bf16 %v2640
        %v3044 = vunpack.c.h.bf16 %v2640
        %v3045 = vunpack.c.l.bf16 %v2641
        %v3046 = vunpack.c.h.bf16 %v2641
        %v3047 = vunpack.c.l.bf16 %v2642
        %v3048 = vunpack.c.h.bf16 %v2642
        %v3049 = vunpack.c.l.bf16 %v2643
        %v3050 = vunpack.c.h.bf16 %v2643
        %v3051 = vunpack.c.l.bf16 %v2644
        %v3052 = vunpack.c.h.bf16 %v2644
        %v3053 = vunpack.c.l.bf16 %v2645
        %v3054 = vunpack.c.h.bf16 %v2645
        %v3055 = vunpack.c.l.bf16 %v2646
        %v3056 = vunpack.c.h.bf16 %v2646
        %v3057 = vunpack.c.l.bf16 %v2647
        %v3058 = vunpack.c.h.bf16 %v2647
        %v3059 = vunpack.c.l.bf16 %v2648
        %v3060 = vunpack.c.h.bf16 %v2648
        %v3061 = vunpack.c.l.bf16 %v2649
        %v3062 = vunpack.c.h.bf16 %v2649
        %v3063 = vunpack.c.l.bf16 %v2650
        %v3064 = vunpack.c.h.bf16 %v2650
        %v3065 = vunpack.c.l.bf16 %v2651
        %v3066 = vunpack.c.h.bf16 %v2651
        %v3067 = vunpack.c.l.bf16 %v2652
        %v3068 = vunpack.c.h.bf16 %v2652
        %v3069 = vunpack.c.l.bf16 %v2653
        %v3070 = vunpack.c.h.bf16 %v2653
        %v3071 = vunpack.c.l.bf16 %v2654
        %v3072 = vunpack.c.h.bf16 %v2654
        %v3073 = vunpack.c.l.bf16 %v2655
        %v3074 = vunpack.c.h.bf16 %v2655
        %v3075 = vunpack.c.l.bf16 %v2656
        %v3076 = vunpack.c.h.bf16 %v2656
        %v3077 = vunpack.c.l.bf16 %v2657
        %v3078 = vunpack.c.h.bf16 %v2657
        %v3079 = vunpack.c.l.bf16 %v2658
        %v3080 = vunpack.c.h.bf16 %v2658
        %v3081 = vunpack.c.l.bf16 %v2659
        %v3082 = vunpack.c.h.bf16 %v2659
        %v3083 = vunpack.c.l.bf16 %v2660
        %v3084 = vunpack.c.h.bf16 %v2660
        %v3085 = vunpack.c.l.bf16 %v2661
        %v3086 = vunpack.c.h.bf16 %v2661
        %v3087 = vunpack.c.l.bf16 %v2662
        %v3088 = vunpack.c.h.bf16 %v2662
        %v3089 = vunpack.c.l.bf16 %v2663
        %v3090 = vunpack.c.h.bf16 %v2663
        %v3091 = vunpack.c.l.bf16 %v2664
        %v3092 = vunpack.c.h.bf16 %v2664
        %v3093 = vunpack.c.l.bf16 %v2665
        %v3094 = vunpack.c.h.bf16 %v2665
        %v3095 = vunpack.c.l.bf16 %v2666
        %v3096 = vunpack.c.h.bf16 %v2666
        %v3097 = vunpack.c.l.bf16 %v2667
        %v3098 = vunpack.c.h.bf16 %v2667
        %v3099 = vunpack.c.l.bf16 %v2668
        %v3100 = vunpack.c.h.bf16 %v2668
        %v3101 = vunpack.c.l.bf16 %v2669
        %v3102 = vunpack.c.h.bf16 %v2669
        %v3103 = vunpack.c.l.bf16 %v2670
        %v3104 = vunpack.c.h.bf16 %v2670
        %v3105 = vunpack.c.l.bf16 %v2671
        %v3106 = vunpack.c.h.bf16 %v2671
        %v3107 = vunpack.c.l.bf16 %v2672
        %v3108 = vunpack.c.h.bf16 %v2672
        %v3109 = vunpack.c.l.bf16 %v2673
        %v3110 = vunpack.c.h.bf16 %v2673
        %v3111 = vunpack.c.l.bf16 %v2674
        %v3112 = vunpack.c.h.bf16 %v2674
        %v3113 = vunpack.c.l.bf16 %v2675
        %v3114 = vunpack.c.h.bf16 %v2675
        %v3115 = vunpack.c.l.bf16 %v2676
        %v3116 = vunpack.c.h.bf16 %v2676
        %v3117 = vunpack.c.l.bf16 %v2677
        %v3118 = vunpack.c.h.bf16 %v2677
        %v3119 = vunpack.c.l.bf16 %v2678
        %v3120 = vunpack.c.h.bf16 %v2678
        %v3121 = vunpack.c.l.bf16 %v2679
        %v3122 = vunpack.c.h.bf16 %v2679
        %v3123 = vunpack.c.l.bf16 %v2680
        %v3124 = vunpack.c.h.bf16 %v2680
        %v3125 = vunpack.c.l.bf16 %v2681
        %v3126 = vunpack.c.h.bf16 %v2681
        %v3127 = vunpack.c.l.bf16 %v2682
        %v3128 = vunpack.c.h.bf16 %v2682
        %v3129 = vunpack.c.l.bf16 %v2683
        %v3130 = vunpack.c.h.bf16 %v2683
        %v3131 = vunpack.c.l.bf16 %v2684
        %v3132 = vunpack.c.h.bf16 %v2684
        %v3133 = vunpack.c.l.bf16 %v2685
        %v3134 = vunpack.c.h.bf16 %v2685
        %v3135 = vunpack.c.l.bf16 %v2686
        %v3136 = vunpack.c.h.bf16 %v2686
        %v3137 = vunpack.c.l.bf16 %v2687
        %v3138 = vunpack.c.h.bf16 %v2687
        %v3139 = vunpack.c.l.bf16 %v2688
        %v3140 = vunpack.c.h.bf16 %v2688
        %v3141 = vunpack.c.l.bf16 %v2689
        %v3142 = vunpack.c.h.bf16 %v2689
        %v3143 = vunpack.c.l.bf16 %v2690
        %v3144 = vunpack.c.h.bf16 %v2690
        %v3145 = vunpack.c.l.bf16 %v2691
        %v3146 = vunpack.c.h.bf16 %v2691
        %v3147 = vunpack.c.l.bf16 %v2692
        %v3148 = vunpack.c.h.bf16 %v2692
        %v3149 = vunpack.c.l.bf16 %v2693
        %v3150 = vunpack.c.h.bf16 %v2693
        %v3151 = vunpack.c.l.bf16 %v2694
        %v3152 = vunpack.c.h.bf16 %v2694
        %v3153 = vunpack.c.l.bf16 %v2695
        %v3154 = vunpack.c.h.bf16 %v2695
        %v3155 = vunpack.c.l.bf16 %v2696
        %v3156 = vunpack.c.h.bf16 %v2696
        %v3157 = vunpack.c.l.bf16 %v2697
        %v3158 = vunpack.c.h.bf16 %v2697
        %v3159 = vunpack.c.l.bf16 %v2698
        %v3160 = vunpack.c.h.bf16 %v2698
        %v3161 = vunpack.c.l.bf16 %v2699
        %v3162 = vunpack.c.h.bf16 %v2699
        %v3163 = vunpack.c.l.bf16 %v2700
        %v3164 = vunpack.c.h.bf16 %v2700
        %v3165 = vunpack.c.l.bf16 %v2701
        %v3166 = vunpack.c.h.bf16 %v2701
        %v3167 = vunpack.c.l.bf16 %v2702
        %v3168 = vunpack.c.h.bf16 %v2702
        %v3169 = vunpack.c.l.bf16 %v2703
        %v3170 = vunpack.c.h.bf16 %v2703
        %v3171 = vunpack.c.l.bf16 %v2704
        %v3172 = vunpack.c.h.bf16 %v2704
        %v3173 = vunpack.c.l.bf16 %v2705
        %v3174 = vunpack.c.h.bf16 %v2705
        %v3175 = vunpack.c.l.bf16 %v2706
        %v3176 = vunpack.c.h.bf16 %v2706
        %v3177 = vunpack.c.l.bf16 %v2707
        %v3178 = vunpack.c.h.bf16 %v2707
        %v3179 = vunpack.c.l.bf16 %v2708
        %v3180 = vunpack.c.h.bf16 %v2708
        %v3181 = vunpack.c.l.bf16 %v2709
        %v3182 = vunpack.c.h.bf16 %v2709
        %v3183 = vunpack.c.l.bf16 %v2710
        %v3184 = vunpack.c.h.bf16 %v2710
        %v3185 = vunpack.c.l.bf16 %v2711
        %v3186 = vunpack.c.h.bf16 %v2711
        %v3187 = vunpack.c.l.bf16 %v2712
        %v3188 = vunpack.c.h.bf16 %v2712
        %v3189 = vunpack.c.l.bf16 %v2713
        %v3190 = vunpack.c.h.bf16 %v2713
        %v3191 = vunpack.c.l.bf16 %v2714
        %v3192 = vunpack.c.h.bf16 %v2714
        %v3193 = vunpack.c.l.bf16 %v2715
        %v3194 = vunpack.c.h.bf16 %v2715
        %v3195 = vunpack.c.l.bf16 %v2716
        %v3196 = vunpack.c.h.bf16 %v2716
        %v3197 = vunpack.c.l.bf16 %v2717
        %v3198 = vunpack.c.h.bf16 %v2717
        %v3199 = vunpack.c.l.bf16 %v2718
        %v3200 = vunpack.c.h.bf16 %v2718
        %v3201 = vunpack.c.l.bf16 %v2719
        %v3202 = vunpack.c.h.bf16 %v2719
        %v3203 = vunpack.c.l.bf16 %v2720
        %v3204 = vunpack.c.h.bf16 %v2720
        %v3205 = vunpack.c.l.bf16 %v2721
        %v3206 = vunpack.c.h.bf16 %v2721
        %v3207 = vunpack.c.l.bf16 %v2722
        %v3208 = vunpack.c.h.bf16 %v2722
        %v3209 = vunpack.c.l.bf16 %v2723
        %v3210 = vunpack.c.h.bf16 %v2723
        %v3211 = vunpack.c.l.bf16 %v2724
        %v3212 = vunpack.c.h.bf16 %v2724
        %v3213 = vunpack.c.l.bf16 %v2725
        %v3214 = vunpack.c.h.bf16 %v2725
        %v3215 = vunpack.c.l.bf16 %v2726
        %v3216 = vunpack.c.h.bf16 %v2726
        %v3217 = vunpack.c.l.bf16 %v2727
        %v3218 = vunpack.c.h.bf16 %v2727
        %v3219 = vunpack.c.l.bf16 %v2728
        %v3220 = vunpack.c.h.bf16 %v2728
        %v3221 = vunpack.c.l.bf16 %v2729
        %v3222 = vunpack.c.h.bf16 %v2729
        %v3223 = vunpack.c.l.bf16 %v2730
        %v3224 = vunpack.c.h.bf16 %v2730
        %v3225 = vunpack.c.l.bf16 %v2731
        %v3226 = vunpack.c.h.bf16 %v2731
        %v3227 = vunpack.c.l.bf16 %v2732
        %v3228 = vunpack.c.h.bf16 %v2732
        %v3229 = vunpack.c.l.bf16 %v2733
        %v3230 = vunpack.c.h.bf16 %v2733
        %v3231 = vunpack.c.l.bf16 %v2734
        %v3232 = vunpack.c.h.bf16 %v2734
        %v3233 = vunpack.c.l.bf16 %v2735
        %v3234 = vunpack.c.h.bf16 %v2735
        %v3235 = vunpack.c.l.bf16 %v2736
        %v3236 = vunpack.c.h.bf16 %v2736
        %v3237 = vunpack.c.l.bf16 %v2737
        %v3238 = vunpack.c.h.bf16 %v2737
        %v3239 = vunpack.c.l.bf16 %v2738
        %v3240 = vunpack.c.h.bf16 %v2738
        %v3241 = vunpack.c.l.bf16 %v2739
        %v3242 = vunpack.c.h.bf16 %v2739
        %v3243 = vunpack.c.l.bf16 %v2740
        %v3244 = vunpack.c.h.bf16 %v2740
        %v3245 = vunpack.c.l.bf16 %v2741
        %v3246 = vunpack.c.h.bf16 %v2741
        %v3247 = vunpack.c.l.bf16 %v2742
        %v3248 = vunpack.c.h.bf16 %v2742
        %v3249 = vunpack.c.l.bf16 %v2743
        %v3250 = vunpack.c.h.bf16 %v2743
        %v3251 = vunpack.c.l.bf16 %v2744
        %v3252 = vunpack.c.h.bf16 %v2744
        %v3253 = vunpack.c.l.bf16 %v2745
        %v3254 = vunpack.c.h.bf16 %v2745
        %v3255 = vunpack.c.l.bf16 %v2746
        %v3256 = vunpack.c.h.bf16 %v2746
        %v3257 = vunpack.c.l.bf16 %v2747
        %v3258 = vunpack.c.h.bf16 %v2747
        %v3259 = vunpack.c.l.bf16 %v2748
        %v3260 = vunpack.c.h.bf16 %v2748
        %v3261 = vunpack.c.l.bf16 %v2749
        %v3262 = vunpack.c.h.bf16 %v2749
        %v3263 = vunpack.c.l.bf16 %v2750
        %v3264 = vunpack.c.h.bf16 %v2750
        %v3265 = vunpack.c.l.bf16 %v2751
        %v3266 = vunpack.c.h.bf16 %v2751
        %v3267 = vunpack.c.l.bf16 %v2752
        %v3268 = vunpack.c.h.bf16 %v2752
        %v3269 = vunpack.c.l.bf16 %v2753
        %v3270 = vunpack.c.h.bf16 %v2753
        %v3271 = vunpack.c.l.bf16 %v2754
        %v3272 = vunpack.c.h.bf16 %v2754
        %v3273 = vunpack.c.l.bf16 %v2755
        %v3274 = vunpack.c.h.bf16 %v2755
        %v3275 = vunpack.c.l.bf16 %v2756
        %v3276 = vunpack.c.h.bf16 %v2756
        %v3277 = vunpack.c.l.bf16 %v2757
        %v3278 = vunpack.c.h.bf16 %v2757
        %v3279 = vunpack.c.l.bf16 %v2758
        %v3280 = vunpack.c.h.bf16 %v2758
        %v3281 = vunpack.c.l.bf16 %v2759
        %v3282 = vunpack.c.h.bf16 %v2759
        %v3283 = vunpack.c.l.bf16 %v2760
        %v3284 = vunpack.c.h.bf16 %v2760
        %v3285 = vunpack.c.l.bf16 %v2761
        %v3286 = vunpack.c.h.bf16 %v2761
        %v3287 = vunpack.c.l.bf16 %v2762
        %v3288 = vunpack.c.h.bf16 %v2762
        %v3289 = vunpack.c.l.bf16 %v2763
        %v3290 = vunpack.c.h.bf16 %v2763
        %v3291 = vunpack.c.l.bf16 %v2764
        %v3292 = vunpack.c.h.bf16 %v2764
        %v3293 = vunpack.c.l.bf16 %v2765
        %v3294 = vunpack.c.h.bf16 %v2765
        %v3295 = vunpack.c.l.bf16 %v2766
        %v3296 = vunpack.c.h.bf16 %v2766
        %v3297 = vunpack.c.l.bf16 %v2767
        %v3298 = vunpack.c.h.bf16 %v2767
        %v3299 = vunpack.c.l.bf16 %v2768
        %v3300 = vunpack.c.h.bf16 %v2768
        %v3301 = vunpack.c.l.bf16 %v2769
        %v3302 = vunpack.c.h.bf16 %v2769
        %v3303 = vunpack.c.l.bf16 %v2770
        %v3304 = vunpack.c.h.bf16 %v2770
        %v3305 = vunpack.c.l.bf16 %v2771
        %v3306 = vunpack.c.h.bf16 %v2771
        %v3307 = vunpack.c.l.bf16 %v2772
        %v3308 = vunpack.c.h.bf16 %v2772
        %v3309 = vunpack.c.l.bf16 %v2773
        %v3310 = vunpack.c.h.bf16 %v2773
        %v3311 = vunpack.c.l.bf16 %v2774
        %v3312 = vunpack.c.h.bf16 %v2774
        %v3313 = vunpack.c.l.bf16 %v2775
        %v3314 = vunpack.c.h.bf16 %v2775
        %v3315 = vunpack.c.l.bf16 %v2776
        %v3316 = vunpack.c.h.bf16 %v2776
        %v3317 = vunpack.c.l.bf16 %v2777
        %v3318 = vunpack.c.h.bf16 %v2777
        %v3319 = vunpack.c.l.bf16 %v2778
        %v3320 = vunpack.c.h.bf16 %v2778
        %v3321 = vunpack.c.l.bf16 %v2779
        %v3322 = vunpack.c.h.bf16 %v2779
        %v3323 = vunpack.c.l.bf16 %v2780
        %v3324 = vunpack.c.h.bf16 %v2780
        %v3325 = vunpack.c.l.bf16 %v2781
        %v3326 = vunpack.c.h.bf16 %v2781
        %v3327 = vunpack.c.l.bf16 %v2782
        %v3328 = vunpack.c.h.bf16 %v2782
        %v3329 = vunpack.c.l.bf16 %v2783
        %v3330 = vunpack.c.h.bf16 %v2783
        %v3331 = vunpack.c.l.bf16 %v2784
        %v3332 = vunpack.c.h.bf16 %v2784
        %v3333 = vunpack.c.l.bf16 %v2785
        %v3334 = vunpack.c.h.bf16 %v2785
        %v3335 = vunpack.c.l.bf16 %v2786
        %v3336 = vunpack.c.h.bf16 %v2786
        %v3337 = vunpack.c.l.bf16 %v2787
        %v3338 = vunpack.c.h.bf16 %v2787
        %v3339 = vunpack.c.l.bf16 %v2788
        %v3340 = vunpack.c.h.bf16 %v2788
        %v3341 = vunpack.c.l.bf16 %v2789
        %v3342 = vunpack.c.h.bf16 %v2789
        %v3343 = vunpack.c.l.bf16 %v2790
        %v3344 = vunpack.c.h.bf16 %v2790
        %v3345 = vunpack.c.l.bf16 %v2791
        %v3346 = vunpack.c.h.bf16 %v2791
        %v3347 = vunpack.c.l.bf16 %v2792
        %v3348 = vunpack.c.h.bf16 %v2792
        %v3349 = vunpack.c.l.bf16 %v2793
        %v3350 = vunpack.c.h.bf16 %v2793
        %v3351 = vunpack.c.l.bf16 %v2794
        %v3352 = vunpack.c.h.bf16 %v2794
        %v3353 = vunpack.c.l.bf16 %v2795
        %v3354 = vunpack.c.h.bf16 %v2795
        %v3355 = vunpack.c.l.bf16 %v2796
        %v3356 = vunpack.c.h.bf16 %v2796
        %v3357 = vunpack.c.l.bf16 %v2797
        %v3358 = vunpack.c.h.bf16 %v2797
        %v3359 = vunpack.c.l.bf16 %v2798
        %v3360 = vunpack.c.h.bf16 %v2798
        %v3361 = vunpack.c.l.bf16 %v2799
        %v3362 = vunpack.c.h.bf16 %v2799
        %v3363 = vunpack.c.l.bf16 %v2800
        %v3364 = vunpack.c.h.bf16 %v2800
        %v3365 = vunpack.c.l.bf16 %v2801
        %v3366 = vunpack.c.h.bf16 %v2801
        %v3367 = vunpack.c.l.bf16 %v2802
        %v3368 = vunpack.c.h.bf16 %v2802
        %v3369 = vunpack.c.l.bf16 %v2803
        %v3370 = vunpack.c.h.bf16 %v2803
        %v3371 = vunpack.c.l.bf16 %v2804
        %v3372 = vunpack.c.h.bf16 %v2804
        %v3373 = vunpack.c.l.bf16 %v2805
        %v3374 = vunpack.c.h.bf16 %v2805
        %v3375 = vunpack.c.l.bf16 %v2806
        %v3376 = vunpack.c.h.bf16 %v2806
        %v3377 = vunpack.c.l.bf16 %v2807
        %v3378 = vunpack.c.h.bf16 %v2807
        %v3379 = vunpack.c.l.bf16 %v2808
        %v3380 = vunpack.c.h.bf16 %v2808
        %v3381 = vunpack.c.l.bf16 %v2809
        %v3382 = vunpack.c.h.bf16 %v2809
        %v3383 = vunpack.c.l.bf16 %v2810
        %v3384 = vunpack.c.h.bf16 %v2810
        %v3385 = vunpack.c.l.bf16 %v2811
        %v3386 = vunpack.c.h.bf16 %v2811
        %v3387 = vunpack.c.l.bf16 %v2812
        %v3388 = vunpack.c.h.bf16 %v2812
        %v3389 = vunpack.c.l.bf16 %v2813
        %v3390 = vunpack.c.h.bf16 %v2813
        %v3391 = vunpack.c.l.bf16 %v2814
        %v3392 = vunpack.c.h.bf16 %v2814
        %v3393 = vunpack.c.l.bf16 %v2815
        %v3394 = vunpack.c.h.bf16 %v2815
        %v3395 = vunpack.c.l.bf16 %v2816
        %v3396 = vunpack.c.h.bf16 %v2816
        %v3397 = vunpack.c.l.bf16 %v2817
        %v3398 = vunpack.c.h.bf16 %v2817
        %v3399 = vunpack.c.l.bf16 %v2818
        %v3400 = vunpack.c.h.bf16 %v2818
        %v3401 = vunpack.c.l.bf16 %v2819
        %v3402 = vunpack.c.h.bf16 %v2819
        %v3403 = vunpack.c.l.bf16 %v2820
        %v3404 = vunpack.c.h.bf16 %v2820
        %v3405 = vunpack.c.l.bf16 %v2821
        %v3406 = vunpack.c.h.bf16 %v2821
        %v3407 = vunpack.c.l.bf16 %v2822
        %v3408 = vunpack.c.h.bf16 %v2822
        %v3409 = vunpack.c.l.bf16 %v2823
        %v3410 = vunpack.c.h.bf16 %v2823
        %v3411 = vunpack.c.l.bf16 %v2824
        %v3412 = vunpack.c.h.bf16 %v2824
        %v3413 = vunpack.c.l.bf16 %v2825
        %v3414 = vunpack.c.h.bf16 %v2825
        %v3415 = vunpack.c.l.bf16 %v2826
        %v3416 = vunpack.c.h.bf16 %v2826
        %v3417 = vunpack.c.l.bf16 %v2827
        %v3418 = vunpack.c.h.bf16 %v2827
        %v3419 = vunpack.c.l.bf16 %v2828
        %v3420 = vunpack.c.h.bf16 %v2828
        %v3421 = vunpack.c.l.bf16 %v2829
        %v3422 = vunpack.c.h.bf16 %v2829
        %v3423 = vunpack.c.l.bf16 %v2830
        %v3424 = vunpack.c.h.bf16 %v2830
        %v3425 = vunpack.c.l.bf16 %v2831
        %v3426 = vunpack.c.h.bf16 %v2831
        %v3427 = vunpack.c.l.bf16 %v2832
        %v3428 = vunpack.c.h.bf16 %v2832
        %v3429 = vunpack.c.l.bf16 %v2833
        %v3430 = vunpack.c.h.bf16 %v2833
        %v3431 = vunpack.c.l.bf16 %v2834
        %v3432 = vunpack.c.h.bf16 %v2834
        %v3433 = vunpack.c.l.bf16 %v2835
        %v3434 = vunpack.c.h.bf16 %v2835
        %v3435 = vunpack.c.l.bf16 %v2836
        %v3436 = vunpack.c.h.bf16 %v2836
        %v3437 = vunpack.c.l.bf16 %v2837
        %v3438 = vunpack.c.h.bf16 %v2837
        %v3439 = vunpack.c.l.bf16 %v2838
        %v3440 = vunpack.c.h.bf16 %v2838
        %v3441 = vunpack.c.l.bf16 %v2839
        %v3442 = vunpack.c.h.bf16 %v2839
        %v3443 = vunpack.c.l.bf16 %v2840
        %v3444 = vunpack.c.h.bf16 %v2840
        %v3445 = vunpack.c.l.bf16 %v2841
        %v3446 = vunpack.c.h.bf16 %v2841
        %v3447 = vunpack.c.l.bf16 %v2842
        %v3448 = vunpack.c.h.bf16 %v2842
        %v3449 = vunpack.c.l.bf16 %v2843
        %v3450 = vunpack.c.h.bf16 %v2843
        %v3451 = vunpack.c.l.bf16 %v2844
        %v3452 = vunpack.c.h.bf16 %v2844
        %v3453 = vunpack.c.l.bf16 %v2845
        %v3454 = vunpack.c.h.bf16 %v2845
        %v3455 = vunpack.c.l.bf16 %v2846
        %v3456 = vunpack.c.h.bf16 %v2846
        %v3457 = vunpack.c.l.bf16 %v2847
        %v3458 = vunpack.c.h.bf16 %v2847
        %v3459 = vunpack.c.l.bf16 %v2848
        %v3460 = vunpack.c.h.bf16 %v2848
        %v3461 = vunpack.c.l.bf16 %v2849
        %v3462 = vunpack.c.h.bf16 %v2849
        %v3463 = vunpack.c.l.bf16 %v2850
        %v3464 = vunpack.c.h.bf16 %v2850
        %v3465 = vunpack.c.l.bf16 %v2851
        %v3466 = vunpack.c.h.bf16 %v2851
        %v3467 = vunpack.c.l.bf16 %v2852
        %v3468 = vunpack.c.h.bf16 %v2852
        %v3469 = vunpack.c.l.bf16 %v2853
        %v3470 = vunpack.c.h.bf16 %v2853
        %v3471 = vunpack.c.l.bf16 %v2854
        %v3472 = vunpack.c.h.bf16 %v2854
        %v3473 = vunpack.c.l.bf16 %v2855
        %v3474 = vunpack.c.h.bf16 %v2855
        %v3475 = vunpack.c.l.bf16 %v2856
        %v3476 = vunpack.c.h.bf16 %v2856
        %v3477 = vunpack.c.l.bf16 %v2857
        %v3478 = vunpack.c.h.bf16 %v2857
        %v3479 = vunpack.c.l.bf16 %v2858
        %v3480 = vunpack.c.h.bf16 %v2858
        %v3481 = vunpack.c.l.bf16 %v2859
        %v3482 = vunpack.c.h.bf16 %v2859
        %v3483 = vunpack.c.l.bf16 %v2860
        %v3484 = vunpack.c.h.bf16 %v2860
        %v3485 = vunpack.c.l.bf16 %v2861
        %v3486 = vunpack.c.h.bf16 %v2861
        %v3487 = vunpack.c.l.bf16 %v2862
        %v3488 = vunpack.c.h.bf16 %v2862
        %v3489 = vunpack.c.l.bf16 %v2863
        %v3490 = vunpack.c.h.bf16 %v2863
        %v3491 = vunpack.c.l.bf16 %v2864
        %v3492 = vunpack.c.h.bf16 %v2864
        %v3493 = vunpack.c.l.bf16 %v2865
        %v3494 = vunpack.c.h.bf16 %v2865
        %v3495 = vunpack.c.l.bf16 %v2866
        %v3496 = vunpack.c.h.bf16 %v2866
        %v3497 = vunpack.c.l.bf16 %v2867
        %v3498 = vunpack.c.h.bf16 %v2867
        %v3499 = vunpack.c.l.bf16 %v2868
        %v3500 = vunpack.c.h.bf16 %v2868
        %v3501 = vunpack.c.l.bf16 %v2869
        %v3502 = vunpack.c.h.bf16 %v2869
        %v3503 = vunpack.c.l.bf16 %v2870
        %v3504 = vunpack.c.h.bf16 %v2870
        %v3505 = vunpack.c.l.bf16 %v2871
        %v3506 = vunpack.c.h.bf16 %v2871
        %v3507 = vunpack.c.l.bf16 %v2872
        %v3508 = vunpack.c.h.bf16 %v2872
        %v3509 = vunpack.c.l.bf16 %v2873
        %v3510 = vunpack.c.h.bf16 %v2873
        %v3511 = vunpack.c.l.bf16 %v2874
        %v3512 = vunpack.c.h.bf16 %v2874
        %v3513 = vunpack.c.l.bf16 %v2875
        %v3514 = vunpack.c.h.bf16 %v2875
        %v3515 = vunpack.c.l.bf16 %v2876
        %v3516 = vunpack.c.h.bf16 %v2876
        %v3517 = vunpack.c.l.bf16 %v2877
        %v3518 = vunpack.c.h.bf16 %v2877
        %v3519 = vunpack.c.l.bf16 %v2878
        %v3520 = vunpack.c.h.bf16 %v2878
        %v3521 = vunpack.c.l.bf16 %v2879
        %v3522 = vunpack.c.h.bf16 %v2879
        %v3523 = vunpack.c.l.bf16 %v2880
        %v3524 = vunpack.c.h.bf16 %v2880
        %v3525 = vunpack.c.l.bf16 %v2881
        %v3526 = vunpack.c.h.bf16 %v2881
        %v3527 = vunpack.c.l.bf16 %v2882
        %v3528 = vunpack.c.h.bf16 %v2882
        %v3529 = vunpack.c.l.bf16 %v2883
        %v3530 = vunpack.c.h.bf16 %v2883
        %v3531 = vunpack.c.l.bf16 %v2884
        %v3532 = vunpack.c.h.bf16 %v2884
        %v3533 = vunpack.c.l.bf16 %v2885
        %v3534 = vunpack.c.h.bf16 %v2885
        %v3535 = vunpack.c.l.bf16 %v2886
        %v3536 = vunpack.c.h.bf16 %v2886
        %v3537 = vunpack.c.l.bf16 %v2887
        %v3538 = vunpack.c.h.bf16 %v2887
        %v3539 = vunpack.c.l.bf16 %v2888
        %v3540 = vunpack.c.h.bf16 %v2888
        %v3541 = vunpack.c.l.bf16 %v2889
        %v3542 = vunpack.c.h.bf16 %v2889
        %v3543 = vunpack.c.l.bf16 %v2890
        %v3544 = vunpack.c.h.bf16 %v2890
        %v3545 = vunpack.c.l.bf16 %v2891
        %v3546 = vunpack.c.h.bf16 %v2891
        %v3547 = vunpack.c.l.bf16 %v2892
        %v3548 = vunpack.c.h.bf16 %v2892
        %v3549 = vunpack.c.l.bf16 %v2893
        %v3550 = vunpack.c.h.bf16 %v2893
        %v3551 = vunpack.c.l.bf16 %v2894
        %v3552 = vunpack.c.h.bf16 %v2894
        %v3553 = vunpack.c.l.bf16 %v2895
        %v3554 = vunpack.c.h.bf16 %v2895
        %v3555 = vunpack.c.l.bf16 %v2896
        %v3556 = vunpack.c.h.bf16 %v2896
        %v3557 = vunpack.c.l.bf16 %v2897
        %v3558 = vunpack.c.h.bf16 %v2897
        %v3559 = vunpack.c.l.bf16 %v2898
        %v3560 = vunpack.c.h.bf16 %v2898
        %v3561 = vunpack.c.l.bf16 %v2899
        %v3562 = vunpack.c.h.bf16 %v2899
        %v3563 = vunpack.c.l.bf16 %v2900
        %v3564 = vunpack.c.h.bf16 %v2900
        %v3565 = vunpack.c.l.bf16 %v2901
        %v3566 = vunpack.c.h.bf16 %v2901
        %v3567 = vunpack.c.l.bf16 %v2902
        %v3568 = vunpack.c.h.bf16 %v2902
        %v3569 = vunpack.c.l.bf16 %v2903
        %v3570 = vunpack.c.h.bf16 %v2903
        %v3571 = vunpack.c.l.bf16 %v2904
        %v3572 = vunpack.c.h.bf16 %v2904
        %v3573 = vunpack.c.l.bf16 %v2905
        %v3574 = vunpack.c.h.bf16 %v2905
        %v3575 = vunpack.c.l.bf16 %v2906
        %v3576 = vunpack.c.h.bf16 %v2906
        %v3577 = vunpack.c.l.bf16 %v2907
        %v3578 = vunpack.c.h.bf16 %v2907
        %v3579 = vunpack.c.l.bf16 %v2908
        %v3580 = vunpack.c.h.bf16 %v2908
        %v3581 = vunpack.c.l.bf16 %v2909
        %v3582 = vunpack.c.h.bf16 %v2909
        %v3583 = vunpack.c.l.bf16 %v2910
        %v3584 = vunpack.c.h.bf16 %v2910
        %v3585 = vunpack.c.l.bf16 %v2911
        %v3586 = vunpack.c.h.bf16 %v2911
        %v3587 = vunpack.c.l.bf16 %v2912
        %v3588 = vunpack.c.h.bf16 %v2912
        %v3589 = vunpack.c.l.bf16 %v2913
        %v3590 = vunpack.c.h.bf16 %v2913
        %v3591 = vunpack.c.l.bf16 %v2914
        %v3592 = vunpack.c.h.bf16 %v2914
        %v3593 = vunpack.c.l.bf16 %v2915
        %v3594 = vunpack.c.h.bf16 %v2915
        %v3595 = vunpack.c.l.bf16 %v2916
        %v3596 = vunpack.c.h.bf16 %v2916
        %v3597 = vunpack.c.l.bf16 %v2917
        %v3598 = vunpack.c.h.bf16 %v2917
        %v3599 = vunpack.c.l.bf16 %v2918
        %v3600 = vunpack.c.h.bf16 %v2918
        %v3601 = vunpack.c.l.bf16 %v2919
        %v3602 = vunpack.c.h.bf16 %v2919
        %v3603 = vunpack.c.l.bf16 %v2920
        %v3604 = vunpack.c.h.bf16 %v2920
        %v3605 = vunpack.c.l.bf16 %v2921
        %v3606 = vunpack.c.h.bf16 %v2921
        %v3607 = vunpack.c.l.bf16 %v2922
        %v3608 = vunpack.c.h.bf16 %v2922
        %v3609 = vunpack.c.l.bf16 %v2923
        %v3610 = vunpack.c.h.bf16 %v2923
        %v3611 = vunpack.c.l.bf16 %v2924
        %v3612 = vunpack.c.h.bf16 %v2924
        %v3613 = vunpack.c.l.bf16 %v2925
        %v3614 = vunpack.c.h.bf16 %v2925
        %v3615 = vunpack.c.l.bf16 %v2926
        %v3616 = vunpack.c.h.bf16 %v2926
        %v3617 = vunpack.c.l.bf16 %v2927
        %v3618 = vunpack.c.h.bf16 %v2927
        %v3619 = vunpack.c.l.bf16 %v2928
        %v3620 = vunpack.c.h.bf16 %v2928
        %v3621 = vunpack.c.l.bf16 %v2929
        %v3622 = vunpack.c.h.bf16 %v2929
        %v3623 = vunpack.c.l.bf16 %v2930
        %v3624 = vunpack.c.h.bf16 %v2930
        %v3625 = vunpack.c.l.bf16 %v2931
        %v3626 = vunpack.c.h.bf16 %v2931
        %v3627 = vunpack.c.l.bf16 %v2932
        %v3628 = vunpack.c.h.bf16 %v2932
        %v3629 = vunpack.c.l.bf16 %v2933
        %v3630 = vunpack.c.h.bf16 %v2933
        %v3631 = vunpack.c.l.bf16 %v2934
        %v3632 = vunpack.c.h.bf16 %v2934
        %v3633 = vunpack.c.l.bf16 %v2935
        %v3634 = vunpack.c.h.bf16 %v2935
        %v3635 = vunpack.c.l.bf16 %v2936
        %v3636 = vunpack.c.h.bf16 %v2936
        %v3637 = vunpack.c.l.bf16 %v2937
        %v3638 = vunpack.c.h.bf16 %v2937
        %v3639 = vunpack.c.l.bf16 %v2938
        %v3640 = vunpack.c.h.bf16 %v2938
        %v3641 = vunpack.c.l.bf16 %v2939
        %v3642 = vunpack.c.h.bf16 %v2939
        %v3643 = vunpack.c.l.bf16 %v2940
        %v3644 = vunpack.c.h.bf16 %v2940
        %v3645 = vunpack.c.l.bf16 %v2941
        %v3646 = vunpack.c.h.bf16 %v2941
        %v3647 = vunpack.c.l.bf16 %v2942
        %v3648 = vunpack.c.h.bf16 %v2942
        %v3649 = vunpack.c.l.bf16 %v2943
        %v3650 = vunpack.c.h.bf16 %v2943
        %v3651 = vunpack.c.l.bf16 %v2944
        %v3652 = vunpack.c.h.bf16 %v2944
        %v3653 = vunpack.c.l.bf16 %v2945
        %v3654 = vunpack.c.h.bf16 %v2945
        %v3655 = vunpack.c.l.bf16 %v2946
        %v3656 = vunpack.c.h.bf16 %v2946
        %v3657 = vunpack.c.l.bf16 %v2947
        %v3658 = vunpack.c.h.bf16 %v2947
        %v3659 = vunpack.c.l.bf16 %v2948
        %v3660 = vunpack.c.h.bf16 %v2948
        %v3661 = vunpack.c.l.bf16 %v2949
        %v3662 = vunpack.c.h.bf16 %v2949
        %v3663 = vunpack.c.l.bf16 %v2950
        %v3664 = vunpack.c.h.bf16 %v2950
        %v3665 = vunpack.c.l.bf16 %v2951
        %v3666 = vunpack.c.h.bf16 %v2951
        %v3667 = vunpack.c.l.bf16 %v2952
        %v3668 = vunpack.c.h.bf16 %v2952
        %v3669 = vunpack.c.l.bf16 %v2953
        %v3670 = vunpack.c.h.bf16 %v2953
        %v3671 = vunpack.c.l.bf16 %v2954
        %v3672 = vunpack.c.h.bf16 %v2954
        %v3673 = vunpack.c.l.bf16 %v2955
        %v3674 = vunpack.c.h.bf16 %v2955
        %v3675 = vunpack.c.l.bf16 %v2956
        %v3676 = vunpack.c.h.bf16 %v2956
        %v3677 = vunpack.c.l.bf16 %v2957
        %v3678 = vunpack.c.h.bf16 %v2957
        %v3679 = vunpack.c.l.bf16 %v2958
        %v3680 = vunpack.c.h.bf16 %v2958
        %v3681 = vunpack.c.l.bf16 %v2959
        %v3682 = vunpack.c.h.bf16 %v2959
        %v3683 = vunpack.c.l.bf16 %v2960
        %v3684 = vunpack.c.h.bf16 %v2960
        %v3685 = vunpack.c.l.bf16 %v2961
        %v3686 = vunpack.c.h.bf16 %v2961
        %v3687 = vunpack.c.l.bf16 %v2962
        %v3688 = vunpack.c.h.bf16 %v2962
        %v3689 = vunpack.c.l.bf16 %v2963
        %v3690 = vunpack.c.h.bf16 %v2963
        %v3691 = vunpack.c.l.bf16 %v2964
        %v3692 = vunpack.c.h.bf16 %v2964
        %v3693 = vunpack.c.l.bf16 %v2965
        %v3694 = vunpack.c.h.bf16 %v2965
        %v3695 = vunpack.c.l.bf16 %v2966
        %v3696 = vunpack.c.h.bf16 %v2966
        %v3697 = vunpack.c.l.bf16 %v2967
        %v3698 = vunpack.c.h.bf16 %v2967
        %v3699 = vunpack.c.l.bf16 %v2968
        %v3700 = vunpack.c.h.bf16 %v2968
        %v3701 = vunpack.c.l.bf16 %v2969
        %v3702 = vunpack.c.h.bf16 %v2969
        %v3703 = vunpack.c.l.bf16 %v2970
        %v3704 = vunpack.c.h.bf16 %v2970
        %v3705 = vunpack.c.l.bf16 %v2971
        %v3706 = vunpack.c.h.bf16 %v2971
        %v3707 = vunpack.c.l.bf16 %v2972
        %v3708 = vunpack.c.h.bf16 %v2972
        %v3709 = vunpack.c.l.bf16 %v2973
        %v3710 = vunpack.c.h.bf16 %v2973
        %v3711 = vunpack.c.l.bf16 %v2974
        %v3712 = vunpack.c.h.bf16 %v2974
        %v3713 = vunpack.c.l.bf16 %v2975
        %v3714 = vunpack.c.h.bf16 %v2975
        %v3715 = vunpack.c.l.bf16 %v2976
        %v3716 = vunpack.c.h.bf16 %v2976
        %v3717 = vunpack.c.l.bf16 %v2977
        %v3718 = vunpack.c.h.bf16 %v2977
        %v3719 = vunpack.c.l.bf16 %v2978
        %v3720 = vunpack.c.h.bf16 %v2978
        %v3721 = vunpack.c.l.bf16 %v2979
        %v3722 = vunpack.c.h.bf16 %v2979
        %v3723 = vunpack.c.l.bf16 %v2980
        %v3724 = vunpack.c.h.bf16 %v2980
        %v3725 = vunpack.c.l.bf16 %v2981
        %v3726 = vunpack.c.h.bf16 %v2981
        %v3727 = vunpack.c.l.bf16 %v2982
        %v3728 = vunpack.c.h.bf16 %v2982
        %v3729 = vunpack.c.l.bf16 %v2983
        %v3730 = vunpack.c.h.bf16 %v2983
        %v3731 = vunpack.c.l.bf16 %v2984
        %v3732 = vunpack.c.h.bf16 %v2984
        %v3733 = vunpack.c.l.bf16 %v2985
        %v3734 = vunpack.c.h.bf16 %v2985
        %v3735 = vunpack.c.l.bf16 %v2986
        %v3736 = vunpack.c.h.bf16 %v2986
        %v3737 = vunpack.c.l.bf16 %v2987
        %v3738 = vunpack.c.h.bf16 %v2987
        %v3739 = vunpack.c.l.bf16 %v2988
        %v3740 = vunpack.c.h.bf16 %v2988
        %v3741 = vunpack.c.l.bf16 %v2989
        %v3742 = vunpack.c.h.bf16 %v2989
        %v3743 = vunpack.c.l.bf16 %v2990
        %v3744 = vunpack.c.h.bf16 %v2990
        %v3745 = vunpack.c.l.bf16 %v2991
        %v3746 = vunpack.c.h.bf16 %v2991
        %v3747 = vunpack.c.l.bf16 %v2992
        %v3748 = vunpack.c.h.bf16 %v2992
        %v3749 = vunpack.c.l.bf16 %v2993
        %v3750 = vunpack.c.h.bf16 %v2993
        %v3751 = vunpack.c.l.bf16 %v2994
        %v3752 = vunpack.c.h.bf16 %v2994
        %v3753 = vunpack.c.l.bf16 %v2995
        %v3754 = vunpack.c.h.bf16 %v2995
        %v3755 = vunpack.c.l.bf16 %v2996
        %v3756 = vunpack.c.h.bf16 %v2996
        %v3757 = vunpack.c.l.bf16 %v2997
        %v3758 = vunpack.c.h.bf16 %v2997
        %v3759 = vunpack.c.l.bf16 %v2998
        %v3760 = vunpack.c.h.bf16 %v2998
        %v3761 = vunpack.c.l.bf16 %v2999
        %v3762 = vunpack.c.h.bf16 %v2999
        %v3763 = vunpack.c.l.bf16 %v3000
        %v3764 = vunpack.c.h.bf16 %v3000
        %v3765 = vunpack.c.l.bf16 %v3001
        %v3766 = vunpack.c.h.bf16 %v3001
        %v3767 = vunpack.c.l.bf16 %v3002
        %v3768 = vunpack.c.h.bf16 %v3002
        %v3769 = vunpack.c.l.bf16 %v3003
        %v3770 = vunpack.c.h.bf16 %v3003
        %v3771 = vunpack.c.l.bf16 %v3004
        %v3772 = vunpack.c.h.bf16 %v3004
        %v3773 = vld [vmem:[%s412] sm:$0x3f]
        %v3775 = vlaneseq
        %v3776 = vshrl.u32 %v3775, 7
        %v3777 = vsub.s32 0, %v3776
        %v3778 = vrot.slane %v3773, %v3777
        %v3779 = vlaneseq
        %v3780 = vshrl.u32 %v3779, 7
        %v3781 = vsub.s32 1, %v3780
        %v3782 = vrot.slane %v3773, %v3781
        %v3783 = vlaneseq
        %v3784 = vshrl.u32 %v3783, 7
        %v3785 = vsub.s32 2, %v3784
        %v3786 = vrot.slane %v3773, %v3785
        %v3787 = vlaneseq
        %v3788 = vshrl.u32 %v3787, 7
        %v3789 = vsub.s32 3, %v3788
        %v3790 = vrot.slane %v3773, %v3789
        %v3791 = vlaneseq
        %v3792 = vshrl.u32 %v3791, 7
        %v3793 = vsub.s32 4, %v3792
        %v3794 = vrot.slane %v3773, %v3793
        %v3795 = vlaneseq
        %v3796 = vshrl.u32 %v3795, 7
        %v3797 = vsub.s32 5, %v3796
        %v3798 = vrot.slane %v3773, %v3797
        %3805 = vmatprep.subr.mxu0 %v3006
        %3806 = vmatpush1.msra.mxu0 %v3005
        %3807 = vmatprep.subr.mxu0 %v3012
        %3808 = vmatpush1.msra.mxu0 %v3011
        %3809 = vmatprep.subr.mxu0 %v3018
        %3810 = vmatpush1.msra.mxu0 %v3017
        %3811 = vmatprep.subr.mxu0 %v3024
        %3812 = vmatpush1.msra.mxu0 %v3023
        %3813 = vmatprep.subr.mxu0 %v3030
        %3814 = vmatpush1.msra.mxu0 %v3029
        %3815 = vmatprep.subr.mxu0 %v3036
        %3816 = vmatpush1.msra.mxu0 %v3035
        %3817 = vmatprep.subr.mxu0 %v3042
        %3818 = vmatpush1.msra.mxu0 %v3041
        %3819 = vmatprep.subr.mxu0 %v3048
        %3820 = vmatpush1.msra.mxu0 %v3047
        %3821 = vmatprep.subr.mxu0 %v3054
        %3822 = vmatpush1.msra.mxu0 %v3053
        %3823 = vmatprep.subr.mxu0 %v3060
        %3824 = vmatpush1.msra.mxu0 %v3059
        %3825 = vmatprep.subr.mxu0 %v3066
        %3826 = vmatpush1.msra.mxu0 %v3065
        %3827 = vmatprep.subr.mxu0 %v3072
        %3828 = vmatpush1.msra.mxu0 %v3071
        %3829 = vmatprep.subr.mxu0 %v3078
        %3830 = vmatpush1.msra.mxu0 %v3077
        %3831 = vmatprep.subr.mxu0 %v3084
        %3832 = vmatpush1.msra.mxu0 %v3083
        %3833 = vmatprep.subr.mxu0 %v3090
        %3834 = vmatpush1.msra.mxu0 %v3089
        %3835 = vmatprep.subr.mxu0 %v3096
        %3836 = vmatpush1.msra.mxu0 %v3095
        %3837 = vmatprep.subr.mxu0 %v3102
        %3838 = vmatpush1.msra.mxu0 %v3101
        %3839 = vmatprep.subr.mxu0 %v3108
        %3840 = vmatpush1.msra.mxu0 %v3107
        %3841 = vmatprep.subr.mxu0 %v3114
        %3842 = vmatpush1.msra.mxu0 %v3113
        %3843 = vmatprep.subr.mxu0 %v3120
        %3844 = vmatpush1.msra.mxu0 %v3119
        %3845 = vmatprep.subr.mxu0 %v3126
        %3846 = vmatpush1.msra.mxu0 %v3125
        %3847 = vmatprep.subr.mxu0 %v3132
        %3848 = vmatpush1.msra.mxu0 %v3131
        %3849 = vmatprep.subr.mxu0 %v3138
        %3850 = vmatpush1.msra.mxu0 %v3137
        %3851 = vmatprep.subr.mxu0 %v3144
        %3852 = vmatpush1.msra.mxu0 %v3143
        %3853 = vmatprep.subr.mxu0 %v3150
        %3854 = vmatpush1.msra.mxu0 %v3149
        %3855 = vmatprep.subr.mxu0 %v3156
        %3856 = vmatpush1.msra.mxu0 %v3155
        %3857 = vmatprep.subr.mxu0 %v3162
        %3858 = vmatpush1.msra.mxu0 %v3161
        %3859 = vmatprep.subr.mxu0 %v3168
        %3860 = vmatpush1.msra.mxu0 %v3167
        %3861 = vmatprep.subr.mxu0 %v3174
        %3862 = vmatpush1.msra.mxu0 %v3173
        %3863 = vmatprep.subr.mxu0 %v3180
        %3864 = vmatpush1.msra.mxu0 %v3179
        %3865 = vmatprep.subr.mxu0 %v3186
        %3866 = vmatpush1.msra.mxu0 %v3185
        %3867 = vmatprep.subr.mxu0 %v3192
        %3868 = vmatpush1.msra.mxu0 %v3191
        %3869 = vmatprep.mubr.f32.mxu0 %v2566
        %3870 = vmatmul.mubr.f32.gmra.mrb[0].mxu0 %v2557
        %v3871 = vpop.f32.mrb[0].mxu0
        %v3872 = vadd.f32 %v3778, %v3871
        %v3873 = vpop.f32.mrb[0].mxu0
        %v3874 = vadd.f32 %v3782, %v3873
        %3875 = vdwg.mxu0
        %3876 = vmatprep.subr.mxu0 %v3198
        %3877 = vmatpush1.msra.mxu0 %v3197
        %3878 = vmatprep.subr.mxu0 %v3204
        %3879 = vmatpush1.msra.mxu0 %v3203
        %3880 = vmatprep.subr.mxu0 %v3210
        %3881 = vmatpush1.msra.mxu0 %v3209
        %3882 = vmatprep.subr.mxu0 %v3216
        %3883 = vmatpush1.msra.mxu0 %v3215
        %3884 = vmatprep.subr.mxu0 %v3222
        %3885 = vmatpush1.msra.mxu0 %v3221
        %3886 = vmatprep.subr.mxu0 %v3228
        %3887 = vmatpush1.msra.mxu0 %v3227
        %3888 = vmatprep.subr.mxu0 %v3234
        %3889 = vmatpush1.msra.mxu0 %v3233
        %3890 = vmatprep.subr.mxu0 %v3240
        %3891 = vmatpush1.msra.mxu0 %v3239
        %3892 = vmatprep.subr.mxu0 %v3246
        %3893 = vmatpush1.msra.mxu0 %v3245
        %3894 = vmatprep.subr.mxu0 %v3252
        %3895 = vmatpush1.msra.mxu0 %v3251
        %3896 = vmatprep.subr.mxu0 %v3258
        %3897 = vmatpush1.msra.mxu0 %v3257
        %3898 = vmatprep.subr.mxu0 %v3264
        %3899 = vmatpush1.msra.mxu0 %v3263
        %3900 = vmatprep.subr.mxu0 %v3270
        %3901 = vmatpush1.msra.mxu0 %v3269
        %3902 = vmatprep.subr.mxu0 %v3276
        %3903 = vmatpush1.msra.mxu0 %v3275
        %3904 = vmatprep.subr.mxu0 %v3282
        %3905 = vmatpush1.msra.mxu0 %v3281
        %3906 = vmatprep.subr.mxu0 %v3288
        %3907 = vmatpush1.msra.mxu0 %v3287
        %3908 = vmatprep.subr.mxu0 %v3294
        %3909 = vmatpush1.msra.mxu0 %v3293
        %3910 = vmatprep.subr.mxu0 %v3300
        %3911 = vmatpush1.msra.mxu0 %v3299
        %3912 = vmatprep.subr.mxu0 %v3306
        %3913 = vmatpush1.msra.mxu0 %v3305
        %3914 = vmatprep.subr.mxu0 %v3312
        %3915 = vmatpush1.msra.mxu0 %v3311
        %3916 = vmatprep.subr.mxu0 %v3318
        %3917 = vmatpush1.msra.mxu0 %v3317
        %3918 = vmatprep.subr.mxu0 %v3324
        %3919 = vmatpush1.msra.mxu0 %v3323
        %3920 = vmatprep.subr.mxu0 %v3330
        %3921 = vmatpush1.msra.mxu0 %v3329
        %3922 = vmatprep.subr.mxu0 %v3336
        %3923 = vmatpush1.msra.mxu0 %v3335
        %3924 = vmatprep.subr.mxu0 %v3342
        %3925 = vmatpush1.msra.mxu0 %v3341
        %3926 = vmatprep.subr.mxu0 %v3348
        %3927 = vmatpush1.msra.mxu0 %v3347
        %3928 = vmatprep.subr.mxu0 %v3354
        %3929 = vmatpush1.msra.mxu0 %v3353
        %3930 = vmatprep.subr.mxu0 %v3360
        %3931 = vmatpush1.msra.mxu0 %v3359
        %3932 = vmatprep.subr.mxu0 %v3366
        %3933 = vmatpush1.msra.mxu0 %v3365
        %3934 = vmatprep.subr.mxu0 %v3372
        %3935 = vmatpush1.msra.mxu0 %v3371
        %3936 = vmatprep.subr.mxu0 %v3378
        %3937 = vmatpush1.msra.mxu0 %v3377
        %3938 = vmatprep.subr.mxu0 %v3384
        %3939 = vmatpush1.msra.mxu0 %v3383
        %3940 = vmatprep.mubr.f32.mxu0 %v2584
        %3941 = vmatmul.mubr.f32.gmra.mrb[0].mxu0 %v2575
        %v3942 = vpop.f32.mrb[0].mxu0
        %v3943 = vadd.f32 %v3872, %v3942
        %v3944 = vpop.f32.mrb[0].mxu0
        %v3945 = vadd.f32 %v3874, %v3944
        %3946 = vdwg.mxu0
        %3947 = vmatprep.subr.mxu0 %v3390
        %3948 = vmatpush1.msra.mxu0 %v3389
        %3949 = vmatprep.subr.mxu0 %v3396
        %3950 = vmatpush1.msra.mxu0 %v3395
        %3951 = vmatprep.subr.mxu0 %v3402
        %3952 = vmatpush1.msra.mxu0 %v3401
        %3953 = vmatprep.subr.mxu0 %v3408
        %3954 = vmatpush1.msra.mxu0 %v3407
        %3955 = vmatprep.subr.mxu0 %v3414
        %3956 = vmatpush1.msra.mxu0 %v3413
        %3957 = vmatprep.subr.mxu0 %v3420
        %3958 = vmatpush1.msra.mxu0 %v3419
        %3959 = vmatprep.subr.mxu0 %v3426
        %3960 = vmatpush1.msra.mxu0 %v3425
        %3961 = vmatprep.subr.mxu0 %v3432
        %3962 = vmatpush1.msra.mxu0 %v3431
        %3963 = vmatprep.subr.mxu0 %v3438
        %3964 = vmatpush1.msra.mxu0 %v3437
        %3965 = vmatprep.subr.mxu0 %v3444
        %3966 = vmatpush1.msra.mxu0 %v3443
        %3967 = vmatprep.subr.mxu0 %v3450
        %3968 = vmatpush1.msra.mxu0 %v3449
        %3969 = vmatprep.subr.mxu0 %v3456
        %3970 = vmatpush1.msra.mxu0 %v3455
        %3971 = vmatprep.subr.mxu0 %v3462
        %3972 = vmatpush1.msra.mxu0 %v3461
        %3973 = vmatprep.subr.mxu0 %v3468
        %3974 = vmatpush1.msra.mxu0 %v3467
        %3975 = vmatprep.subr.mxu0 %v3474
        %3976 = vmatpush1.msra.mxu0 %v3473
        %3977 = vmatprep.subr.mxu0 %v3480
        %3978 = vmatpush1.msra.mxu0 %v3479
        %3979 = vmatprep.subr.mxu0 %v3486
        %3980 = vmatpush1.msra.mxu0 %v3485
        %3981 = vmatprep.subr.mxu0 %v3492
        %3982 = vmatpush1.msra.mxu0 %v3491
        %3983 = vmatprep.subr.mxu0 %v3498
        %3984 = vmatpush1.msra.mxu0 %v3497
        %3985 = vmatprep.subr.mxu0 %v3504
        %3986 = vmatpush1.msra.mxu0 %v3503
        %3987 = vmatprep.subr.mxu0 %v3510
        %3988 = vmatpush1.msra.mxu0 %v3509
        %3989 = vmatprep.subr.mxu0 %v3516
        %3990 = vmatpush1.msra.mxu0 %v3515
        %3991 = vmatprep.subr.mxu0 %v3522
        %3992 = vmatpush1.msra.mxu0 %v3521
        %3993 = vmatprep.subr.mxu0 %v3528
        %3994 = vmatpush1.msra.mxu0 %v3527
        %3995 = vmatprep.subr.mxu0 %v3534
        %3996 = vmatpush1.msra.mxu0 %v3533
        %3997 = vmatprep.subr.mxu0 %v3540
        %3998 = vmatpush1.msra.mxu0 %v3539
        %3999 = vmatprep.subr.mxu0 %v3546
        %4000 = vmatpush1.msra.mxu0 %v3545
        %4001 = vmatprep.subr.mxu0 %v3552
        %4002 = vmatpush1.msra.mxu0 %v3551
        %4003 = vmatprep.subr.mxu0 %v3558
        %4004 = vmatpush1.msra.mxu0 %v3557
        %4005 = vmatprep.subr.mxu0 %v3564
        %4006 = vmatpush1.msra.mxu0 %v3563
        %4007 = vmatprep.subr.mxu0 %v3570
        %4008 = vmatpush1.msra.mxu0 %v3569
        %4009 = vmatprep.subr.mxu0 %v3576
        %4010 = vmatpush1.msra.mxu0 %v3575
        %4011 = vmatprep.mubr.f32.mxu0 %v2602
        %4012 = vmatmul.mubr.f32.gmra.mrb[0].mxu0 %v2593
        %v4013 = vpop.f32.mrb[0].mxu0
        %v4014 = vadd.f32 %v3943, %v4013
        %v4015 = vpop.f32.mrb[0].mxu0
        %v4016 = vadd.f32 %v3945, %v4015
        %4017 = vdwg.mxu0
        %4018 = vmatprep.subr.mxu0 %v3582
        %4019 = vmatpush1.msra.mxu0 %v3581
        %4020 = vmatprep.subr.mxu0 %v3588
        %4021 = vmatpush1.msra.mxu0 %v3587
        %4022 = vmatprep.subr.mxu0 %v3594
        %4023 = vmatpush1.msra.mxu0 %v3593
        %4024 = vmatprep.subr.mxu0 %v3600
        %4025 = vmatpush1.msra.mxu0 %v3599
        %4026 = vmatprep.subr.mxu0 %v3606
        %4027 = vmatpush1.msra.mxu0 %v3605
        %4028 = vmatprep.subr.mxu0 %v3612
        %4029 = vmatpush1.msra.mxu0 %v3611
        %4030 = vmatprep.subr.mxu0 %v3618
        %4031 = vmatpush1.msra.mxu0 %v3617
        %4032 = vmatprep.subr.mxu0 %v3624
        %4033 = vmatpush1.msra.mxu0 %v3623
        %4034 = vmatprep.subr.mxu0 %v3630
        %4035 = vmatpush1.msra.mxu0 %v3629
        %4036 = vmatprep.subr.mxu0 %v3636
        %4037 = vmatpush1.msra.mxu0 %v3635
        %4038 = vmatprep.subr.mxu0 %v3642
        %4039 = vmatpush1.msra.mxu0 %v3641
        %4040 = vmatprep.subr.mxu0 %v3648
        %4041 = vmatpush1.msra.mxu0 %v3647
        %4042 = vmatprep.subr.mxu0 %v3654
        %4043 = vmatpush1.msra.mxu0 %v3653
        %4044 = vmatprep.subr.mxu0 %v3660
        %4045 = vmatpush1.msra.mxu0 %v3659
        %4046 = vmatprep.subr.mxu0 %v3666
        %4047 = vmatpush1.msra.mxu0 %v3665
        %4048 = vmatprep.subr.mxu0 %v3672
        %4049 = vmatpush1.msra.mxu0 %v3671
        %4050 = vmatprep.subr.mxu0 %v3678
        %4051 = vmatpush1.msra.mxu0 %v3677
        %4052 = vmatprep.subr.mxu0 %v3684
        %4053 = vmatpush1.msra.mxu0 %v3683
        %4054 = vmatprep.subr.mxu0 %v3690
        %4055 = vmatpush1.msra.mxu0 %v3689
        %4056 = vmatprep.subr.mxu0 %v3696
        %4057 = vmatpush1.msra.mxu0 %v3695
        %4058 = vmatprep.subr.mxu0 %v3702
        %4059 = vmatpush1.msra.mxu0 %v3701
        %4060 = vmatprep.subr.mxu0 %v3708
        %4061 = vmatpush1.msra.mxu0 %v3707
        %4062 = vmatprep.subr.mxu0 %v3714
        %4063 = vmatpush1.msra.mxu0 %v3713
        %4064 = vmatprep.subr.mxu0 %v3720
        %4065 = vmatpush1.msra.mxu0 %v3719
        %4066 = vmatprep.subr.mxu0 %v3726
        %4067 = vmatpush1.msra.mxu0 %v3725
        %4068 = vmatprep.subr.mxu0 %v3732
        %4069 = vmatpush1.msra.mxu0 %v3731
        %4070 = vmatprep.subr.mxu0 %v3738
        %4071 = vmatpush1.msra.mxu0 %v3737
        %4072 = vmatprep.subr.mxu0 %v3744
        %4073 = vmatpush1.msra.mxu0 %v3743
        %4074 = vmatprep.subr.mxu0 %v3750
        %4075 = vmatpush1.msra.mxu0 %v3749
        %4076 = vmatprep.subr.mxu0 %v3756
        %4077 = vmatpush1.msra.mxu0 %v3755
        %4078 = vmatprep.subr.mxu0 %v3762
        %4079 = vmatpush1.msra.mxu0 %v3761
        %4080 = vmatprep.subr.mxu0 %v3768
        %4081 = vmatpush1.msra.mxu0 %v3767
        %4082 = vmatprep.mubr.f32.mxu0 %v2620
        %4083 = vmatmul.mubr.f32.gmra.mrb[0].mxu0 %v2611
        %v4084 = vpop.f32.mrb[0].mxu0
        %v4085 = vadd.f32 %v4014, %v4084
        %v4086 = vpop.f32.mrb[0].mxu0
        %v4087 = vadd.f32 %v4016, %v4086
        %4088 = vdwg.mxu0
        %4089 = vmatprep.subr.mxu0 %v3008
        %4090 = vmatpush1.msra.mxu0 %v3007
        %4091 = vmatprep.subr.mxu0 %v3014
        %4092 = vmatpush1.msra.mxu0 %v3013
        %4093 = vmatprep.subr.mxu0 %v3020
        %4094 = vmatpush1.msra.mxu0 %v3019
        %4095 = vmatprep.subr.mxu0 %v3026
        %4096 = vmatpush1.msra.mxu0 %v3025
        %4097 = vmatprep.subr.mxu0 %v3032
        %4098 = vmatpush1.msra.mxu0 %v3031
        %4099 = vmatprep.subr.mxu0 %v3038
        %4100 = vmatpush1.msra.mxu0 %v3037
        %4101 = vmatprep.subr.mxu0 %v3044
        %4102 = vmatpush1.msra.mxu0 %v3043
        %4103 = vmatprep.subr.mxu0 %v3050
        %4104 = vmatpush1.msra.mxu0 %v3049
        %4105 = vmatprep.subr.mxu0 %v3056
        %4106 = vmatpush1.msra.mxu0 %v3055
        %4107 = vmatprep.subr.mxu0 %v3062
        %4108 = vmatpush1.msra.mxu0 %v3061
        %4109 = vmatprep.subr.mxu0 %v3068
        %4110 = vmatpush1.msra.mxu0 %v3067
        %4111 = vmatprep.subr.mxu0 %v3074
        %4112 = vmatpush1.msra.mxu0 %v3073
        %4113 = vmatprep.subr.mxu0 %v3080
        %4114 = vmatpush1.msra.mxu0 %v3079
        %4115 = vmatprep.subr.mxu0 %v3086
        %4116 = vmatpush1.msra.mxu0 %v3085
        %4117 = vmatprep.subr.mxu0 %v3092
        %4118 = vmatpush1.msra.mxu0 %v3091
        %4119 = vmatprep.subr.mxu0 %v3098
        %4120 = vmatpush1.msra.mxu0 %v3097
        %4121 = vmatprep.subr.mxu0 %v3104
        %4122 = vmatpush1.msra.mxu0 %v3103
        %4123 = vmatprep.subr.mxu0 %v3110
        %4124 = vmatpush1.msra.mxu0 %v3109
        %4125 = vmatprep.subr.mxu0 %v3116
        %4126 = vmatpush1.msra.mxu0 %v3115
        %4127 = vmatprep.subr.mxu0 %v3122
        %4128 = vmatpush1.msra.mxu0 %v3121
        %4129 = vmatprep.subr.mxu0 %v3128
        %4130 = vmatpush1.msra.mxu0 %v3127
        %4131 = vmatprep.subr.mxu0 %v3134
        %4132 = vmatpush1.msra.mxu0 %v3133
        %4133 = vmatprep.subr.mxu0 %v3140
        %4134 = vmatpush1.msra.mxu0 %v3139
        %4135 = vmatprep.subr.mxu0 %v3146
        %4136 = vmatpush1.msra.mxu0 %v3145
        %4137 = vmatprep.subr.mxu0 %v3152
        %4138 = vmatpush1.msra.mxu0 %v3151
        %4139 = vmatprep.subr.mxu0 %v3158
        %4140 = vmatpush1.msra.mxu0 %v3157
        %4141 = vmatprep.subr.mxu0 %v3164
        %4142 = vmatpush1.msra.mxu0 %v3163
        %4143 = vmatprep.subr.mxu0 %v3170
        %4144 = vmatpush1.msra.mxu0 %v3169
        %4145 = vmatprep.subr.mxu0 %v3176
        %4146 = vmatpush1.msra.mxu0 %v3175
        %4147 = vmatprep.subr.mxu0 %v3182
        %4148 = vmatpush1.msra.mxu0 %v3181
        %4149 = vmatprep.subr.mxu0 %v3188
        %4150 = vmatpush1.msra.mxu0 %v3187
        %4151 = vmatprep.subr.mxu0 %v3194
        %4152 = vmatpush1.msra.mxu0 %v3193
        %4153 = vmatprep.mubr.f32.mxu0 %v2566
        %4154 = vmatmul.mubr.f32.gmra.mrb[0].mxu0 %v2557
        %v4155 = vpop.f32.mrb[0].mxu0
        %v4156 = vadd.f32 %v3786, %v4155
        %v4157 = vpop.f32.mrb[0].mxu0
        %v4158 = vadd.f32 %v3790, %v4157
        %4159 = vdwg.mxu0
        %4160 = vmatprep.subr.mxu0 %v3200
        %4161 = vmatpush1.msra.mxu0 %v3199
        %4162 = vmatprep.subr.mxu0 %v3206
        %4163 = vmatpush1.msra.mxu0 %v3205
        %4164 = vmatprep.subr.mxu0 %v3212
        %4165 = vmatpush1.msra.mxu0 %v3211
        %4166 = vmatprep.subr.mxu0 %v3218
        %4167 = vmatpush1.msra.mxu0 %v3217
        %4168 = vmatprep.subr.mxu0 %v3224
        %4169 = vmatpush1.msra.mxu0 %v3223
        %4170 = vmatprep.subr.mxu0 %v3230
        %4171 = vmatpush1.msra.mxu0 %v3229
        %4172 = vmatprep.subr.mxu0 %v3236
        %4173 = vmatpush1.msra.mxu0 %v3235
        %4174 = vmatprep.subr.mxu0 %v3242
        %4175 = vmatpush1.msra.mxu0 %v3241
        %4176 = vmatprep.subr.mxu0 %v3248
        %4177 = vmatpush1.msra.mxu0 %v3247
        %4178 = vmatprep.subr.mxu0 %v3254
        %4179 = vmatpush1.msra.mxu0 %v3253
        %4180 = vmatprep.subr.mxu0 %v3260
        %4181 = vmatpush1.msra.mxu0 %v3259
        %4182 = vmatprep.subr.mxu0 %v3266
        %4183 = vmatpush1.msra.mxu0 %v3265
        %4184 = vmatprep.subr.mxu0 %v3272
        %4185 = vmatpush1.msra.mxu0 %v3271
        %4186 = vmatprep.subr.mxu0 %v3278
        %4187 = vmatpush1.msra.mxu0 %v3277
        %4188 = vmatprep.subr.mxu0 %v3284
        %4189 = vmatpush1.msra.mxu0 %v3283
        %4190 = vmatprep.subr.mxu0 %v3290
        %4191 = vmatpush1.msra.mxu0 %v3289
        %4192 = vmatprep.subr.mxu0 %v3296
        %4193 = vmatpush1.msra.mxu0 %v3295
        %4194 = vmatprep.subr.mxu0 %v3302
        %4195 = vmatpush1.msra.mxu0 %v3301
        %4196 = vmatprep.subr.mxu0 %v3308
        %4197 = vmatpush1.msra.mxu0 %v3307
        %4198 = vmatprep.subr.mxu0 %v3314
        %4199 = vmatpush1.msra.mxu0 %v3313
        %4200 = vmatprep.subr.mxu0 %v3320
        %4201 = vmatpush1.msra.mxu0 %v3319
        %4202 = vmatprep.subr.mxu0 %v3326
        %4203 = vmatpush1.msra.mxu0 %v3325
        %4204 = vmatprep.subr.mxu0 %v3332
        %4205 = vmatpush1.msra.mxu0 %v3331
        %4206 = vmatprep.subr.mxu0 %v3338
        %4207 = vmatpush1.msra.mxu0 %v3337
        %4208 = vmatprep.subr.mxu0 %v3344
        %4209 = vmatpush1.msra.mxu0 %v3343
        %4210 = vmatprep.subr.mxu0 %v3350
        %4211 = vmatpush1.msra.mxu0 %v3349
        %4212 = vmatprep.subr.mxu0 %v3356
        %4213 = vmatpush1.msra.mxu0 %v3355
        %4214 = vmatprep.subr.mxu0 %v3362
        %4215 = vmatpush1.msra.mxu0 %v3361
        %4216 = vmatprep.subr.mxu0 %v3368
        %4217 = vmatpush1.msra.mxu0 %v3367
        %4218 = vmatprep.subr.mxu0 %v3374
        %4219 = vmatpush1.msra.mxu0 %v3373
        %4220 = vmatprep.subr.mxu0 %v3380
        %4221 = vmatpush1.msra.mxu0 %v3379
        %4222 = vmatprep.subr.mxu0 %v3386
        %4223 = vmatpush1.msra.mxu0 %v3385
        %4224 = vmatprep.mubr.f32.mxu0 %v2584
        %4225 = vmatmul.mubr.f32.gmra.mrb[0].mxu0 %v2575
        %v4226 = vpop.f32.mrb[0].mxu0
        %v4227 = vadd.f32 %v4156, %v4226
        %v4228 = vpop.f32.mrb[0].mxu0
        %v4229 = vadd.f32 %v4158, %v4228
        %4230 = vdwg.mxu0
        %4231 = vmatprep.subr.mxu0 %v3392
        %4232 = vmatpush1.msra.mxu0 %v3391
        %4233 = vmatprep.subr.mxu0 %v3398
        %4234 = vmatpush1.msra.mxu0 %v3397
        %4235 = vmatprep.subr.mxu0 %v3404
        %4236 = vmatpush1.msra.mxu0 %v3403
        %4237 = vmatprep.subr.mxu0 %v3410
        %4238 = vmatpush1.msra.mxu0 %v3409
        %4239 = vmatprep.subr.mxu0 %v3416
        %4240 = vmatpush1.msra.mxu0 %v3415
        %4241 = vmatprep.subr.mxu0 %v3422
        %4242 = vmatpush1.msra.mxu0 %v3421
        %4243 = vmatprep.subr.mxu0 %v3428
        %4244 = vmatpush1.msra.mxu0 %v3427
        %4245 = vmatprep.subr.mxu0 %v3434
        %4246 = vmatpush1.msra.mxu0 %v3433
        %4247 = vmatprep.subr.mxu0 %v3440
        %4248 = vmatpush1.msra.mxu0 %v3439
        %4249 = vmatprep.subr.mxu0 %v3446
        %4250 = vmatpush1.msra.mxu0 %v3445
        %4251 = vmatprep.subr.mxu0 %v3452
        %4252 = vmatpush1.msra.mxu0 %v3451
        %4253 = vmatprep.subr.mxu0 %v3458
        %4254 = vmatpush1.msra.mxu0 %v3457
        %4255 = vmatprep.subr.mxu0 %v3464
        %4256 = vmatpush1.msra.mxu0 %v3463
        %4257 = vmatprep.subr.mxu0 %v3470
        %4258 = vmatpush1.msra.mxu0 %v3469
        %4259 = vmatprep.subr.mxu0 %v3476
        %4260 = vmatpush1.msra.mxu0 %v3475
        %4261 = vmatprep.subr.mxu0 %v3482
        %4262 = vmatpush1.msra.mxu0 %v3481
        %4263 = vmatprep.subr.mxu0 %v3488
        %4264 = vmatpush1.msra.mxu0 %v3487
        %4265 = vmatprep.subr.mxu0 %v3494
        %4266 = vmatpush1.msra.mxu0 %v3493
        %4267 = vmatprep.subr.mxu0 %v3500
        %4268 = vmatpush1.msra.mxu0 %v3499
        %4269 = vmatprep.subr.mxu0 %v3506
        %4270 = vmatpush1.msra.mxu0 %v3505
        %4271 = vmatprep.subr.mxu0 %v3512
        %4272 = vmatpush1.msra.mxu0 %v3511
        %4273 = vmatprep.subr.mxu0 %v3518
        %4274 = vmatpush1.msra.mxu0 %v3517
        %4275 = vmatprep.subr.mxu0 %v3524
        %4276 = vmatpush1.msra.mxu0 %v3523
        %4277 = vmatprep.subr.mxu0 %v3530
        %4278 = vmatpush1.msra.mxu0 %v3529
        %4279 = vmatprep.subr.mxu0 %v3536
        %4280 = vmatpush1.msra.mxu0 %v3535
        %4281 = vmatprep.subr.mxu0 %v3542
        %4282 = vmatpush1.msra.mxu0 %v3541
        %4283 = vmatprep.subr.mxu0 %v3548
        %4284 = vmatpush1.msra.mxu0 %v3547
        %4285 = vmatprep.subr.mxu0 %v3554
        %4286 = vmatpush1.msra.mxu0 %v3553
        %4287 = vmatprep.subr.mxu0 %v3560
        %4288 = vmatpush1.msra.mxu0 %v3559
        %4289 = vmatprep.subr.mxu0 %v3566
        %4290 = vmatpush1.msra.mxu0 %v3565
        %4291 = vmatprep.subr.mxu0 %v3572
        %4292 = vmatpush1.msra.mxu0 %v3571
        %4293 = vmatprep.subr.mxu0 %v3578
        %4294 = vmatpush1.msra.mxu0 %v3577
        %4295 = vmatprep.mubr.f32.mxu0 %v2602
        %4296 = vmatmul.mubr.f32.gmra.mrb[0].mxu0 %v2593
        %v4297 = vpop.f32.mrb[0].mxu0
        %v4298 = vadd.f32 %v4227, %v4297
        %v4299 = vpop.f32.mrb[0].mxu0
        %v4300 = vadd.f32 %v4229, %v4299
        %4301 = vdwg.mxu0
        %4302 = vmatprep.subr.mxu0 %v3584
        %4303 = vmatpush1.msra.mxu0 %v3583
        %4304 = vmatprep.subr.mxu0 %v3590
        %4305 = vmatpush1.msra.mxu0 %v3589
        %4306 = vmatprep.subr.mxu0 %v3596
        %4307 = vmatpush1.msra.mxu0 %v3595
        %4308 = vmatprep.subr.mxu0 %v3602
        %4309 = vmatpush1.msra.mxu0 %v3601
        %4310 = vmatprep.subr.mxu0 %v3608
        %4311 = vmatpush1.msra.mxu0 %v3607
        %4312 = vmatprep.subr.mxu0 %v3614
        %4313 = vmatpush1.msra.mxu0 %v3613
        %4314 = vmatprep.subr.mxu0 %v3620
        %4315 = vmatpush1.msra.mxu0 %v3619
        %4316 = vmatprep.subr.mxu0 %v3626
        %4317 = vmatpush1.msra.mxu0 %v3625
        %4318 = vmatprep.subr.mxu0 %v3632
        %4319 = vmatpush1.msra.mxu0 %v3631
        %4320 = vmatprep.subr.mxu0 %v3638
        %4321 = vmatpush1.msra.mxu0 %v3637
        %4322 = vmatprep.subr.mxu0 %v3644
        %4323 = vmatpush1.msra.mxu0 %v3643
        %4324 = vmatprep.subr.mxu0 %v3650
        %4325 = vmatpush1.msra.mxu0 %v3649
        %4326 = vmatprep.subr.mxu0 %v3656
        %4327 = vmatpush1.msra.mxu0 %v3655
        %4328 = vmatprep.subr.mxu0 %v3662
        %4329 = vmatpush1.msra.mxu0 %v3661
        %4330 = vmatprep.subr.mxu0 %v3668
        %4331 = vmatpush1.msra.mxu0 %v3667
        %4332 = vmatprep.subr.mxu0 %v3674
        %4333 = vmatpush1.msra.mxu0 %v3673
        %4334 = vmatprep.subr.mxu0 %v3680
        %4335 = vmatpush1.msra.mxu0 %v3679
        %4336 = vmatprep.subr.mxu0 %v3686
        %4337 = vmatpush1.msra.mxu0 %v3685
        %4338 = vmatprep.subr.mxu0 %v3692
        %4339 = vmatpush1.msra.mxu0 %v3691
        %4340 = vmatprep.subr.mxu0 %v3698
        %4341 = vmatpush1.msra.mxu0 %v3697
        %4342 = vmatprep.subr.mxu0 %v3704
        %4343 = vmatpush1.msra.mxu0 %v3703
        %4344 = vmatprep.subr.mxu0 %v3710
        %4345 = vmatpush1.msra.mxu0 %v3709
        %4346 = vmatprep.subr.mxu0 %v3716
        %4347 = vmatpush1.msra.mxu0 %v3715
        %4348 = vmatprep.subr.mxu0 %v3722
        %4349 = vmatpush1.msra.mxu0 %v3721
        %4350 = vmatprep.subr.mxu0 %v3728
        %4351 = vmatpush1.msra.mxu0 %v3727
        %4352 = vmatprep.subr.mxu0 %v3734
        %4353 = vmatpush1.msra.mxu0 %v3733
        %4354 = vmatprep.subr.mxu0 %v3740
        %4355 = vmatpush1.msra.mxu0 %v3739
        %4356 = vmatprep.subr.mxu0 %v3746
        %4357 = vmatpush1.msra.mxu0 %v3745
        %4358 = vmatprep.subr.mxu0 %v3752
        %4359 = vmatpush1.msra.mxu0 %v3751
        %4360 = vmatprep.subr.mxu0 %v3758
        %4361 = vmatpush1.msra.mxu0 %v3757
        %4362 = vmatprep.subr.mxu0 %v3764
        %4363 = vmatpush1.msra.mxu0 %v3763
        %4364 = vmatprep.subr.mxu0 %v3770
        %4365 = vmatpush1.msra.mxu0 %v3769
        %4366 = vmatprep.mubr.f32.mxu0 %v2620
        %4367 = vmatmul.mubr.f32.gmra.mrb[0].mxu0 %v2611
        %v4368 = vpop.f32.mrb[0].mxu0
        %v4369 = vadd.f32 %v4298, %v4368
        %v4370 = vpop.f32.mrb[0].mxu0
        %v4371 = vadd.f32 %v4300, %v4370
        %4372 = vdwg.mxu0
        %4373 = vmatprep.subr.mxu0 %v3010
        %4374 = vmatpush1.msra.mxu0 %v3009
        %4375 = vmatprep.subr.mxu0 %v3016
        %4376 = vmatpush1.msra.mxu0 %v3015
        %4377 = vmatprep.subr.mxu0 %v3022
        %4378 = vmatpush1.msra.mxu0 %v3021
        %4379 = vmatprep.subr.mxu0 %v3028
        %4380 = vmatpush1.msra.mxu0 %v3027
        %4381 = vmatprep.subr.mxu0 %v3034
        %4382 = vmatpush1.msra.mxu0 %v3033
        %4383 = vmatprep.subr.mxu0 %v3040
        %4384 = vmatpush1.msra.mxu0 %v3039
        %4385 = vmatprep.subr.mxu0 %v3046
        %4386 = vmatpush1.msra.mxu0 %v3045
        %4387 = vmatprep.subr.mxu0 %v3052
        %4388 = vmatpush1.msra.mxu0 %v3051
        %4389 = vmatprep.subr.mxu0 %v3058
        %4390 = vmatpush1.msra.mxu0 %v3057
        %4391 = vmatprep.subr.mxu0 %v3064
        %4392 = vmatpush1.msra.mxu0 %v3063
        %4393 = vmatprep.subr.mxu0 %v3070
        %4394 = vmatpush1.msra.mxu0 %v3069
        %4395 = vmatprep.subr.mxu0 %v3076
        %4396 = vmatpush1.msra.mxu0 %v3075
        %4397 = vmatprep.subr.mxu0 %v3082
        %4398 = vmatpush1.msra.mxu0 %v3081
        %4399 = vmatprep.subr.mxu0 %v3088
        %4400 = vmatpush1.msra.mxu0 %v3087
        %4401 = vmatprep.subr.mxu0 %v3094
        %4402 = vmatpush1.msra.mxu0 %v3093
        %4403 = vmatprep.subr.mxu0 %v3100
        %4404 = vmatpush1.msra.mxu0 %v3099
        %4405 = vmatprep.subr.mxu0 %v3106
        %4406 = vmatpush1.msra.mxu0 %v3105
        %4407 = vmatprep.subr.mxu0 %v3112
        %4408 = vmatpush1.msra.mxu0 %v3111
        %4409 = vmatprep.subr.mxu0 %v3118
        %4410 = vmatpush1.msra.mxu0 %v3117
        %4411 = vmatprep.subr.mxu0 %v3124
        %4412 = vmatpush1.msra.mxu0 %v3123
        %4413 = vmatprep.subr.mxu0 %v3130
        %4414 = vmatpush1.msra.mxu0 %v3129
        %4415 = vmatprep.subr.mxu0 %v3136
        %4416 = vmatpush1.msra.mxu0 %v3135
        %4417 = vmatprep.subr.mxu0 %v3142
        %4418 = vmatpush1.msra.mxu0 %v3141
        %4419 = vmatprep.subr.mxu0 %v3148
        %4420 = vmatpush1.msra.mxu0 %v3147
        %4421 = vmatprep.subr.mxu0 %v3154
        %4422 = vmatpush1.msra.mxu0 %v3153
        %4423 = vmatprep.subr.mxu0 %v3160
        %4424 = vmatpush1.msra.mxu0 %v3159
        %4425 = vmatprep.subr.mxu0 %v3166
        %4426 = vmatpush1.msra.mxu0 %v3165
        %4427 = vmatprep.subr.mxu0 %v3172
        %4428 = vmatpush1.msra.mxu0 %v3171
        %4429 = vmatprep.subr.mxu0 %v3178
        %4430 = vmatpush1.msra.mxu0 %v3177
        %4431 = vmatprep.subr.mxu0 %v3184
        %4432 = vmatpush1.msra.mxu0 %v3183
        %4433 = vmatprep.subr.mxu0 %v3190
        %4434 = vmatpush1.msra.mxu0 %v3189
        %4435 = vmatprep.subr.mxu0 %v3196
        %4436 = vmatpush1.msra.mxu0 %v3195
        %4437 = vmatprep.mubr.f32.mxu0 %v2566
        %4438 = vmatmul.mubr.f32.gmra.mrb[0].mxu0 %v2557
        %v4439 = vpop.f32.mrb[0].mxu0
        %v4440 = vadd.f32 %v3794, %v4439
        %v4441 = vpop.f32.mrb[0].mxu0
        %v4442 = vadd.f32 %v3798, %v4441
        %4443 = vdwg.mxu0
        %4444 = vmatprep.subr.mxu0 %v3202
        %4445 = vmatpush1.msra.mxu0 %v3201
        %4446 = vmatprep.subr.mxu0 %v3208
        %4447 = vmatpush1.msra.mxu0 %v3207
        %4448 = vmatprep.subr.mxu0 %v3214
        %4449 = vmatpush1.msra.mxu0 %v3213
        %4450 = vmatprep.subr.mxu0 %v3220
        %4451 = vmatpush1.msra.mxu0 %v3219
        %4452 = vmatprep.subr.mxu0 %v3226
        %4453 = vmatpush1.msra.mxu0 %v3225
        %4454 = vmatprep.subr.mxu0 %v3232
        %4455 = vmatpush1.msra.mxu0 %v3231
        %4456 = vmatprep.subr.mxu0 %v3238
        %4457 = vmatpush1.msra.mxu0 %v3237
        %4458 = vmatprep.subr.mxu0 %v3244
        %4459 = vmatpush1.msra.mxu0 %v3243
        %4460 = vmatprep.subr.mxu0 %v3250
        %4461 = vmatpush1.msra.mxu0 %v3249
        %4462 = vmatprep.subr.mxu0 %v3256
        %4463 = vmatpush1.msra.mxu0 %v3255
        %4464 = vmatprep.subr.mxu0 %v3262
        %4465 = vmatpush1.msra.mxu0 %v3261
        %4466 = vmatprep.subr.mxu0 %v3268
        %4467 = vmatpush1.msra.mxu0 %v3267
        %4468 = vmatprep.subr.mxu0 %v3274
        %4469 = vmatpush1.msra.mxu0 %v3273
        %4470 = vmatprep.subr.mxu0 %v3280
        %4471 = vmatpush1.msra.mxu0 %v3279
        %4472 = vmatprep.subr.mxu0 %v3286
        %4473 = vmatpush1.msra.mxu0 %v3285
        %4474 = vmatprep.subr.mxu0 %v3292
        %4475 = vmatpush1.msra.mxu0 %v3291
        %4476 = vmatprep.subr.mxu0 %v3298
        %4477 = vmatpush1.msra.mxu0 %v3297
        %4478 = vmatprep.subr.mxu0 %v3304
        %4479 = vmatpush1.msra.mxu0 %v3303
        %4480 = vmatprep.subr.mxu0 %v3310
        %4481 = vmatpush1.msra.mxu0 %v3309
        %4482 = vmatprep.subr.mxu0 %v3316
        %4483 = vmatpush1.msra.mxu0 %v3315
        %4484 = vmatprep.subr.mxu0 %v3322
        %4485 = vmatpush1.msra.mxu0 %v3321
        %4486 = vmatprep.subr.mxu0 %v3328
        %4487 = vmatpush1.msra.mxu0 %v3327
        %4488 = vmatprep.subr.mxu0 %v3334
        %4489 = vmatpush1.msra.mxu0 %v3333
        %4490 = vmatprep.subr.mxu0 %v3340
        %4491 = vmatpush1.msra.mxu0 %v3339
        %4492 = vmatprep.subr.mxu0 %v3346
        %4493 = vmatpush1.msra.mxu0 %v3345
        %4494 = vmatprep.subr.mxu0 %v3352
        %4495 = vmatpush1.msra.mxu0 %v3351
        %4496 = vmatprep.subr.mxu0 %v3358
        %4497 = vmatpush1.msra.mxu0 %v3357
        %4498 = vmatprep.subr.mxu0 %v3364
        %4499 = vmatpush1.msra.mxu0 %v3363
        %4500 = vmatprep.subr.mxu0 %v3370
        %4501 = vmatpush1.msra.mxu0 %v3369
        %4502 = vmatprep.subr.mxu0 %v3376
        %4503 = vmatpush1.msra.mxu0 %v3375
        %4504 = vmatprep.subr.mxu0 %v3382
        %4505 = vmatpush1.msra.mxu0 %v3381
        %4506 = vmatprep.subr.mxu0 %v3388
        %4507 = vmatpush1.msra.mxu0 %v3387
        %4508 = vmatprep.mubr.f32.mxu0 %v2584
        %4509 = vmatmul.mubr.f32.gmra.mrb[0].mxu0 %v2575
        %v4510 = vpop.f32.mrb[0].mxu0
        %v4511 = vadd.f32 %v4440, %v4510
        %v4512 = vpop.f32.mrb[0].mxu0
        %v4513 = vadd.f32 %v4442, %v4512
        %4514 = vdwg.mxu0
        %4515 = vmatprep.subr.mxu0 %v3394
        %4516 = vmatpush1.msra.mxu0 %v3393
        %4517 = vmatprep.subr.mxu0 %v3400
        %4518 = vmatpush1.msra.mxu0 %v3399
        %4519 = vmatprep.subr.mxu0 %v3406
        %4520 = vmatpush1.msra.mxu0 %v3405
        %4521 = vmatprep.subr.mxu0 %v3412
        %4522 = vmatpush1.msra.mxu0 %v3411
        %4523 = vmatprep.subr.mxu0 %v3418
        %4524 = vmatpush1.msra.mxu0 %v3417
        %4525 = vmatprep.subr.mxu0 %v3424
        %4526 = vmatpush1.msra.mxu0 %v3423
        %4527 = vmatprep.subr.mxu0 %v3430
        %4528 = vmatpush1.msra.mxu0 %v3429
        %4529 = vmatprep.subr.mxu0 %v3436
        %4530 = vmatpush1.msra.mxu0 %v3435
        %4531 = vmatprep.subr.mxu0 %v3442
        %4532 = vmatpush1.msra.mxu0 %v3441
        %4533 = vmatprep.subr.mxu0 %v3448
        %4534 = vmatpush1.msra.mxu0 %v3447
        %4535 = vmatprep.subr.mxu0 %v3454
        %4536 = vmatpush1.msra.mxu0 %v3453
        %4537 = vmatprep.subr.mxu0 %v3460
        %4538 = vmatpush1.msra.mxu0 %v3459
        %4539 = vmatprep.subr.mxu0 %v3466
        %4540 = vmatpush1.msra.mxu0 %v3465
        %4541 = vmatprep.subr.mxu0 %v3472
        %4542 = vmatpush1.msra.mxu0 %v3471
        %4543 = vmatprep.subr.mxu0 %v3478
        %4544 = vmatpush1.msra.mxu0 %v3477
        %4545 = vmatprep.subr.mxu0 %v3484
        %4546 = vmatpush1.msra.mxu0 %v3483
        %4547 = vmatprep.subr.mxu0 %v3490
        %4548 = vmatpush1.msra.mxu0 %v3489
        %4549 = vmatprep.subr.mxu0 %v3496
        %4550 = vmatpush1.msra.mxu0 %v3495
        %4551 = vmatprep.subr.mxu0 %v3502
        %4552 = vmatpush1.msra.mxu0 %v3501
        %4553 = vmatprep.subr.mxu0 %v3508
        %4554 = vmatpush1.msra.mxu0 %v3507
        %4555 = vmatprep.subr.mxu0 %v3514
        %4556 = vmatpush1.msra.mxu0 %v3513
        %4557 = vmatprep.subr.mxu0 %v3520
        %4558 = vmatpush1.msra.mxu0 %v3519
        %4559 = vmatprep.subr.mxu0 %v3526
        %4560 = vmatpush1.msra.mxu0 %v3525
        %4561 = vmatprep.subr.mxu0 %v3532
        %4562 = vmatpush1.msra.mxu0 %v3531
        %4563 = vmatprep.subr.mxu0 %v3538
        %4564 = vmatpush1.msra.mxu0 %v3537
        %4565 = vmatprep.subr.mxu0 %v3544
        %4566 = vmatpush1.msra.mxu0 %v3543
        %4567 = vmatprep.subr.mxu0 %v3550
        %4568 = vmatpush1.msra.mxu0 %v3549
        %4569 = vmatprep.subr.mxu0 %v3556
        %4570 = vmatpush1.msra.mxu0 %v3555
        %4571 = vmatprep.subr.mxu0 %v3562
        %4572 = vmatpush1.msra.mxu0 %v3561
        %4573 = vmatprep.subr.mxu0 %v3568
        %4574 = vmatpush1.msra.mxu0 %v3567
        %4575 = vmatprep.subr.mxu0 %v3574
        %4576 = vmatpush1.msra.mxu0 %v3573
        %4577 = vmatprep.subr.mxu0 %v3580
        %4578 = vmatpush1.msra.mxu0 %v3579
        %4579 = vmatprep.mubr.f32.mxu0 %v2602
        %4580 = vmatmul.mubr.f32.gmra.mrb[0].mxu0 %v2593
        %v4581 = vpop.f32.mrb[0].mxu0
        %v4582 = vadd.f32 %v4511, %v4581
        %v4583 = vpop.f32.mrb[0].mxu0
        %v4584 = vadd.f32 %v4513, %v4583
        %4585 = vdwg.mxu0
        %4586 = vmatprep.subr.mxu0 %v3586
        %4587 = vmatpush1.msra.mxu0 %v3585
        %4588 = vmatprep.subr.mxu0 %v3592
        %4589 = vmatpush1.msra.mxu0 %v3591
        %4590 = vmatprep.subr.mxu0 %v3598
        %4591 = vmatpush1.msra.mxu0 %v3597
        %4592 = vmatprep.subr.mxu0 %v3604
        %4593 = vmatpush1.msra.mxu0 %v3603
        %4594 = vmatprep.subr.mxu0 %v3610
        %4595 = vmatpush1.msra.mxu0 %v3609
        %4596 = vmatprep.subr.mxu0 %v3616
        %4597 = vmatpush1.msra.mxu0 %v3615
        %4598 = vmatprep.subr.mxu0 %v3622
        %4599 = vmatpush1.msra.mxu0 %v3621
        %4600 = vmatprep.subr.mxu0 %v3628
        %4601 = vmatpush1.msra.mxu0 %v3627
        %4602 = vmatprep.subr.mxu0 %v3634
        %4603 = vmatpush1.msra.mxu0 %v3633
        %4604 = vmatprep.subr.mxu0 %v3640
        %4605 = vmatpush1.msra.mxu0 %v3639
        %4606 = vmatprep.subr.mxu0 %v3646
        %4607 = vmatpush1.msra.mxu0 %v3645
        %4608 = vmatprep.subr.mxu0 %v3652
        %4609 = vmatpush1.msra.mxu0 %v3651
        %4610 = vmatprep.subr.mxu0 %v3658
        %4611 = vmatpush1.msra.mxu0 %v3657
        %4612 = vmatprep.subr.mxu0 %v3664
        %4613 = vmatpush1.msra.mxu0 %v3663
        %4614 = vmatprep.subr.mxu0 %v3670
        %4615 = vmatpush1.msra.mxu0 %v3669
        %4616 = vmatprep.subr.mxu0 %v3676
        %4617 = vmatpush1.msra.mxu0 %v3675
        %4618 = vmatprep.subr.mxu0 %v3682
        %4619 = vmatpush1.msra.mxu0 %v3681
        %4620 = vmatprep.subr.mxu0 %v3688
        %4621 = vmatpush1.msra.mxu0 %v3687
        %4622 = vmatprep.subr.mxu0 %v3694
        %4623 = vmatpush1.msra.mxu0 %v3693
        %4624 = vmatprep.subr.mxu0 %v3700
        %4625 = vmatpush1.msra.mxu0 %v3699
        %4626 = vmatprep.subr.mxu0 %v3706
        %4627 = vmatpush1.msra.mxu0 %v3705
        %4628 = vmatprep.subr.mxu0 %v3712
        %4629 = vmatpush1.msra.mxu0 %v3711
        %4630 = vmatprep.subr.mxu0 %v3718
        %4631 = vmatpush1.msra.mxu0 %v3717
        %4632 = vmatprep.subr.mxu0 %v3724
        %4633 = vmatpush1.msra.mxu0 %v3723
        %4634 = vmatprep.subr.mxu0 %v3730
        %4635 = vmatpush1.msra.mxu0 %v3729
        %4636 = vmatprep.subr.mxu0 %v3736
        %4637 = vmatpush1.msra.mxu0 %v3735
        %4638 = vmatprep.subr.mxu0 %v3742
        %4639 = vmatpush1.msra.mxu0 %v3741
        %4640 = vmatprep.subr.mxu0 %v3748
        %4641 = vmatpush1.msra.mxu0 %v3747
        %4642 = vmatprep.subr.mxu0 %v3754
        %4643 = vmatpush1.msra.mxu0 %v3753
        %4644 = vmatprep.subr.mxu0 %v3760
        %4645 = vmatpush1.msra.mxu0 %v3759
        %4646 = vmatprep.subr.mxu0 %v3766
        %4647 = vmatpush1.msra.mxu0 %v3765
        %4648 = vmatprep.subr.mxu0 %v3772
        %4649 = vmatpush1.msra.mxu0 %v3771
        %4650 = vmatprep.mubr.f32.mxu0 %v2620
        %4651 = vmatmul.mubr.f32.gmra.mrb[0].mxu0 %v2611
        %v4652 = vpop.f32.mrb[0].mxu0
        %v4653 = vadd.f32 %v4582, %v4652
        %v4654 = vpop.f32.mrb[0].mxu0
        %v4655 = vadd.f32 %v4584, %v4654
        %4656 = vdwg.mxu0
        %v4657 = vmax.f32 %v4085, 0.0
        %v4658 = vmax.f32 %v4087, 0.0
        %v4659 = vmax.f32 %v4369, 0.0
        %v4660 = vmax.f32 %v4371, 0.0
        %v4661 = vmax.f32 %v4653, 0.0
        %v4662 = vmax.f32 %v4655, 0.0
        %v4669 = vcombine.low %v4657, %v4658
        %v4670 = vcombine.low %v4659, %v4660
        %v4671 = vcombine.low %v4661, %v4662
        %v4673 = vunpack.c.l.s4 1966171168
        %v4674 = vunpack.c.0.s8 %v4673
        %v4675 = vlaneseq
        %v4676 = vshrl.u32 %v4675, 7
        %v4677 = vsub.s32 %v4674, %v4676
        %v4678 = vrot.slane %v4669, %v4677
        %v4680 = vunpack.c.l.s4 1966171168
        %v4681 = vunpack.c.0.s8 %v4680
        %v4682 = vlaneseq
        %v4683 = vshrl.u32 %v4682, 7
        %v4684 = vsub.s32 %v4681, %v4683
        %v4685 = vrot.slane %v4670, %v4684
        %v4687 = vunpack.c.l.s4 1966171168
        %v4688 = vunpack.c.0.s8 %v4687
        %v4689 = vlaneseq
        %v4690 = vshrl.u32 %v4689, 7
        %v4691 = vsub.s32 %v4688, %v4690
        %v4692 = vrot.slane %v4671, %v4691
        %v4693 = vcombine.low %v4678, %v4685
        %v4695 = vunpack.c.l.s4 1966171168
        %v4696 = vunpack.c.0.s8 %v4695
        %v4697 = vlaneseq
        %v4698 = vshrl.u32 %v4697, 7
        %v4699 = vsub.s32 %v4696, %v4698
        %v4700 = vrot.slane %v4693, %v4699
        %v4702 = vunpack.c.l.s4 1966171168
        %v4703 = vunpack.c.0.s8 %v4702
        %v4704 = vlaneseq
        %v4705 = vshrl.u32 %v4704, 7
        %v4706 = vsub.s32 %v4703, %v4705
        %v4707 = vrot.slane %v4692, %v4706
        %v4708 = vcombine.low %v4700, %v4707
        %v4710 = vlaneseq
        %vm4711 = vcmp.ge.s32.totalorder %v4710, 0
        %vm4712 = vcmp.lt.s32.totalorder %v4710, 768
        %vm4713 = vmand %vm4711, %vm4712
        %4714 = vst.msk [vmem:[%s472] sm:$0x3f] %vm4713, %v4708
        %s4715 = sand.u32 %s236, 1
        %s4716 = scalar_lea.sflag [#allocation4], %s4715
        %s4717 = sand.u32 %s236, 1
        %s4718 = smul.addr %s4717, 6
        %s4719 = scalar_lea.vmem [#allocation10], %s4718
        // Predicated region
        $region65: #{tpu_custom_call.1} parent=47 // pred_check
          %p4720 = pneg %p246
        $region66: #{tpu_custom_call.1} parent=47 // pred_check_branch
          %4722 = sbr.rel (%p4720) target = $region68
        $region67: #{tpu_custom_call.1} parent=47 // pred_region
          %s4724 = ssub.s32 96, 96
          %4725 = vsyncadd %s4716, %s4724
          %s4726 = smul.addr %s34, 6
          %s4727 = smul.addr %s35, 12
          %s4728 = sadd.s32 %s4726, %s4727
          %s4729 = smul.addr %s4728, 16
          %s4730 = scalar_lea.hbm %s7, %s4729
          %s4732 = sshll.u32 %s4719, 4
          %s4733 = int_to_ptr.vmem [resolvable:$true] %s4732
          %4735 = dma.vmem_to_hbm [thread:$0]  %s4733, 96, %s4730, %s4716
        $region68: #{tpu_custom_call.1} parent=47 // pred_fallthru
          _
      $region48: #{tpu_custom_call.1} parent=5 // pred_fallthru
        _
      %p4736 = scmp.le.s32.totalorder 2, %s25
      // Predicated region
      $region69: #{tpu_custom_call.1} parent=5 // pred_check
        %p4737 = pneg %p4736
      $region70: #{tpu_custom_call.1} parent=5 // pred_check_branch
        %4739 = sbr.rel (%p4737) target = $region72
      $region71: #{tpu_custom_call.1} parent=5 // pred_region
        %s4740 = ssub.s32 %s25, 2
        // Predicated region
        $region73: #{tpu_custom_call.1} parent=71 // pred_check
          %p4741 = pneg %p252
        $region74: #{tpu_custom_call.1} parent=71 // pred_check_branch
          %4743 = sbr.rel (%p4741) target = $region76
        $region75: #{tpu_custom_call.1} parent=71 // pred_region
          %s4744 = sand.u32 %s237, 1
          %s4745 = scalar_lea.sflag [#allocation4], %s4744
          %s4746 = sand.u32 %s237, 1
          %s4747 = smul.addr %s4746, 6
          %s4748 = scalar_lea.vmem [#allocation10], %s4747
          %4749 = dma.done %s4745, 96
        $region76: #{tpu_custom_call.1} parent=71 // pred_fallthru
          _
      $region72: #{tpu_custom_call.1} parent=5 // pred_fallthru
        _
    $region6: #{tpu_custom_call.1} parent=1 // loop_footer
      %s29 = sadd.s32 1, %s25
    $region7: #{tpu_custom_call.1} parent=1 // loop_footer_branch
      %24 = sbr.rel target = $region3
    $region8: #{tpu_custom_call.1} parent=1 // loop_exit
      _
    %4750 = vsyncpa [#allocation3], 1
    %s4751 = scalar_lea.sflag [#allocation3], 1
    %4752 = vsyncpa %s4751, 1
    %4753 = vsyncpa [#allocation6], 1
    %s4754 = scalar_lea.sflag [#allocation6], 1
    %4755 = vsyncpa %s4754, 1
    %4756 = vsyncpa [#allocation9], 1
    %s4757 = scalar_lea.sflag [#allocation9], 1
    %4758 = vsyncpa %s4757, 1
    %4759 = vsyncpa [#allocation4], 1
    %s4760 = scalar_lea.sflag [#allocation4], 1
    %4761 = vsyncpa %s4760, 1

</llo_original>
